<compile_context>
chip_gen: v5e
topology: v5e:2x2
jax: 0.10.0
libtpu: 0.0.40
codegen_flags: <defaults>
</compile_context>

<pallas_src>
import math
import functools

import jax
import jax.numpy as jnp
from jax.experimental import pallas as pl
from jax.experimental.pallas import tpu as pltpu

LOG2PI = math.log(2.0 * math.pi)


# ---------------------------------------------------------------------------
# In-kernel helpers
# ---------------------------------------------------------------------------
def _dot_nt(a, b):
    # a (M, K) contracted with b (N, K) over the last dims -> (M, N); no transpose copy.
    return jax.lax.dot_general(a, b, (((1,), (1,)), ((), ())),
                               preferred_element_type=jnp.float32)


def _log_pdfs_tn(x, xx, mu, rho, inv2v):
    """Diagonal-Gaussian log_prob in (T, N) layout and per-cluster entropy column (T, 1)."""
    D = x.shape[1]
    # quad[t, n] = sum_d (x_nd - mu_td)^2 / (2 sigma_td^2), expanded as two MXU matmuls.
    quad = _dot_nt(inv2v, xx) - 2.0 * _dot_nt(mu * inv2v, x)            # (T, N)
    c_col = jnp.sum(mu * mu * inv2v + rho, axis=1, keepdims=True)       # (T, 1)
    log_pdfs = (-0.5 * LOG2PI * D) - quad - c_col                       # (T, N)
    entropy_col = 0.5 * D * (LOG2PI + 1.0) + jnp.sum(rho, axis=1, keepdims=True)  # (T, 1)
    return log_pdfs, entropy_col


# ---------------------------------------------------------------------------
# Kernel A: fused per-DP EM step (E-step + M-step), grid iterates over DPs
# ---------------------------------------------------------------------------
def dp_em_kernel(min_log_pi_ref,                       # SMEM (n_dps,)
                 x_ref, mu_ref, rho_ref, phi_old_ref, pi_ref,
                 phi_new_ref, mu_out_ref, rho_out_ref,
                 log_phi_ref, negll_ref, phi_old_sum_ref):
    d = pl.program_id(0)

    x = x_ref[...]               # (N, D)  resident across the DP grid
    xx = x * x                   # hoisted; reused by quad term and e2
    mu = mu_ref[...]             # (T, D)
    rho = rho_ref[...]           # (T, D)
    phi_old = phi_old_ref[...]   # (T, N)
    log_pi = jnp.log(pi_ref[...])               # (T, N), EUP

    sig = jnp.exp(rho)                          # std = exp(rho)
    inv2v = 1.0 / (2.0 * sig * sig)             # 1 / (2 sigma^2)

    log_pdfs, entropy_col = _log_pdfs_tn(x, xx, mu, rho, inv2v)
    kl_gauss = log_pdfs + entropy_col                       # (T, N)

    # mixing of the two "KL" terms (global scalar mins, as in PyTorch)
    n_t_gauss = jnp.min(kl_gauss)
    n_t_pi = min_log_pi_ref[d]                  # precomputed in glue, read from SMEM
    mix = n_t_pi / (n_t_gauss + n_t_pi)
    kl = mix * kl_gauss + (1.0 - mix) * log_pi              # (T, N)

    # softmax over clusters (sublane axis 0)
    kl_max = jnp.max(kl, axis=0, keepdims=True)
    e = jnp.exp(kl - kl_max)
    phi_new = e / jnp.sum(e, axis=0, keepdims=True)         # (T, N)
    phi_new_ref[...] = phi_new

    # per-instance sum_t log phi (needed by the HDP level), lane-dense (1, N)
    log_phi_ref[...] = jnp.sum(jnp.log(phi_new), axis=0, keepdims=True)

    # likelihood = (phi_new * mix * kl_gauss).sum(T).mean(N); module returns -likelihood
    lik = jnp.mean(jnp.sum(phi_new * (mix * kl_gauss), axis=0))
    negll_ref[...] = jnp.reshape(-lik, (1, 1))

    # ---- M-step: update_mean ----
    phi_old_sum = jnp.sum(phi_old, axis=1, keepdims=True)                  # (T, 1) raw
    phi_old_sum_ref[...] = phi_old_sum          # exported for the DP gamma update
    n_t_col = jnp.maximum(phi_old_sum, 1e-6)                               # (T, 1)
    s_raw_col = jnp.sum(phi_new, axis=1, keepdims=True)                    # (T, 1)
    n_t_new_col = jnp.maximum(s_raw_col, 1e-6)                             # (T, 1)

    e1 = jnp.dot(phi_new, x, preferred_element_type=jnp.float32)           # (T, D)
    mu_new = e1 / n_t_new_col
    mix_t = n_t_col / (n_t_new_col + n_t_col)                              # (T, 1)
    mu_upd = mix_t * mu + (1.0 - mix_t) * mu_new
    mu_out_ref[...] = mu_upd

    # ---- M-step: update_variance (uses updated mu, old sigma) ----
    e2 = jnp.dot(phi_new, xx, preferred_element_type=jnp.float32)          # (T, D)
    sig2_new = (e2 - 2.0 * mu_upd * e1 + mu_upd * mu_upd * s_raw_col) / n_t_new_col
    sig_new = jnp.sqrt(jnp.maximum(sig2_new, 0.0))
    sig_upd = mix_t * sig + (1.0 - mix_t) * sig_new
    rho_out_ref[...] = jnp.log(sig_upd)


# ---------------------------------------------------------------------------
# Kernel B: fused per-DP inference logits (sum over clusters of log_pi + log_pdf)
# ---------------------------------------------------------------------------
def dp_infer_kernel(x_ref, mu_ref, rho_ref, pi_ref, out_ref):
    x = x_ref[...]
    xx = x * x
    mu = mu_ref[...]
    rho = rho_ref[...]
    log_pi = jnp.log(pi_ref[...])                            # (T, N)
    sig = jnp.exp(rho)
    inv2v = 1.0 / (2.0 * sig * sig)
    log_pdfs, _ = _log_pdfs_tn(x, xx, mu, rho, inv2v)        # (T, N)
    out_ref[...] = jnp.sum(log_pi + log_pdfs, axis=0, keepdims=True)   # (1, N) lane-dense


# ---------------------------------------------------------------------------
# pallas_call wrappers (single call over all DPs; DP axis parallel for megacore)
# ---------------------------------------------------------------------------
# TODO(synk): for production-sized N, add an inner N grid axis ("arbitrary") with
# (T,D)/(T,1) VMEM accumulators and a two-pass min/softmax; at demo sizes a full
# (N, D) resident block is optimal.
def hdp_em_step(x, mu_all, rho_all, phi_all, pi_all, min_log_pi):
    n_dps, T, D = mu_all.shape
    N = x.shape[0]
    return pl.pallas_call(
        dp_em_kernel,
        grid=(n_dps,),
        in_specs=[
            pl.BlockSpec(memory_space=pltpu.MemorySpace.SMEM),          # min_log_pi (n_dps,)
            pl.BlockSpec((N, D), lambda d: (0, 0)),                     # x, resident
            pl.BlockSpec((None, T, D), lambda d: (d, 0, 0)),            # mu
            pl.BlockSpec((None, T, D), lambda d: (d, 0, 0)),            # rho
            pl.BlockSpec((None, T, N), lambda d: (d, 0, 0)),            # phi (old)
            pl.BlockSpec((None, T, N), lambda d: (d, 0, 0)),            # pi (T, N layout)
        ],
        out_specs=(
            pl.BlockSpec((None, T, N), lambda d: (d, 0, 0)),            # phi_new
            pl.BlockSpec((None, T, D), lambda d: (d, 0, 0)),            # mu_new
            pl.BlockSpec((None, T, D), lambda d: (d, 0, 0)),            # rho_new
            pl.BlockSpec((None, 1, N), lambda d: (d, 0, 0)),            # sum_t log phi
            pl.BlockSpec((None, 1, 1), lambda d: (d, 0, 0)),            # -likelihood
            pl.BlockSpec((None, T, 1), lambda d: (d, 0, 0)),            # sum_n phi_old
        ),
        out_shape=(
            jax.ShapeDtypeStruct((n_dps, T, N), jnp.float32),
            jax.ShapeDtypeStruct((n_dps, T, D), jnp.float32),
            jax.ShapeDtypeStruct((n_dps, T, D), jnp.float32),
            jax.ShapeDtypeStruct((n_dps, 1, N), jnp.float32),
            jax.ShapeDtypeStruct((n_dps, 1, 1), jnp.float32),
            jax.ShapeDtypeStruct((n_dps, T, 1), jnp.float32),
        ),
        compiler_params=pltpu.CompilerParams(dimension_semantics=("parallel",)),
    )(min_log_pi, x, mu_all, rho_all, phi_all, pi_all)


def hdp_infer_step(x, mu_all, rho_all, pi_all):
    n_dps, T, D = mu_all.shape
    N = x.shape[0]
    return pl.pallas_call(
        dp_infer_kernel,
        grid=(n_dps,),
        in_specs=[
            pl.BlockSpec((N, D), lambda d: (0, 0)),
            pl.BlockSpec((None, T, D), lambda d: (d, 0, 0)),
            pl.BlockSpec((None, T, D), lambda d: (d, 0, 0)),
            pl.BlockSpec((None, T, N), lambda d: (d, 0, 0)),
        ],
        out_specs=pl.BlockSpec((None, 1, N), lambda d: (d, 0, 0)),
        out_shape=jax.ShapeDtypeStruct((n_dps, 1, N), jnp.float32),
        compiler_params=pltpu.CompilerParams(dimension_semantics=("parallel",)),
    )(x, mu_all, rho_all, pi_all)


# ---------------------------------------------------------------------------
# Plain-JAX glue (matches PyTorch module semantics, vectorized over DPs)
# ---------------------------------------------------------------------------
def mix_weights(beta):
    # stick-breaking weights over the last axis; (..., K) -> (..., K+1)
    ones = jnp.ones(beta.shape[:-1] + (1,), beta.dtype)
    beta1m_cumprod = jnp.cumprod(1.0 - beta, axis=-1)
    return jnp.concatenate([beta, ones], -1) * jnp.concatenate([ones, beta1m_cumprod], -1)


def sample_pi_hdp(key, g1, g2, n_rows):
    # TODO(synk): reference uses scipy beta.rvs (host RNG); replaced with a
    # deterministic jax.random.beta key chain.
    b = jax.random.beta(key, g1, g2, shape=(n_rows, g1.shape[0])).astype(jnp.float32)
    return mix_weights(b)[:, :-1]                                  # (N, n_dps)


def sample_pi_dps_tn(key, g1, g2, n_rows):
    # g1/g2: (n_dps, T) -> pi (n_dps, T, N): sample and stick-break directly in the
    # kernel's (T, N) layout (cumprod along the cluster axis), avoiding any transpose.
    n_dps, T = g1.shape
    b = jax.random.beta(key, g1[:, :, None], g2[:, :, None],
                        shape=(n_dps, T, n_rows)).astype(jnp.float32)
    ones = jnp.ones((n_dps, 1, n_rows), jnp.float32)
    b1m_cumprod = jnp.cumprod(1.0 - b, axis=1)
    pi = jnp.concatenate([b, ones], axis=1) * jnp.concatenate([ones, b1m_cumprod], axis=1)
    return pi[:, :-1, :]                                           # (n_dps, T, N)


def update_gamma_hdp(phi, eta):
    # phi: (N, K) instance-major
    phi_fl = jnp.flip(phi, axis=1)
    cum = jnp.flip(jnp.cumsum(phi_fl, axis=1) - phi_fl, axis=1)
    return 1.0 + jnp.mean(phi, axis=0), eta + jnp.mean(cum, axis=0)


def update_gamma_dps_from_sums(phi_old_sum, n_rows, eta):
    # phi_old_sum: (n_dps, T, 1) kernel-produced per-cluster sums of the OLD phi.
    # flip/cumsum over clusters commutes with the mean over instances.
    s_mean = phi_old_sum[:, :, 0] / n_rows                         # (n_dps, T)
    s_fl = jnp.flip(s_mean, axis=1)
    cum = jnp.flip(jnp.cumsum(s_fl, axis=1) - s_fl, axis=1)
    return 1.0 + s_mean, eta + cum


def hdp_forward(x, state, key, eta):
    """One HierarchicalDirichletProcess_EM.forward(x) — returns the updated state."""
    N = x.shape[0]
    k_hdp, k_dp = jax.random.split(key)

    pi_hdp = sample_pi_hdp(k_hdp, state["hdp_g1"], state["hdp_g2"], N)      # (N, n_dps)
    pi_dp = sample_pi_dps_tn(k_dp, state["g1"], state["g2"], N)             # (n_dps, T, N)
    # min over (T, N) of log(pi) == log(min pi); keeps the reduce out of the kernel.
    min_log_pi = jnp.log(jnp.min(pi_dp, axis=(1, 2)))                       # (n_dps,)

    phi_new, mu_new, rho_new, log_phi, negll, phi_old_sum = hdp_em_step(
        x, state["mu"], state["rho"], state["phi"], pi_dp, min_log_pi)

    # DP-level gamma updates use the OLD phi (PyTorch updates gamma before self.phi=phi_new);
    # computed from the kernel-exported per-cluster sums so phi is never re-read by XLA.
    g1_new, g2_new = update_gamma_dps_from_sums(phi_old_sum, N, eta)

    # HDP-level loss (computed for fidelity; HDP_Cluster_EM discards it)
    likelihoods = negll[:, 0, 0]                                            # (n_dps,)
    _loss = -jnp.sum(jnp.mean(pi_hdp * likelihoods[None, :], axis=0))

    hdp_phi = jax.nn.softmax(jnp.log(pi_hdp) + log_phi[:, 0, :].T, axis=-1)  # (N, n_dps)
    hdp_g1, hdp_g2 = update_gamma_hdp(hdp_phi, eta)

    return dict(mu=mu_new, rho=rho_new, phi=phi_new,
                g1=g1_new, g2=g2_new, hdp_g1=hdp_g1, hdp_g2=hdp_g2)


def hdp_inference(x, state, key):
    N = x.shape[0]
    k_hdp, k_dp = jax.random.split(key)
    pi_hdp = sample_pi_hdp(k_hdp, state["hdp_g1"], state["hdp_g2"], N)      # (N, n_dps)
    pi_dp = sample_pi_dps_tn(k_dp, state["g1"], state["g2"], N)             # (n_dps, T, N)
    logits = hdp_infer_step(x, state["mu"], state["rho"], pi_dp)            # (n_dps, 1, N)
    preds = logits[:, 0, :].T                                               # (N, n_dps)
    return jax.nn.softmax(jnp.log(pi_hdp) + preds, axis=-1)


@functools.partial(jax.jit, static_argnames=("eta", "epoch"))
def hdp_cluster_em_forward(x, state, key, eta, epoch):
    for _ in range(epoch):
        key, sub = jax.random.split(key)
        state = hdp_forward(x, state, sub, eta)
    key, sub = jax.random.split(key)
    return hdp_inference(x, state, sub)


# ---------------------------------------------------------------------------
if __name__ == "__main__":
    N_DPS, TRUNC, ETA, BATCH, EPOCH, DIM = 3, 8, 1.0, 16, 2, 128

    key = jax.random.PRNGKey(0)
    k_x, k_mu, k_rho, k_run = jax.random.split(key, 4)

    x = jax.random.normal(k_x, (BATCH, DIM), jnp.float32)

    # Deterministic parameter init (shapes from DirichletProcess_EM.__init__),
    # stacked over DPs; phi kept in (T, N) cluster-major layout.
    state = dict(
        mu=jax.random.uniform(k_mu, (N_DPS, TRUNC, DIM), jnp.float32, -0.5, 0.5),
        rho=jax.random.uniform(k_rho, (N_DPS, TRUNC, DIM), jnp.float32, -4.0, -3.0),
        phi=jnp.full((N_DPS, TRUNC, BATCH), 1.0 / TRUNC, jnp.float32),
        g1=jnp.ones((N_DPS, TRUNC), jnp.float32),
        g2=jnp.full((N_DPS, TRUNC), ETA, jnp.float32),
        hdp_g1=jnp.ones((N_DPS,), jnp.float32),
        hdp_g2=jnp.full((N_DPS,), ETA, jnp.float32),
    )

    out = hdp_cluster_em_forward(x, state, k_run, ETA, EPOCH)
    out = jax.block_until_ready(out)

    assert out.shape == (BATCH, N_DPS)
    assert bool(jnp.all(jnp.isfinite(out)))
    # rows of the final softmax must sum to 1
    assert bool(jnp.allclose(jnp.sum(out, axis=-1), 1.0, atol=1e-5))
    print("KERNEL_OK")
</pallas_src>

<mosaic_0001>
module attributes {stable_mosaic.version = 11 : i64} {
  func.func @dp_em_kernel(%arg0: i32, %arg1: memref<3xf32, #tpu.memory_space<smem>>, %arg2: memref<16x128xf32, #tpu.memory_space<vmem>>, %arg3: memref<1x8x128xf32, #tpu.memory_space<vmem>>, %arg4: memref<1x8x128xf32, #tpu.memory_space<vmem>>, %arg5: memref<1x8x16xf32, #tpu.memory_space<vmem>>, %arg6: memref<1x8x16xf32, #tpu.memory_space<vmem>>, %arg7: memref<1x8x16xf32, #tpu.memory_space<vmem>>, %arg8: memref<1x8x128xf32, #tpu.memory_space<vmem>>, %arg9: memref<1x8x128xf32, #tpu.memory_space<vmem>>, %arg10: memref<1x1x16xf32, #tpu.memory_space<vmem>>, %arg11: memref<1x1x1xf32, #tpu.memory_space<vmem>>, %arg12: memref<1x8x1xf32, #tpu.memory_space<vmem>>) attributes {dimension_semantics = [#tpu.dimension_semantics<parallel>], iteration_bounds = array<i64: 3>, scalar_prefetch = 0 : i64, scratch_operands = 0 : i64, tpu.core_type = #tpu.core_type<tc>, window_params = [{transform_indices = @transform_0, window_bounds = array<i64: 3>}, {pipeline_mode = #tpu.pipeline_mode<synchronous>, transform_indices = @transform_1, window_bounds = array<i64: 16, 128>}, {transform_indices = @transform_2, window_bounds = array<i64: 1, 8, 128>}, {transform_indices = @transform_3, window_bounds = array<i64: 1, 8, 128>}, {transform_indices = @transform_4, window_bounds = array<i64: 1, 8, 16>}, {transform_indices = @transform_5, window_bounds = array<i64: 1, 8, 16>}, {transform_indices = @transform_6, window_bounds = array<i64: 1, 8, 16>}, {transform_indices = @transform_7, window_bounds = array<i64: 1, 8, 128>}, {transform_indices = @transform_8, window_bounds = array<i64: 1, 8, 128>}, {transform_indices = @transform_9, window_bounds = array<i64: 1, 1, 16>}, {transform_indices = @transform_10, window_bounds = array<i64: 1, 1, 1>}, {transform_indices = @transform_11, window_bounds = array<i64: 1, 8, 1>}]} {
    %c0 = arith.constant 0 : index
    %c0_0 = arith.constant 0 : index
    %0 = vector.load %arg2[%c0, %c0_0] : memref<16x128xf32, #tpu.memory_space<vmem>>, vector<16x128xf32>
    %1 = arith.mulf %0, %0 : vector<16x128xf32>
    %c0_1 = arith.constant 0 : index
    %c0_2 = arith.constant 0 : index
    %c0_3 = arith.constant 0 : index
    %2 = vector.load %arg3[%c0_1, %c0_2, %c0_3] : memref<1x8x128xf32, #tpu.memory_space<vmem>>, vector<1x8x128xf32>
    %3 = vector.shape_cast %2 : vector<1x8x128xf32> to vector<8x128xf32>
    %c0_4 = arith.constant 0 : index
    %c0_5 = arith.constant 0 : index
    %c0_6 = arith.constant 0 : index
    %4 = vector.load %arg4[%c0_4, %c0_5, %c0_6] : memref<1x8x128xf32, #tpu.memory_space<vmem>>, vector<1x8x128xf32>
    %5 = vector.shape_cast %4 : vector<1x8x128xf32> to vector<8x128xf32>
    %c0_7 = arith.constant 0 : index
    %c0_8 = arith.constant 0 : index
    %c0_9 = arith.constant 0 : index
    %6 = vector.load %arg5[%c0_7, %c0_8, %c0_9] : memref<1x8x16xf32, #tpu.memory_space<vmem>>, vector<1x8x16xf32>
    %7 = vector.shape_cast %6 : vector<1x8x16xf32> to vector<8x16xf32>
    %c0_10 = arith.constant 0 : index
    %c0_11 = arith.constant 0 : index
    %c0_12 = arith.constant 0 : index
    %8 = vector.load %arg6[%c0_10, %c0_11, %c0_12] : memref<1x8x16xf32, #tpu.memory_space<vmem>>, vector<1x8x16xf32>
    %9 = vector.shape_cast %8 : vector<1x8x16xf32> to vector<8x16xf32>
    %10 = math.log %9 : vector<8x16xf32>
    %11 = math.exp %5 : vector<8x128xf32>
    %cst = arith.constant 2.000000e+00 : f32
    %12 = vector.broadcast %cst : f32 to vector<8x128xf32>
    %13 = arith.mulf %12, %11 : vector<8x128xf32>
    %14 = arith.mulf %13, %11 : vector<8x128xf32>
    %cst_13 = arith.constant 1.000000e+00 : f32
    %15 = vector.broadcast %cst_13 : f32 to vector<8x128xf32>
    %16 = arith.divf %15, %14 : vector<8x128xf32>
    %cst_14 = arith.constant dense<0.000000e+00> : vector<8x16xf32>
    %17 = tpu.matmul %16, %1, %cst_14 {dimension_numbers = #tpu.dot_dimension_numbers<[1], [1], [0], [0], [0, 0, 1, 0], [], []>} : vector<8x128xf32>, vector<16x128xf32>, vector<8x16xf32> -> vector<8x16xf32>
    %18 = arith.mulf %3, %16 : vector<8x128xf32>
    %cst_15 = arith.constant dense<0.000000e+00> : vector<8x16xf32>
    %19 = tpu.matmul %18, %0, %cst_15 {dimension_numbers = #tpu.dot_dimension_numbers<[1], [1], [0], [0], [0, 0, 1, 0], [], []>} : vector<8x128xf32>, vector<16x128xf32>, vector<8x16xf32> -> vector<8x16xf32>
    %cst_16 = arith.constant 2.000000e+00 : f32
    %20 = vector.broadcast %cst_16 : f32 to vector<8x16xf32>
    %21 = arith.mulf %20, %19 : vector<8x16xf32>
    %22 = arith.subf %17, %21 : vector<8x16xf32>
    %23 = arith.mulf %3, %3 : vector<8x128xf32>
    %24 = arith.mulf %23, %16 : vector<8x128xf32>
    %25 = arith.addf %24, %5 : vector<8x128xf32>
    %cst_17 = arith.constant dense<0.000000e+00> : vector<8xf32>
    %26 = vector.multi_reduction <add>, %25, %cst_17 [1] : vector<8x128xf32> to vector<8xf32>
    %27 = vector.shape_cast %26 : vector<8xf32> to vector<8x1xf32>
    %cst_18 = arith.constant -117.62413 : f32
    %28 = vector.broadcast %cst_18 : f32 to vector<8x16xf32>
    %29 = arith.subf %28, %22 : vector<8x16xf32>
    %30 = vector.broadcast %27 : vector<8x1xf32> to vector<8x16xf32>
    %31 = arith.subf %29, %30 : vector<8x16xf32>
    %cst_19 = arith.constant dense<0.000000e+00> : vector<8xf32>
    %32 = vector.multi_reduction <add>, %5, %cst_19 [1] : vector<8x128xf32> to vector<8xf32>
    %33 = vector.shape_cast %32 : vector<8xf32> to vector<8x1xf32>
    %cst_20 = arith.constant 181.62413 : f32
    %34 = vector.broadcast %cst_20 : f32 to vector<8x1xf32>
    %35 = arith.addf %34, %33 : vector<8x1xf32>
    %36 = vector.broadcast %35 : vector<8x1xf32> to vector<8x16xf32>
    %37 = arith.addf %31, %36 : vector<8x16xf32>
    %38 = vector.shape_cast %37 : vector<8x16xf32> to vector<1x8x16xf32>
    %cst_21 = arith.constant dense<0x7F800000> : vector<1xf32>
    %39 = vector.multi_reduction <minimumf>, %38, %cst_21 [1, 2] : vector<1x8x16xf32> to vector<1xf32>
    %40 = vector.shape_cast %39 : vector<1xf32> to vector<1x1x1xf32>
    %41 = vector.extract %40[0, 0, 0] : f32 from vector<1x1x1xf32>
    %42 = arith.index_cast %arg0 : i32 to index
    %43 = memref.load %arg1[%42] : memref<3xf32, #tpu.memory_space<smem>>
    %44 = arith.addf %41, %43 : f32
    %45 = arith.divf %43, %44 : f32
    %46 = vector.broadcast %45 : f32 to vector<8x16xf32>
    %47 = arith.mulf %46, %37 : vector<8x16xf32>
    %cst_22 = arith.constant 1.000000e+00 : f32
    %48 = arith.subf %cst_22, %45 : f32
    %49 = vector.broadcast %48 : f32 to vector<8x16xf32>
    %50 = arith.mulf %49, %10 : vector<8x16xf32>
    %51 = arith.addf %47, %50 : vector<8x16xf32>
    %cst_23 = arith.constant dense<0xFF800000> : vector<16xf32>
    %52 = vector.multi_reduction <maximumf>, %51, %cst_23 [0] : vector<8x16xf32> to vector<16xf32>
    %53 = vector.shape_cast %52 : vector<16xf32> to vector<1x16xf32>
    %54 = vector.broadcast %53 : vector<1x16xf32> to vector<8x16xf32>
    %55 = arith.subf %51, %54 : vector<8x16xf32>
    %56 = math.exp %55 : vector<8x16xf32>
    %cst_24 = arith.constant dense<0.000000e+00> : vector<16xf32>
    %57 = vector.multi_reduction <add>, %56, %cst_24 [0] : vector<8x16xf32> to vector<16xf32>
    %58 = vector.shape_cast %57 : vector<16xf32> to vector<1x16xf32>
    %59 = vector.broadcast %58 : vector<1x16xf32> to vector<8x16xf32>
    %60 = arith.divf %56, %59 : vector<8x16xf32>
    %c0_25 = arith.constant 0 : index
    %c0_26 = arith.constant 0 : index
    %c0_27 = arith.constant 0 : index
    %61 = vector.load %arg7[%c0_25, %c0_26, %c0_27] : memref<1x8x16xf32, #tpu.memory_space<vmem>>, vector<1x8x16xf32>
    %62 = vector.shape_cast %61 : vector<1x8x16xf32> to vector<8x16xf32>
    %63 = vector.shape_cast %60 : vector<8x16xf32> to vector<1x8x16xf32>
    tpu.vector_store %arg7[%c0_25, %c0_26, %c0_27], %63 {strides = array<i32>} : memref<1x8x16xf32, #tpu.memory_space<vmem>>, vector<1x8x16xf32>,
    %64 = math.log %60 : vector<8x16xf32>
    %cst_28 = arith.constant dense<0.000000e+00> : vector<16xf32>
    %65 = vector.multi_reduction <add>, %64, %cst_28 [0] : vector<8x16xf32> to vector<16xf32>
    %66 = vector.shape_cast %65 : vector<16xf32> to vector<1x16xf32>
    %c0_29 = arith.constant 0 : index
    %c0_30 = arith.constant 0 : index
    %c0_31 = arith.constant 0 : index
    %67 = vector.load %arg10[%c0_29, %c0_30, %c0_31] : memref<1x1x16xf32, #tpu.memory_space<vmem>>, vector<1x1x16xf32>
    %68 = vector.shape_cast %67 : vector<1x1x16xf32> to vector<1x16xf32>
    %69 = vector.shape_cast %66 : vector<1x16xf32> to vector<1x1x16xf32>
    tpu.vector_store %arg10[%c0_29, %c0_30, %c0_31], %69 {strides = array<i32>} : memref<1x1x16xf32, #tpu.memory_space<vmem>>, vector<1x1x16xf32>,
    %70 = vector.broadcast %45 : f32 to vector<8x16xf32>
    %71 = arith.mulf %70, %37 : vector<8x16xf32>
    %72 = arith.mulf %60, %71 : vector<8x16xf32>
    %cst_32 = arith.constant dense<0.000000e+00> : vector<16xf32>
    %73 = vector.multi_reduction <add>, %72, %cst_32 [0] : vector<8x16xf32> to vector<16xf32>
    %74 = vector.shape_cast %73 : vector<16xf32> to vector<1x16xf32>
    %cst_33 = arith.constant dense<0.000000e+00> : vector<1xf32>
    %75 = vector.multi_reduction <add>, %74, %cst_33 [1] : vector<1x16xf32> to vector<1xf32>
    %76 = vector.shape_cast %75 : vector<1xf32> to vector<1x1xf32>
    %77 = vector.extract %76[0, 0] : f32 from vector<1x1xf32>
    %cst_34 = arith.constant 1.600000e+01 : f32
    %78 = arith.divf %77, %cst_34 : f32
    %cst_35 = arith.constant 0.000000e+00 : f32
    %79 = arith.subf %cst_35, %78 : f32
    %80 = vector.broadcast %79 : f32 to vector<1x1xf32>
    %c0_36 = arith.constant 0 : index
    %c0_37 = arith.constant 0 : index
    %c0_38 = arith.constant 0 : index
    %81 = vector.load %arg11[%c0_36, %c0_37, %c0_38] : memref<1x1x1xf32, #tpu.memory_space<vmem>>, vector<1x1x1xf32>
    %82 = vector.shape_cast %81 : vector<1x1x1xf32> to vector<1x1xf32>
    %83 = vector.shape_cast %80 : vector<1x1xf32> to vector<1x1x1xf32>
    tpu.vector_store %arg11[%c0_36, %c0_37, %c0_38], %83 {strides = array<i32>} : memref<1x1x1xf32, #tpu.memory_space<vmem>>, vector<1x1x1xf32>,
    %cst_39 = arith.constant dense<0.000000e+00> : vector<8xf32>
    %84 = vector.multi_reduction <add>, %7, %cst_39 [1] : vector<8x16xf32> to vector<8xf32>
    %85 = vector.shape_cast %84 : vector<8xf32> to vector<8x1xf32>
    %c0_40 = arith.constant 0 : index
    %c0_41 = arith.constant 0 : index
    %c0_42 = arith.constant 0 : index
    %86 = vector.load %arg12[%c0_40, %c0_41, %c0_42] : memref<1x8x1xf32, #tpu.memory_space<vmem>>, vector<1x8x1xf32>
    %87 = vector.shape_cast %86 : vector<1x8x1xf32> to vector<8x1xf32>
    %88 = vector.shape_cast %85 : vector<8x1xf32> to vector<1x8x1xf32>
    tpu.vector_store %arg12[%c0_40, %c0_41, %c0_42], %88 {strides = array<i32>} : memref<1x8x1xf32, #tpu.memory_space<vmem>>, vector<1x8x1xf32>,
    %cst_43 = arith.constant 9.99999997E-7 : f32
    %89 = vector.broadcast %cst_43 : f32 to vector<8x1xf32>
    %90 = arith.maximumf %85, %89 : vector<8x1xf32>
    %cst_44 = arith.constant dense<0.000000e+00> : vector<8xf32>
    %91 = vector.multi_reduction <add>, %60, %cst_44 [1] : vector<8x16xf32> to vector<8xf32>
    %92 = vector.shape_cast %91 : vector<8xf32> to vector<8x1xf32>
    %cst_45 = arith.constant 9.99999997E-7 : f32
    %93 = vector.broadcast %cst_45 : f32 to vector<8x1xf32>
    %94 = arith.maximumf %92, %93 : vector<8x1xf32>
    %cst_46 = arith.constant dense<0.000000e+00> : vector<8x128xf32>
    %95 = tpu.matmul %60, %0, %cst_46 {dimension_numbers = #tpu.dot_dimension_numbers<[1], [0], [0], [1], [0, 0, 1, 1], [], []>} : vector<8x16xf32>, vector<16x128xf32>, vector<8x128xf32> -> vector<8x128xf32>
    %96 = vector.broadcast %94 : vector<8x1xf32> to vector<8x128xf32>
    %97 = arith.divf %95, %96 : vector<8x128xf32>
    %98 = arith.addf %94, %90 : vector<8x1xf32>
    %99 = arith.divf %90, %98 : vector<8x1xf32>
    %100 = vector.broadcast %99 : vector<8x1xf32> to vector<8x128xf32>
    %101 = arith.mulf %100, %3 : vector<8x128xf32>
    %cst_47 = arith.constant 1.000000e+00 : f32
    %102 = vector.broadcast %cst_47 : f32 to vector<8x1xf32>
    %103 = arith.subf %102, %99 : vector<8x1xf32>
    %104 = vector.broadcast %103 : vector<8x1xf32> to vector<8x128xf32>
    %105 = arith.mulf %104, %97 : vector<8x128xf32>
    %106 = arith.addf %101, %105 : vector<8x128xf32>
    %c0_48 = arith.constant 0 : index
    %c0_49 = arith.constant 0 : index
    %c0_50 = arith.constant 0 : index
    %107 = vector.load %arg8[%c0_48, %c0_49, %c0_50] : memref<1x8x128xf32, #tpu.memory_space<vmem>>, vector<1x8x128xf32>
    %108 = vector.shape_cast %107 : vector<1x8x128xf32> to vector<8x128xf32>
    %109 = vector.shape_cast %106 : vector<8x128xf32> to vector<1x8x128xf32>
    tpu.vector_store %arg8[%c0_48, %c0_49, %c0_50], %109 {strides = array<i32>} : memref<1x8x128xf32, #tpu.memory_space<vmem>>, vector<1x8x128xf32>,
    %cst_51 = arith.constant dense<0.000000e+00> : vector<8x128xf32>
    %110 = tpu.matmul %60, %1, %cst_51 {dimension_numbers = #tpu.dot_dimension_numbers<[1], [0], [0], [1], [0, 0, 1, 1], [], []>} : vector<8x16xf32>, vector<16x128xf32>, vector<8x128xf32> -> vector<8x128xf32>
    %cst_52 = arith.constant 2.000000e+00 : f32
    %111 = vector.broadcast %cst_52 : f32 to vector<8x128xf32>
    %112 = arith.mulf %111, %106 : vector<8x128xf32>
    %113 = arith.mulf %112, %95 : vector<8x128xf32>
    %114 = arith.subf %110, %113 : vector<8x128xf32>
    %115 = arith.mulf %106, %106 : vector<8x128xf32>
    %116 = vector.broadcast %92 : vector<8x1xf32> to vector<8x128xf32>
    %117 = arith.mulf %115, %116 : vector<8x128xf32>
    %118 = arith.addf %114, %117 : vector<8x128xf32>
    %119 = vector.broadcast %94 : vector<8x1xf32> to vector<8x128xf32>
    %120 = arith.divf %118, %119 : vector<8x128xf32>
    %cst_53 = arith.constant 0.000000e+00 : f32
    %121 = vector.broadcast %cst_53 : f32 to vector<8x128xf32>
    %122 = arith.maximumf %120, %121 : vector<8x128xf32>
    %123 = math.sqrt %122 : vector<8x128xf32>
    %124 = vector.broadcast %99 : vector<8x1xf32> to vector<8x128xf32>
    %125 = arith.mulf %124, %11 : vector<8x128xf32>
    %cst_54 = arith.constant 1.000000e+00 : f32
    %126 = vector.broadcast %cst_54 : f32 to vector<8x1xf32>
    %127 = arith.subf %126, %99 : vector<8x1xf32>
    %128 = vector.broadcast %127 : vector<8x1xf32> to vector<8x128xf32>
    %129 = arith.mulf %128, %123 : vector<8x128xf32>
    %130 = arith.addf %125, %129 : vector<8x128xf32>
    %131 = math.log %130 : vector<8x128xf32>
    %c0_55 = arith.constant 0 : index
    %c0_56 = arith.constant 0 : index
    %c0_57 = arith.constant 0 : index
    %132 = vector.load %arg9[%c0_55, %c0_56, %c0_57] : memref<1x8x128xf32, #tpu.memory_space<vmem>>, vector<1x8x128xf32>
    %133 = vector.shape_cast %132 : vector<1x8x128xf32> to vector<8x128xf32>
    %134 = vector.shape_cast %131 : vector<8x128xf32> to vector<1x8x128xf32>
    tpu.vector_store %arg9[%c0_55, %c0_56, %c0_57], %134 {strides = array<i32>} : memref<1x8x128xf32, #tpu.memory_space<vmem>>, vector<1x8x128xf32>,
    return
  }
  func.func @transform_0(%arg0: i32) -> i32 {
    %c0_i32 = arith.constant 0 : i32
    %c0_i32_0 = arith.constant 0 : i32
    return %c0_i32 : i32
  }
  func.func @transform_1(%arg0: i32) -> (i32, i32) {
    %c0_i32 = arith.constant 0 : i32
    %c0_i32_0 = arith.constant 0 : i32
    %c0_i32_1 = arith.constant 0 : i32
    return %c0_i32, %c0_i32_0 : i32, i32
  }
  func.func @transform_2(%arg0: i32) -> (i32, i32, i32) {
    %c0_i32 = arith.constant 0 : i32
    %c0_i32_0 = arith.constant 0 : i32
    %c0_i32_1 = arith.constant 0 : i32
    return %arg0, %c0_i32, %c0_i32_0 : i32, i32, i32
  }
  func.func @transform_3(%arg0: i32) -> (i32, i32, i32) {
    %c0_i32 = arith.constant 0 : i32
    %c0_i32_0 = arith.constant 0 : i32
    %c0_i32_1 = arith.constant 0 : i32
    return %arg0, %c0_i32, %c0_i32_0 : i32, i32, i32
  }
  func.func @transform_4(%arg0: i32) -> (i32, i32, i32) {
    %c0_i32 = arith.constant 0 : i32
    %c0_i32_0 = arith.constant 0 : i32
    %c0_i32_1 = arith.constant 0 : i32
    return %arg0, %c0_i32, %c0_i32_0 : i32, i32, i32
  }
  func.func @transform_5(%arg0: i32) -> (i32, i32, i32) {
    %c0_i32 = arith.constant 0 : i32
    %c0_i32_0 = arith.constant 0 : i32
    %c0_i32_1 = arith.constant 0 : i32
    return %arg0, %c0_i32, %c0_i32_0 : i32, i32, i32
  }
  func.func @transform_6(%arg0: i32) -> (i32, i32, i32) {
    %c0_i32 = arith.constant 0 : i32
    %c0_i32_0 = arith.constant 0 : i32
    %c0_i32_1 = arith.constant 0 : i32
    return %arg0, %c0_i32, %c0_i32_0 : i32, i32, i32
  }
  func.func @transform_7(%arg0: i32) -> (i32, i32, i32) {
    %c0_i32 = arith.constant 0 : i32
    %c0_i32_0 = arith.constant 0 : i32
    %c0_i32_1 = arith.constant 0 : i32
    return %arg0, %c0_i32, %c0_i32_0 : i32, i32, i32
  }
  func.func @transform_8(%arg0: i32) -> (i32, i32, i32) {
    %c0_i32 = arith.constant 0 : i32
    %c0_i32_0 = arith.constant 0 : i32
    %c0_i32_1 = arith.constant 0 : i32
    return %arg0, %c0_i32, %c0_i32_0 : i32, i32, i32
  }
  func.func @transform_9(%arg0: i32) -> (i32, i32, i32) {
    %c0_i32 = arith.constant 0 : i32
    %c0_i32_0 = arith.constant 0 : i32
    %c0_i32_1 = arith.constant 0 : i32
    return %arg0, %c0_i32, %c0_i32_0 : i32, i32, i32
  }
  func.func @transform_10(%arg0: i32) -> (i32, i32, i32) {
    %c0_i32 = arith.constant 0 : i32
    %c0_i32_0 = arith.constant 0 : i32
    %c0_i32_1 = arith.constant 0 : i32
    return %arg0, %c0_i32, %c0_i32_0 : i32, i32, i32
  }
  func.func @transform_11(%arg0: i32) -> (i32, i32, i32) {
    %c0_i32 = arith.constant 0 : i32
    %c0_i32_0 = arith.constant 0 : i32
    %c0_i32_1 = arith.constant 0 : i32
    return %arg0, %c0_i32, %c0_i32_0 : i32, i32, i32
  }
}

module attributes {stable_mosaic.version = 11 : i64} {
  func.func @dp_em_kernel(%arg0: i32, %arg1: memref<3xf32, #tpu.memory_space<smem>>, %arg2: memref<16x128xf32, #tpu.memory_space<vmem>>, %arg3: memref<1x8x128xf32, #tpu.memory_space<vmem>>, %arg4: memref<1x8x128xf32, #tpu.memory_space<vmem>>, %arg5: memref<1x8x16xf32, #tpu.memory_space<vmem>>, %arg6: memref<1x8x16xf32, #tpu.memory_space<vmem>>, %arg7: memref<1x8x16xf32, #tpu.memory_space<vmem>>, %arg8: memref<1x8x128xf32, #tpu.memory_space<vmem>>, %arg9: memref<1x8x128xf32, #tpu.memory_space<vmem>>, %arg10: memref<1x1x16xf32, #tpu.memory_space<vmem>>, %arg11: memref<1x1x1xf32, #tpu.memory_space<vmem>>, %arg12: memref<1x8x1xf32, #tpu.memory_space<vmem>>) attributes {dimension_semantics = [#tpu.dimension_semantics<parallel>], iteration_bounds = array<i64: 3>, scalar_prefetch = 0 : i64, scratch_operands = 0 : i64, tpu.core_type = #tpu.core_type<tc>, window_params = [{transform_indices = @transform_0, window_bounds = array<i64: 3>}, {pipeline_mode = #tpu.pipeline_mode<synchronous>, transform_indices = @transform_1, window_bounds = array<i64: 16, 128>}, {transform_indices = @transform_2, window_bounds = array<i64: 1, 8, 128>}, {transform_indices = @transform_3, window_bounds = array<i64: 1, 8, 128>}, {transform_indices = @transform_4, window_bounds = array<i64: 1, 8, 16>}, {transform_indices = @transform_5, window_bounds = array<i64: 1, 8, 16>}, {transform_indices = @transform_6, window_bounds = array<i64: 1, 8, 16>}, {transform_indices = @transform_7, window_bounds = array<i64: 1, 8, 128>}, {transform_indices = @transform_8, window_bounds = array<i64: 1, 8, 128>}, {transform_indices = @transform_9, window_bounds = array<i64: 1, 1, 16>}, {transform_indices = @transform_10, window_bounds = array<i64: 1, 1, 1>}, {transform_indices = @transform_11, window_bounds = array<i64: 1, 8, 1>}]} {
    %c0 = arith.constant 0 : index
    %c0_0 = arith.constant 0 : index
    %0 = vector.load %arg2[%c0, %c0_0] : memref<16x128xf32, #tpu.memory_space<vmem>>, vector<16x128xf32>
    %1 = arith.mulf %0, %0 : vector<16x128xf32>
    %c0_1 = arith.constant 0 : index
    %c0_2 = arith.constant 0 : index
    %c0_3 = arith.constant 0 : index
    %2 = vector.load %arg3[%c0_1, %c0_2, %c0_3] : memref<1x8x128xf32, #tpu.memory_space<vmem>>, vector<1x8x128xf32>
    %3 = vector.shape_cast %2 : vector<1x8x128xf32> to vector<8x128xf32>
    %c0_4 = arith.constant 0 : index
    %c0_5 = arith.constant 0 : index
    %c0_6 = arith.constant 0 : index
    %4 = vector.load %arg4[%c0_4, %c0_5, %c0_6] : memref<1x8x128xf32, #tpu.memory_space<vmem>>, vector<1x8x128xf32>
    %5 = vector.shape_cast %4 : vector<1x8x128xf32> to vector<8x128xf32>
    %c0_7 = arith.constant 0 : index
    %c0_8 = arith.constant 0 : index
    %c0_9 = arith.constant 0 : index
    %6 = vector.load %arg5[%c0_7, %c0_8, %c0_9] : memref<1x8x16xf32, #tpu.memory_space<vmem>>, vector<1x8x16xf32>
    %7 = vector.shape_cast %6 : vector<1x8x16xf32> to vector<8x16xf32>
    %c0_10 = arith.constant 0 : index
    %c0_11 = arith.constant 0 : index
    %c0_12 = arith.constant 0 : index
    %8 = vector.load %arg6[%c0_10, %c0_11, %c0_12] : memref<1x8x16xf32, #tpu.memory_space<vmem>>, vector<1x8x16xf32>
    %9 = vector.shape_cast %8 : vector<1x8x16xf32> to vector<8x16xf32>
    %10 = math.log %9 : vector<8x16xf32>
    %11 = math.exp %5 : vector<8x128xf32>
    %cst = arith.constant 2.000000e+00 : f32
    %12 = vector.broadcast %cst : f32 to vector<8x128xf32>
    %13 = arith.mulf %12, %11 : vector<8x128xf32>
    %14 = arith.mulf %13, %11 : vector<8x128xf32>
    %cst_13 = arith.constant 1.000000e+00 : f32
    %15 = vector.broadcast %cst_13 : f32 to vector<8x128xf32>
    %16 = arith.divf %15, %14 : vector<8x128xf32>
    %cst_14 = arith.constant dense<0.000000e+00> : vector<8x16xf32>
    %17 = tpu.matmul %16, %1, %cst_14 {dimension_numbers = #tpu.dot_dimension_numbers<[1], [1], [0], [0], [0, 0, 1, 0], [], []>} : vector<8x128xf32>, vector<16x128xf32>, vector<8x16xf32> -> vector<8x16xf32>
    %18 = arith.mulf %3, %16 : vector<8x128xf32>
    %cst_15 = arith.constant dense<0.000000e+00> : vector<8x16xf32>
    %19 = tpu.matmul %18, %0, %cst_15 {dimension_numbers = #tpu.dot_dimension_numbers<[1], [1], [0], [0], [0, 0, 1, 0], [], []>} : vector<8x128xf32>, vector<16x128xf32>, vector<8x16xf32> -> vector<8x16xf32>
    %cst_16 = arith.constant 2.000000e+00 : f32
    %20 = vector.broadcast %cst_16 : f32 to vector<8x16xf32>
    %21 = arith.mulf %20, %19 : vector<8x16xf32>
    %22 = arith.subf %17, %21 : vector<8x16xf32>
    %23 = arith.mulf %3, %3 : vector<8x128xf32>
    %24 = arith.mulf %23, %16 : vector<8x128xf32>
    %25 = arith.addf %24, %5 : vector<8x128xf32>
    %cst_17 = arith.constant dense<0.000000e+00> : vector<8xf32>
    %26 = vector.multi_reduction <add>, %25, %cst_17 [1] : vector<8x128xf32> to vector<8xf32>
    %27 = vector.shape_cast %26 : vector<8xf32> to vector<8x1xf32>
    %cst_18 = arith.constant -117.62413 : f32
    %28 = vector.broadcast %cst_18 : f32 to vector<8x16xf32>
    %29 = arith.subf %28, %22 : vector<8x16xf32>
    %30 = vector.broadcast %27 : vector<8x1xf32> to vector<8x16xf32>
    %31 = arith.subf %29, %30 : vector<8x16xf32>
    %cst_19 = arith.constant dense<0.000000e+00> : vector<8xf32>
    %32 = vector.multi_reduction <add>, %5, %cst_19 [1] : vector<8x128xf32> to vector<8xf32>
    %33 = vector.shape_cast %32 : vector<8xf32> to vector<8x1xf32>
    %cst_20 = arith.constant 181.62413 : f32
    %34 = vector.broadcast %cst_20 : f32 to vector<8x1xf32>
    %35 = arith.addf %34, %33 : vector<8x1xf32>
    %36 = vector.broadcast %35 : vector<8x1xf32> to vector<8x16xf32>
    %37 = arith.addf %31, %36 : vector<8x16xf32>
    %38 = vector.shape_cast %37 : vector<8x16xf32> to vector<1x8x16xf32>
    %cst_21 = arith.constant dense<0x7F800000> : vector<1xf32>
    %39 = vector.multi_reduction <minimumf>, %38, %cst_21 [1, 2] : vector<1x8x16xf32> to vector<1xf32>
    %40 = vector.shape_cast %39 : vector<1xf32> to vector<1x1x1xf32>
    %41 = vector.extract %40[0, 0, 0] : f32 from vector<1x1x1xf32>
    %42 = arith.index_cast %arg0 : i32 to index
    %43 = memref.load %arg1[%42] : memref<3xf32, #tpu.memory_space<smem>>
    %44 = arith.addf %41, %43 : f32
    %45 = arith.divf %43, %44 : f32
    %46 = vector.broadcast %45 : f32 to vector<8x16xf32>
    %47 = arith.mulf %46, %37 : vector<8x16xf32>
    %cst_22 = arith.constant 1.000000e+00 : f32
    %48 = arith.subf %cst_22, %45 : f32
    %49 = vector.broadcast %48 : f32 to vector<8x16xf32>
    %50 = arith.mulf %49, %10 : vector<8x16xf32>
    %51 = arith.addf %47, %50 : vector<8x16xf32>
    %cst_23 = arith.constant dense<0xFF800000> : vector<16xf32>
    %52 = vector.multi_reduction <maximumf>, %51, %cst_23 [0] : vector<8x16xf32> to vector<16xf32>
    %53 = vector.shape_cast %52 : vector<16xf32> to vector<1x16xf32>
    %54 = vector.broadcast %53 : vector<1x16xf32> to vector<8x16xf32>
    %55 = arith.subf %51, %54 : vector<8x16xf32>
    %56 = math.exp %55 : vector<8x16xf32>
    %cst_24 = arith.constant dense<0.000000e+00> : vector<16xf32>
    %57 = vector.multi_reduction <add>, %56, %cst_24 [0] : vector<8x16xf32> to vector<16xf32>
    %58 = vector.shape_cast %57 : vector<16xf32> to vector<1x16xf32>
    %59 = vector.broadcast %58 : vector<1x16xf32> to vector<8x16xf32>
    %60 = arith.divf %56, %59 : vector<8x16xf32>
    %c0_25 = arith.constant 0 : index
    %c0_26 = arith.constant 0 : index
    %c0_27 = arith.constant 0 : index
    %61 = vector.load %arg7[%c0_25, %c0_26, %c0_27] : memref<1x8x16xf32, #tpu.memory_space<vmem>>, vector<1x8x16xf32>
    %62 = vector.shape_cast %61 : vector<1x8x16xf32> to vector<8x16xf32>
    %63 = vector.shape_cast %60 : vector<8x16xf32> to vector<1x8x16xf32>
    tpu.vector_store %arg7[%c0_25, %c0_26, %c0_27], %63 {strides = array<i32>} : memref<1x8x16xf32, #tpu.memory_space<vmem>>, vector<1x8x16xf32>,
    %64 = math.log %60 : vector<8x16xf32>
    %cst_28 = arith.constant dense<0.000000e+00> : vector<16xf32>
    %65 = vector.multi_reduction <add>, %64, %cst_28 [0] : vector<8x16xf32> to vector<16xf32>
    %66 = vector.shape_cast %65 : vector<16xf32> to vector<1x16xf32>
    %c0_29 = arith.constant 0 : index
    %c0_30 = arith.constant 0 : index
    %c0_31 = arith.constant 0 : index
    %67 = vector.load %arg10[%c0_29, %c0_30, %c0_31] : memref<1x1x16xf32, #tpu.memory_space<vmem>>, vector<1x1x16xf32>
    %68 = vector.shape_cast %67 : vector<1x1x16xf32> to vector<1x16xf32>
    %69 = vector.shape_cast %66 : vector<1x16xf32> to vector<1x1x16xf32>
    tpu.vector_store %arg10[%c0_29, %c0_30, %c0_31], %69 {strides = array<i32>} : memref<1x1x16xf32, #tpu.memory_space<vmem>>, vector<1x1x16xf32>,
    %70 = vector.broadcast %45 : f32 to vector<8x16xf32>
    %71 = arith.mulf %70, %37 : vector<8x16xf32>
    %72 = arith.mulf %60, %71 : vector<8x16xf32>
    %cst_32 = arith.constant dense<0.000000e+00> : vector<16xf32>
    %73 = vector.multi_reduction <add>, %72, %cst_32 [0] : vector<8x16xf32> to vector<16xf32>
    %74 = vector.shape_cast %73 : vector<16xf32> to vector<1x16xf32>
    %cst_33 = arith.constant dense<0.000000e+00> : vector<1xf32>
    %75 = vector.multi_reduction <add>, %74, %cst_33 [1] : vector<1x16xf32> to vector<1xf32>
    %76 = vector.shape_cast %75 : vector<1xf32> to vector<1x1xf32>
    %77 = vector.extract %76[0, 0] : f32 from vector<1x1xf32>
    %cst_34 = arith.constant 1.600000e+01 : f32
    %78 = arith.divf %77, %cst_34 : f32
    %cst_35 = arith.constant 0.000000e+00 : f32
    %79 = arith.subf %cst_35, %78 : f32
    %80 = vector.broadcast %79 : f32 to vector<1x1xf32>
    %c0_36 = arith.constant 0 : index
    %c0_37 = arith.constant 0 : index
    %c0_38 = arith.constant 0 : index
    %81 = vector.load %arg11[%c0_36, %c0_37, %c0_38] : memref<1x1x1xf32, #tpu.memory_space<vmem>>, vector<1x1x1xf32>
    %82 = vector.shape_cast %81 : vector<1x1x1xf32> to vector<1x1xf32>
    %83 = vector.shape_cast %80 : vector<1x1xf32> to vector<1x1x1xf32>
    tpu.vector_store %arg11[%c0_36, %c0_37, %c0_38], %83 {strides = array<i32>} : memref<1x1x1xf32, #tpu.memory_space<vmem>>, vector<1x1x1xf32>,
    %cst_39 = arith.constant dense<0.000000e+00> : vector<8xf32>
    %84 = vector.multi_reduction <add>, %7, %cst_39 [1] : vector<8x16xf32> to vector<8xf32>
    %85 = vector.shape_cast %84 : vector<8xf32> to vector<8x1xf32>
    %c0_40 = arith.constant 0 : index
    %c0_41 = arith.constant 0 : index
    %c0_42 = arith.constant 0 : index
    %86 = vector.load %arg12[%c0_40, %c0_41, %c0_42] : memref<1x8x1xf32, #tpu.memory_space<vmem>>, vector<1x8x1xf32>
    %87 = vector.shape_cast %86 : vector<1x8x1xf32> to vector<8x1xf32>
    %88 = vector.shape_cast %85 : vector<8x1xf32> to vector<1x8x1xf32>
    tpu.vector_store %arg12[%c0_40, %c0_41, %c0_42], %88 {strides = array<i32>} : memref<1x8x1xf32, #tpu.memory_space<vmem>>, vector<1x8x1xf32>,
    %cst_43 = arith.constant 9.99999997E-7 : f32
    %89 = vector.broadcast %cst_43 : f32 to vector<8x1xf32>
    %90 = arith.maximumf %85, %89 : vector<8x1xf32>
    %cst_44 = arith.constant dense<0.000000e+00> : vector<8xf32>
    %91 = vector.multi_reduction <add>, %60, %cst_44 [1] : vector<8x16xf32> to vector<8xf32>
    %92 = vector.shape_cast %91 : vector<8xf32> to vector<8x1xf32>
    %cst_45 = arith.constant 9.99999997E-7 : f32
    %93 = vector.broadcast %cst_45 : f32 to vector<8x1xf32>
    %94 = arith.maximumf %92, %93 : vector<8x1xf32>
    %cst_46 = arith.constant dense<0.000000e+00> : vector<8x128xf32>
    %95 = tpu.matmul %60, %0, %cst_46 {dimension_numbers = #tpu.dot_dimension_numbers<[1], [0], [0], [1], [0, 0, 1, 1], [], []>} : vector<8x16xf32>, vector<16x128xf32>, vector<8x128xf32> -> vector<8x128xf32>
    %96 = vector.broadcast %94 : vector<8x1xf32> to vector<8x128xf32>
    %97 = arith.divf %95, %96 : vector<8x128xf32>
    %98 = arith.addf %94, %90 : vector<8x1xf32>
    %99 = arith.divf %90, %98 : vector<8x1xf32>
    %100 = vector.broadcast %99 : vector<8x1xf32> to vector<8x128xf32>
    %101 = arith.mulf %100, %3 : vector<8x128xf32>
    %cst_47 = arith.constant 1.000000e+00 : f32
    %102 = vector.broadcast %cst_47 : f32 to vector<8x1xf32>
    %103 = arith.subf %102, %99 : vector<8x1xf32>
    %104 = vector.broadcast %103 : vector<8x1xf32> to vector<8x128xf32>
    %105 = arith.mulf %104, %97 : vector<8x128xf32>
    %106 = arith.addf %101, %105 : vector<8x128xf32>
    %c0_48 = arith.constant 0 : index
    %c0_49 = arith.constant 0 : index
    %c0_50 = arith.constant 0 : index
    %107 = vector.load %arg8[%c0_48, %c0_49, %c0_50] : memref<1x8x128xf32, #tpu.memory_space<vmem>>, vector<1x8x128xf32>
    %108 = vector.shape_cast %107 : vector<1x8x128xf32> to vector<8x128xf32>
    %109 = vector.shape_cast %106 : vector<8x128xf32> to vector<1x8x128xf32>
    tpu.vector_store %arg8[%c0_48, %c0_49, %c0_50], %109 {strides = array<i32>} : memref<1x8x128xf32, #tpu.memory_space<vmem>>, vector<1x8x128xf32>,
    %cst_51 = arith.constant dense<0.000000e+00> : vector<8x128xf32>
    %110 = tpu.matmul %60, %1, %cst_51 {dimension_numbers = #tpu.dot_dimension_numbers<[1], [0], [0], [1], [0, 0, 1, 1], [], []>} : vector<8x16xf32>, vector<16x128xf32>, vector<8x128xf32> -> vector<8x128xf32>
    %cst_52 = arith.constant 2.000000e+00 : f32
    %111 = vector.broadcast %cst_52 : f32 to vector<8x128xf32>
    %112 = arith.mulf %111, %106 : vector<8x128xf32>
    %113 = arith.mulf %112, %95 : vector<8x128xf32>
    %114 = arith.subf %110, %113 : vector<8x128xf32>
    %115 = arith.mulf %106, %106 : vector<8x128xf32>
    %116 = vector.broadcast %92 : vector<8x1xf32> to vector<8x128xf32>
    %117 = arith.mulf %115, %116 : vector<8x128xf32>
    %118 = arith.addf %114, %117 : vector<8x128xf32>
    %119 = vector.broadcast %94 : vector<8x1xf32> to vector<8x128xf32>
    %120 = arith.divf %118, %119 : vector<8x128xf32>
    %cst_53 = arith.constant 0.000000e+00 : f32
    %121 = vector.broadcast %cst_53 : f32 to vector<8x128xf32>
    %122 = arith.maximumf %120, %121 : vector<8x128xf32>
    %123 = math.sqrt %122 : vector<8x128xf32>
    %124 = vector.broadcast %99 : vector<8x1xf32> to vector<8x128xf32>
    %125 = arith.mulf %124, %11 : vector<8x128xf32>
    %cst_54 = arith.constant 1.000000e+00 : f32
    %126 = vector.broadcast %cst_54 : f32 to vector<8x1xf32>
    %127 = arith.subf %126, %99 : vector<8x1xf32>
    %128 = vector.broadcast %127 : vector<8x1xf32> to vector<8x128xf32>
    %129 = arith.mulf %128, %123 : vector<8x128xf32>
    %130 = arith.addf %125, %129 : vector<8x128xf32>
    %131 = math.log %130 : vector<8x128xf32>
    %c0_55 = arith.constant 0 : index
    %c0_56 = arith.constant 0 : index
    %c0_57 = arith.constant 0 : index
    %132 = vector.load %arg9[%c0_55, %c0_56, %c0_57] : memref<1x8x128xf32, #tpu.memory_space<vmem>>, vector<1x8x128xf32>
    %133 = vector.shape_cast %132 : vector<1x8x128xf32> to vector<8x128xf32>
    %134 = vector.shape_cast %131 : vector<8x128xf32> to vector<1x8x128xf32>
    tpu.vector_store %arg9[%c0_55, %c0_56, %c0_57], %134 {strides = array<i32>} : memref<1x8x128xf32, #tpu.memory_space<vmem>>, vector<1x8x128xf32>,
    return
  }
  func.func @transform_0(%arg0: i32) -> i32 {
    %c0_i32 = arith.constant 0 : i32
    %c0_i32_0 = arith.constant 0 : i32
    return %c0_i32 : i32
  }
  func.func @transform_1(%arg0: i32) -> (i32, i32) {
    %c0_i32 = arith.constant 0 : i32
    %c0_i32_0 = arith.constant 0 : i32
    %c0_i32_1 = arith.constant 0 : i32
    return %c0_i32, %c0_i32_0 : i32, i32
  }
  func.func @transform_2(%arg0: i32) -> (i32, i32, i32) {
    %c0_i32 = arith.constant 0 : i32
    %c0_i32_0 = arith.constant 0 : i32
    %c0_i32_1 = arith.constant 0 : i32
    return %arg0, %c0_i32, %c0_i32_0 : i32, i32, i32
  }
  func.func @transform_3(%arg0: i32) -> (i32, i32, i32) {
    %c0_i32 = arith.constant 0 : i32
    %c0_i32_0 = arith.constant 0 : i32
    %c0_i32_1 = arith.constant 0 : i32
    return %arg0, %c0_i32, %c0_i32_0 : i32, i32, i32
  }
  func.func @transform_4(%arg0: i32) -> (i32, i32, i32) {
    %c0_i32 = arith.constant 0 : i32
    %c0_i32_0 = arith.constant 0 : i32
    %c0_i32_1 = arith.constant 0 : i32
    return %arg0, %c0_i32, %c0_i32_0 : i32, i32, i32
  }
  func.func @transform_5(%arg0: i32) -> (i32, i32, i32) {
    %c0_i32 = arith.constant 0 : i32
    %c0_i32_0 = arith.constant 0 : i32
    %c0_i32_1 = arith.constant 0 : i32
    return %arg0, %c0_i32, %c0_i32_0 : i32, i32, i32
  }
  func.func @transform_6(%arg0: i32) -> (i32, i32, i32) {
    %c0_i32 = arith.constant 0 : i32
    %c0_i32_0 = arith.constant 0 : i32
    %c0_i32_1 = arith.constant 0 : i32
    return %arg0, %c0_i32, %c0_i32_0 : i32, i32, i32
  }
  func.func @transform_7(%arg0: i32) -> (i32, i32, i32) {
    %c0_i32 = arith.constant 0 : i32
    %c0_i32_0 = arith.constant 0 : i32
    %c0_i32_1 = arith.constant 0 : i32
    return %arg0, %c0_i32, %c0_i32_0 : i32, i32, i32
  }
  func.func @transform_8(%arg0: i32) -> (i32, i32, i32) {
    %c0_i32 = arith.constant 0 : i32
    %c0_i32_0 = arith.constant 0 : i32
    %c0_i32_1 = arith.constant 0 : i32
    return %arg0, %c0_i32, %c0_i32_0 : i32, i32, i32
  }
  func.func @transform_9(%arg0: i32) -> (i32, i32, i32) {
    %c0_i32 = arith.constant 0 : i32
    %c0_i32_0 = arith.constant 0 : i32
    %c0_i32_1 = arith.constant 0 : i32
    return %arg0, %c0_i32, %c0_i32_0 : i32, i32, i32
  }
  func.func @transform_10(%arg0: i32) -> (i32, i32, i32) {
    %c0_i32 = arith.constant 0 : i32
    %c0_i32_0 = arith.constant 0 : i32
    %c0_i32_1 = arith.constant 0 : i32
    return %arg0, %c0_i32, %c0_i32_0 : i32, i32, i32
  }
  func.func @transform_11(%arg0: i32) -> (i32, i32, i32) {
    %c0_i32 = arith.constant 0 : i32
    %c0_i32_0 = arith.constant 0 : i32
    %c0_i32_1 = arith.constant 0 : i32
    return %arg0, %c0_i32, %c0_i32_0 : i32, i32, i32
  }
}

module attributes {stable_mosaic.version = 11 : i64} {
  func.func @dp_infer_kernel(%arg0: i32, %arg1: memref<16x128xf32, #tpu.memory_space<vmem>>, %arg2: memref<1x8x128xf32, #tpu.memory_space<vmem>>, %arg3: memref<1x8x128xf32, #tpu.memory_space<vmem>>, %arg4: memref<1x8x16xf32, #tpu.memory_space<vmem>>, %arg5: memref<1x1x16xf32, #tpu.memory_space<vmem>>) attributes {dimension_semantics = [#tpu.dimension_semantics<parallel>], iteration_bounds = array<i64: 3>, scalar_prefetch = 0 : i64, scratch_operands = 0 : i64, tpu.core_type = #tpu.core_type<tc>, window_params = [{pipeline_mode = #tpu.pipeline_mode<synchronous>, transform_indices = @transform_0, window_bounds = array<i64: 16, 128>}, {transform_indices = @transform_1, window_bounds = array<i64: 1, 8, 128>}, {transform_indices = @transform_2, window_bounds = array<i64: 1, 8, 128>}, {transform_indices = @transform_3, window_bounds = array<i64: 1, 8, 16>}, {transform_indices = @transform_4, window_bounds = array<i64: 1, 1, 16>}]} {
    %c0 = arith.constant 0 : index
    %c0_0 = arith.constant 0 : index
    %0 = vector.load %arg1[%c0, %c0_0] : memref<16x128xf32, #tpu.memory_space<vmem>>, vector<16x128xf32>
    %1 = arith.mulf %0, %0 : vector<16x128xf32>
    %c0_1 = arith.constant 0 : index
    %c0_2 = arith.constant 0 : index
    %c0_3 = arith.constant 0 : index
    %2 = vector.load %arg2[%c0_1, %c0_2, %c0_3] : memref<1x8x128xf32, #tpu.memory_space<vmem>>, vector<1x8x128xf32>
    %3 = vector.shape_cast %2 : vector<1x8x128xf32> to vector<8x128xf32>
    %c0_4 = arith.constant 0 : index
    %c0_5 = arith.constant 0 : index
    %c0_6 = arith.constant 0 : index
    %4 = vector.load %arg3[%c0_4, %c0_5, %c0_6] : memref<1x8x128xf32, #tpu.memory_space<vmem>>, vector<1x8x128xf32>
    %5 = vector.shape_cast %4 : vector<1x8x128xf32> to vector<8x128xf32>
    %c0_7 = arith.constant 0 : index
    %c0_8 = arith.constant 0 : index
    %c0_9 = arith.constant 0 : index
    %6 = vector.load %arg4[%c0_7, %c0_8, %c0_9] : memref<1x8x16xf32, #tpu.memory_space<vmem>>, vector<1x8x16xf32>
    %7 = vector.shape_cast %6 : vector<1x8x16xf32> to vector<8x16xf32>
    %8 = math.log %7 : vector<8x16xf32>
    %9 = math.exp %5 : vector<8x128xf32>
    %cst = arith.constant 2.000000e+00 : f32
    %10 = vector.broadcast %cst : f32 to vector<8x128xf32>
    %11 = arith.mulf %10, %9 : vector<8x128xf32>
    %12 = arith.mulf %11, %9 : vector<8x128xf32>
    %cst_10 = arith.constant 1.000000e+00 : f32
    %13 = vector.broadcast %cst_10 : f32 to vector<8x128xf32>
    %14 = arith.divf %13, %12 : vector<8x128xf32>
    %cst_11 = arith.constant dense<0.000000e+00> : vector<8x16xf32>
    %15 = tpu.matmul %14, %1, %cst_11 {dimension_numbers = #tpu.dot_dimension_numbers<[1], [1], [0], [0], [0, 0, 1, 0], [], []>} : vector<8x128xf32>, vector<16x128xf32>, vector<8x16xf32> -> vector<8x16xf32>
    %16 = arith.mulf %3, %14 : vector<8x128xf32>
    %cst_12 = arith.constant dense<0.000000e+00> : vector<8x16xf32>
    %17 = tpu.matmul %16, %0, %cst_12 {dimension_numbers = #tpu.dot_dimension_numbers<[1], [1], [0], [0], [0, 0, 1, 0], [], []>} : vector<8x128xf32>, vector<16x128xf32>, vector<8x16xf32> -> vector<8x16xf32>
    %cst_13 = arith.constant 2.000000e+00 : f32
    %18 = vector.broadcast %cst_13 : f32 to vector<8x16xf32>
    %19 = arith.mulf %18, %17 : vector<8x16xf32>
    %20 = arith.subf %15, %19 : vector<8x16xf32>
    %21 = arith.mulf %3, %3 : vector<8x128xf32>
    %22 = arith.mulf %21, %14 : vector<8x128xf32>
    %23 = arith.addf %22, %5 : vector<8x128xf32>
    %cst_14 = arith.constant dense<0.000000e+00> : vector<8xf32>
    %24 = vector.multi_reduction <add>, %23, %cst_14 [1] : vector<8x128xf32> to vector<8xf32>
    %25 = vector.shape_cast %24 : vector<8xf32> to vector<8x1xf32>
    %cst_15 = arith.constant -117.62413 : f32
    %26 = vector.broadcast %cst_15 : f32 to vector<8x16xf32>
    %27 = arith.subf %26, %20 : vector<8x16xf32>
    %28 = vector.broadcast %25 : vector<8x1xf32> to vector<8x16xf32>
    %29 = arith.subf %27, %28 : vector<8x16xf32>
    %30 = arith.addf %8, %29 : vector<8x16xf32>
    %cst_16 = arith.constant dense<0.000000e+00> : vector<16xf32>
    %31 = vector.multi_reduction <add>, %30, %cst_16 [0] : vector<8x16xf32> to vector<16xf32>
    %32 = vector.shape_cast %31 : vector<16xf32> to vector<1x16xf32>
    %c0_17 = arith.constant 0 : index
    %c0_18 = arith.constant 0 : index
    %c0_19 = arith.constant 0 : index
    %33 = vector.load %arg5[%c0_17, %c0_18, %c0_19] : memref<1x1x16xf32, #tpu.memory_space<vmem>>, vector<1x1x16xf32>
    %34 = vector.shape_cast %33 : vector<1x1x16xf32> to vector<1x16xf32>
    %35 = vector.shape_cast %32 : vector<1x16xf32> to vector<1x1x16xf32>
    tpu.vector_store %arg5[%c0_17, %c0_18, %c0_19], %35 {strides = array<i32>} : memref<1x1x16xf32, #tpu.memory_space<vmem>>, vector<1x1x16xf32>,
    return
  }
  func.func @transform_0(%arg0: i32) -> (i32, i32) {
    %c0_i32 = arith.constant 0 : i32
    %c0_i32_0 = arith.constant 0 : i32
    %c0_i32_1 = arith.constant 0 : i32
    return %c0_i32, %c0_i32_0 : i32, i32
  }
  func.func @transform_1(%arg0: i32) -> (i32, i32, i32) {
    %c0_i32 = arith.constant 0 : i32
    %c0_i32_0 = arith.constant 0 : i32
    %c0_i32_1 = arith.constant 0 : i32
    return %arg0, %c0_i32, %c0_i32_0 : i32, i32, i32
  }
  func.func @transform_2(%arg0: i32) -> (i32, i32, i32) {
    %c0_i32 = arith.constant 0 : i32
    %c0_i32_0 = arith.constant 0 : i32
    %c0_i32_1 = arith.constant 0 : i32
    return %arg0, %c0_i32, %c0_i32_0 : i32, i32, i32
  }
  func.func @transform_3(%arg0: i32) -> (i32, i32, i32) {
    %c0_i32 = arith.constant 0 : i32
    %c0_i32_0 = arith.constant 0 : i32
    %c0_i32_1 = arith.constant 0 : i32
    return %arg0, %c0_i32, %c0_i32_0 : i32, i32, i32
  }
  func.func @transform_4(%arg0: i32) -> (i32, i32, i32) {
    %c0_i32 = arith.constant 0 : i32
    %c0_i32_0 = arith.constant 0 : i32
    %c0_i32_1 = arith.constant 0 : i32
    return %arg0, %c0_i32, %c0_i32_0 : i32, i32, i32
  }
}

</mosaic_0001>

<llo_original>
// kernel: reverse
$region0: #{reverse}
  %s0 = inlined_call_operand.vmem [shape: f32[3,8], index: 0, kind: input, shape index: {}]
  %s1 = inlined_call_operand.vmem [shape: f32[3,8], index: 1, kind: output, shape index: {}]
  %v2 = vlaneseq
  %v3 = vsub.s32 7, %v2
  %4 = vset.pattern.permute.xlu0 %v3
  $region1: #{reverse} parent=0
    #allocation0 [shape = 'u8[4096]{0}', space=vmem, size = 0x1000, scoped, tag = 'operand span for operand 0']
    #allocation1 [shape = 'u8[2048]{0}', space=vmem, size = 0x800, scoped, tag = 'packed  for operand 0']
    #allocation2 [shape = 'u8[4096]{0}', space=vmem, size = 0x1000, scoped, tag = 'operand span for operand 1']
    #allocation3 [shape = 'u8[2048]{0}', space=vmem, size = 0x800, scoped, tag = 'packed  for operand 1']
    // Predicated region
    $region2: #{reverse} parent=1 // pred_check
      _
    $region3: #{reverse} parent=1 // pred_check_branch
      %6 = sbr.rel (0) target = $region5
    $region4: #{reverse} parent=1 // pred_region
      // Predicated region
      $region6: #{reverse} parent=4 // pred_check
        _
      $region7: #{reverse} parent=4 // pred_check_branch
        %8 = sbr.rel target = $region9
      $region8: #{reverse} parent=4 // pred_region
        // Predicated region
        $region21: #{reverse} parent=8 // pred_check
          _
        $region22: #{reverse} parent=8 // pred_check_branch
          %24 = sbr.rel (0) target = $region24
        $region23: #{reverse} parent=8 // pred_region
          %s26 = ssub.s32 16, 1
          loop: start=0, step=1, limit=1
          $region25: #{reverse} parent=23 // loop_pre_header
            _
          $region26: #{reverse} parent=23 // loop_header
            %s28 = sphi 0, %s32
            %p29 = scmp.ge.s32.totalorder %s28, 1
            %s33 = sphi %s0, %s0
            %s34 = sphi [#allocation1], [#allocation1]
          $region27: #{reverse} parent=23 // loop_header_branch
            %31 = sbr.rel (%p29) target = $region31
          $region28: #{reverse} parent=23 // loop_body
            %v35 = vld [vmem:[%s33] sm:%s26]
            %36 = vst [vmem:[%s34] sm:%s26] %v35
          $region29: #{reverse} parent=23 // loop_footer
            %s32 = sadd.s32 1, %s28
          $region30: #{reverse} parent=23 // loop_footer_branch
            %27 = sbr.rel target = $region26
          $region31: #{reverse} parent=23 // loop_exit
            _
        $region24: #{reverse} parent=8 // pred_fallthru
          _
      $region9: #{reverse} parent=4 // pred_fallthru
        _
      // Predicated region
      $region10: #{reverse} parent=4 // pred_check
        _
      $region11: #{reverse} parent=4 // pred_check_branch
        %10 = sbr.rel (0) target = $region13
      $region12: #{reverse} parent=4 // pred_region
        %s12 = ssub.s32 16, 1
        loop: start=0, step=1, limit=1
        $region14: #{reverse} parent=12 // loop_pre_header
          _
        $region15: #{reverse} parent=12 // loop_header
          %s14 = sphi 0, %s18
          %p15 = scmp.ge.s32.totalorder %s14, 1
          %s19 = sphi %s0, %s0
          %s20 = sphi [#allocation1], [#allocation1]
        $region16: #{reverse} parent=12 // loop_header_branch
          %17 = sbr.rel (%p15) target = $region20
        $region17: #{reverse} parent=12 // loop_body
          %v21 = vld [vmem:[%s19] sm:%s12]
          %22 = vst [vmem:[%s20] sm:%s12] %v21
        $region18: #{reverse} parent=12 // loop_footer
          %s18 = sadd.s32 1, %s14
        $region19: #{reverse} parent=12 // loop_footer_branch
          %13 = sbr.rel target = $region15
        $region20: #{reverse} parent=12 // loop_exit
          _
      $region13: #{reverse} parent=4 // pred_fallthru
        _
    $region5: #{reverse} parent=1 // pred_fallthru
      _
    %37 = vnop
    %s39 = ssub.s32 16, 1
    %v40 = vld [vmem:[#allocation1] sm:%s39]
    %41 = vst [vmem:[#allocation0] sm:%s39] %v40
    %v42 = vld [vmem:[#allocation0] sm:$0xff]
    %43 = vperm.xlu0 %4, %v42
    %v44 = vpop.permute.xlu0 %43
    %45 = vst [vmem:[#allocation2] sm:$0xff] %v44
    %s47 = ssub.s32 16, 1
    %v48 = vld [vmem:[#allocation2] sm:%s47]
    %s50 = ssub.s32 16, 1
    %51 = vst [vmem:[#allocation3] sm:%s50] %v48
    // Predicated region
    $region32: #{reverse} parent=1 // pred_check
      _
    $region33: #{reverse} parent=1 // pred_check_branch
      %53 = sbr.rel (0) target = $region35
    $region34: #{reverse} parent=1 // pred_region
      // Predicated region
      $region36: #{reverse} parent=34 // pred_check
        _
      $region37: #{reverse} parent=34 // pred_check_branch
        %55 = sbr.rel target = $region39
      $region38: #{reverse} parent=34 // pred_region
        // Predicated region
        $region51: #{reverse} parent=38 // pred_check
          _
        $region52: #{reverse} parent=38 // pred_check_branch
          %71 = sbr.rel (0) target = $region54
        $region53: #{reverse} parent=38 // pred_region
          %s73 = ssub.s32 16, 1
          loop: start=0, step=1, limit=1
          $region55: #{reverse} parent=53 // loop_pre_header
            _
          $region56: #{reverse} parent=53 // loop_header
            %s75 = sphi 0, %s79
            %p76 = scmp.ge.s32.totalorder %s75, 1
            %s80 = sphi [#allocation3], [#allocation3]
            %s81 = sphi %s1, %s1
          $region57: #{reverse} parent=53 // loop_header_branch
            %78 = sbr.rel (%p76) target = $region61
          $region58: #{reverse} parent=53 // loop_body
            %v82 = vld [vmem:[%s80] sm:%s73]
            %83 = vst [vmem:[%s81] sm:%s73] %v82
          $region59: #{reverse} parent=53 // loop_footer
            %s79 = sadd.s32 1, %s75
          $region60: #{reverse} parent=53 // loop_footer_branch
            %74 = sbr.rel target = $region56
          $region61: #{reverse} parent=53 // loop_exit
            _
        $region54: #{reverse} parent=38 // pred_fallthru
          _
      $region39: #{reverse} parent=34 // pred_fallthru
        _
      // Predicated region
      $region40: #{reverse} parent=34 // pred_check
        _
      $region41: #{reverse} parent=34 // pred_check_branch
        %57 = sbr.rel (0) target = $region43
      $region42: #{reverse} parent=34 // pred_region
        %s59 = ssub.s32 16, 1
        loop: start=0, step=1, limit=1
        $region44: #{reverse} parent=42 // loop_pre_header
          _
        $region45: #{reverse} parent=42 // loop_header
          %s61 = sphi 0, %s65
          %p62 = scmp.ge.s32.totalorder %s61, 1
          %s66 = sphi [#allocation3], [#allocation3]
          %s67 = sphi %s1, %s1
        $region46: #{reverse} parent=42 // loop_header_branch
          %64 = sbr.rel (%p62) target = $region50
        $region47: #{reverse} parent=42 // loop_body
          %v68 = vld [vmem:[%s66] sm:%s59]
          %69 = vst [vmem:[%s67] sm:%s59] %v68
        $region48: #{reverse} parent=42 // loop_footer
          %s65 = sadd.s32 1, %s61
        $region49: #{reverse} parent=42 // loop_footer_branch
          %60 = sbr.rel target = $region45
        $region50: #{reverse} parent=42 // loop_exit
          _
      $region43: #{reverse} parent=34 // pred_fallthru
        _
    $region35: #{reverse} parent=1 // pred_fallthru
      _
    %84 = vnop

// kernel: hdp_cluster_em_forward.3
$region0: #{hdp_cluster_em_forward.3}
  #allocation0 [shape = 'u32[]', space=smem, size = 0x4, offset = 0x4, fixed_abs, tag = 'smem constant byte address 0x4 - core index']
  #allocation1 [shape = 'u32[72,128]{1,0:T(1,128)}', space=vmem, size = 0x9000, scoped, tag = 'internal scratch']
  %s0 = inlined_call_operand.vmem [shape: f32[3], index: 0, kind: input, shape index: {}]
  %s1 = inlined_call_operand.vmem [shape: f32[16,128], index: 1, kind: input, shape index: {}]
  %s2 = inlined_call_operand.vmem [shape: f32[3,8,128], index: 2, kind: input, shape index: {}]
  %s3 = inlined_call_operand.vmem [shape: f32[3,8,128], index: 3, kind: input, shape index: {}]
  %s4 = inlined_call_operand.vmem [shape: f32[3,8,16], index: 4, kind: input, shape index: {}]
  %s5 = inlined_call_operand.vmem [shape: f32[3,8,16], index: 5, kind: input, shape index: {}]
  %s6 = inlined_call_operand.vmem [shape: f32[3,8,16], index: 6, kind: output, shape index: {0}]
  %s7 = inlined_call_operand.vmem [shape: f32[3,8,128], index: 7, kind: output, shape index: {1}]
  %s8 = inlined_call_operand.vmem [shape: f32[3,8,128], index: 8, kind: output, shape index: {2}]
  %s9 = inlined_call_operand.vmem [shape: f32[3,1,16], index: 9, kind: output, shape index: {3}]
  %s10 = inlined_call_operand.hbm [shape: f32[3,1,1], index: 10, kind: output, shape index: {4}]
  %s11 = inlined_call_operand.vmem [shape: f32[3,8,1], index: 11, kind: output, shape index: {5}]
  %12 = xla_tuple %s6, %s7, %s8, %s9, %s10, %s11
  %s13 = sld [smem:[#allocation0]]
  $region101: #{hdp_cluster_em_forward.3} parent=0
    _
  %s15 = ssub.s32 1, %s13
  %s16 = scalar_select 0, %s15, %s13
  $region1: #{hdp_cluster_em_forward.3} parent=0
    #allocation2 [shape = 'u8[512]{0}', space=smem, size = 0x200, scoped, tag = 'input window, operand 0, single buffered']
    #allocation3 [shape = 's32[2]{0}', space=sflag, size = 0x8, scoped, tag = 'scoped memory for hdp_cluster_em_forward.3']
    #allocation4 [shape = 's32[2]{0}', space=sflag, size = 0x8, scoped, tag = 'scoped memory for hdp_cluster_em_forward.3']
    #allocation5 [shape = 'u8[1024]{0}', space=vmem, size = 0x400, scoped, tag = 'output window, operand 4']
    %17 = vsyncpa [#allocation4], 0
    %18 = vsyncpa [#allocation3], 0
    %s19 = scalar_lea.sflag [#allocation3], 1
    %20 = vsyncpa %s19, 0
    loop: start=0, step=1, limit=5
    $region2: #{hdp_cluster_em_forward.3} parent=1 // loop_pre_header
      _
    $region3: #{hdp_cluster_em_forward.3} parent=1 // loop_header
      %s22 = sphi 0, %s26
      %p23 = scmp.ge.s32.totalorder %s22, 5
      %s30 = sphi 0, %s30
      %s32 = sphi 0, %s30
      %s33 = sphi 0, %s32
      %s47 = sphi 0, %s33
      %s51 = sphi 0, %s51
      %s53 = sphi 0, %s51
      %s54 = sphi 0, %s53
      %s68 = sphi 0, %s54
      %s74 = sphi 0, %s76
      %s77 = sphi 0, %s74
      %s78 = sphi 0, %s77
      %s94 = sphi 0, %s78
      %s100 = sphi 0, %s102
      %s103 = sphi 0, %s100
      %s104 = sphi 0, %s103
      %s120 = sphi 0, %s104
      %s126 = sphi 0, %s128
      %s129 = sphi 0, %s126
      %s130 = sphi 0, %s129
      %s146 = sphi 0, %s130
      %s152 = sphi 0, %s154
      %s155 = sphi 0, %s152
      %s156 = sphi 0, %s155
      %s172 = sphi 0, %s156
      %s178 = sphi 0, %s180
      %s181 = sphi 0, %s178
      %s182 = sphi 0, %s181
      %s198 = sphi 0, %s182
      %s204 = sphi 0, %s206
      %s207 = sphi 0, %s204
      %s208 = sphi 0, %s207
      %s224 = sphi 0, %s208
      %s230 = sphi 0, %s232
      %s233 = sphi 0, %s230
      %s234 = sphi 0, %s233
      %s250 = sphi 0, %s234
      %s256 = sphi 0, %s258
      %s259 = sphi 0, %s256
      %s260 = sphi 0, %s259
      %s276 = sphi 0, %s260
      %s282 = sphi 0, %s284
      %s285 = sphi 0, %s282
      %s286 = sphi 0, %s285
      %s302 = sphi 0, %s286
      %s308 = sphi 0, %s310
      %s311 = sphi 0, %s308
      %s312 = sphi 0, %s311
      %s328 = sphi 0, %s312
    $region4: #{hdp_cluster_em_forward.3} parent=1 // loop_header_branch
      %25 = sbr.rel (%p23) target = $region8
    $region5: #{hdp_cluster_em_forward.3} parent=1 // loop_body
      %s27 = ssub.s32 %s22, 1
      %s28 = ssub.s32 %s22, 2
      %s29 = sadd.s32 %s22, 1
      %s31 = sadd.s32 %s30, 1
      %p34 = scmp.eq.s32.totalorder %s22, 2
      %p35 = scmp.ne.s32.totalorder %s30, %s32
      %p36 = scmp.eq.s32.totalorder %s22, 0
      %p37 = por %p35, %p36
      %p38 = scmp.ne.s32.totalorder %s30, %s32
      %p39 = scmp.eq.s32.totalorder %s27, 2
      %p40 = por %p38, %p39
      %p41 = scmp.ne.s32.totalorder %s32, %s33
      %p42 = scmp.eq.s32.totalorder %s27, 0
      %p43 = por %p41, %p42
      %p44 = scmp.ne.s32.totalorder %s32, %s33
      %p45 = scmp.eq.s32.totalorder %s28, 2
      %p46 = por %p44, %p45
      %p48 = scmp.ne.s32.totalorder %s33, %s47
      %p49 = scmp.eq.s32.totalorder %s28, 0
      %p50 = por %p48, %p49
      %s52 = sadd.s32 %s51, 1
      %p55 = scmp.eq.s32.totalorder %s22, 2
      %p56 = scmp.ne.s32.totalorder %s51, %s53
      %p57 = scmp.eq.s32.totalorder %s22, 0
      %p58 = por %p56, %p57
      %p59 = scmp.ne.s32.totalorder %s51, %s53
      %p60 = scmp.eq.s32.totalorder %s27, 2
      %p61 = por %p59, %p60
      %p62 = scmp.ne.s32.totalorder %s53, %s54
      %p63 = scmp.eq.s32.totalorder %s27, 0
      %p64 = por %p62, %p63
      %p65 = scmp.ne.s32.totalorder %s53, %s54
      %p66 = scmp.eq.s32.totalorder %s28, 2
      %p67 = por %p65, %p66
      %p69 = scmp.ne.s32.totalorder %s54, %s68
      %p70 = scmp.eq.s32.totalorder %s28, 0
      %p71 = por %p69, %p70
      %s72 = ssub.s32 %s22, %s29
      %p73 = scmp.eq.s32.totalorder %s72, 0
      %s75 = sadd.s32 %s74, 1
      %s76 = scalar_select %p73, %s74, %s75
      %p79 = pneg %p73
      %p80 = scmp.eq.s32.totalorder %s22, 2
      %p81 = por %p79, %p80
      %p82 = scmp.ne.s32.totalorder %s74, %s77
      %p83 = scmp.eq.s32.totalorder %s22, 0
      %p84 = por %p82, %p83
      %p85 = scmp.ne.s32.totalorder %s74, %s77
      %p86 = scmp.eq.s32.totalorder %s27, 2
      %p87 = por %p85, %p86
      %p88 = scmp.ne.s32.totalorder %s77, %s78
      %p89 = scmp.eq.s32.totalorder %s27, 0
      %p90 = por %p88, %p89
      %p91 = scmp.ne.s32.totalorder %s77, %s78
      %p92 = scmp.eq.s32.totalorder %s28, 2
      %p93 = por %p91, %p92
      %p95 = scmp.ne.s32.totalorder %s78, %s94
      %p96 = scmp.eq.s32.totalorder %s28, 0
      %p97 = por %p95, %p96
      %s98 = ssub.s32 %s22, %s29
      %p99 = scmp.eq.s32.totalorder %s98, 0
      %s101 = sadd.s32 %s100, 1
      %s102 = scalar_select %p99, %s100, %s101
      %p105 = pneg %p99
      %p106 = scmp.eq.s32.totalorder %s22, 2
      %p107 = por %p105, %p106
      %p108 = scmp.ne.s32.totalorder %s100, %s103
      %p109 = scmp.eq.s32.totalorder %s22, 0
      %p110 = por %p108, %p109
      %p111 = scmp.ne.s32.totalorder %s100, %s103
      %p112 = scmp.eq.s32.totalorder %s27, 2
      %p113 = por %p111, %p112
      %p114 = scmp.ne.s32.totalorder %s103, %s104
      %p115 = scmp.eq.s32.totalorder %s27, 0
      %p116 = por %p114, %p115
      %p117 = scmp.ne.s32.totalorder %s103, %s104
      %p118 = scmp.eq.s32.totalorder %s28, 2
      %p119 = por %p117, %p118
      %p121 = scmp.ne.s32.totalorder %s104, %s120
      %p122 = scmp.eq.s32.totalorder %s28, 0
      %p123 = por %p121, %p122
      %s124 = ssub.s32 %s22, %s29
      %p125 = scmp.eq.s32.totalorder %s124, 0
      %s127 = sadd.s32 %s126, 1
      %s128 = scalar_select %p125, %s126, %s127
      %p131 = pneg %p125
      %p132 = scmp.eq.s32.totalorder %s22, 2
      %p133 = por %p131, %p132
      %p134 = scmp.ne.s32.totalorder %s126, %s129
      %p135 = scmp.eq.s32.totalorder %s22, 0
      %p136 = por %p134, %p135
      %p137 = scmp.ne.s32.totalorder %s126, %s129
      %p138 = scmp.eq.s32.totalorder %s27, 2
      %p139 = por %p137, %p138
      %p140 = scmp.ne.s32.totalorder %s129, %s130
      %p141 = scmp.eq.s32.totalorder %s27, 0
      %p142 = por %p140, %p141
      %p143 = scmp.ne.s32.totalorder %s129, %s130
      %p144 = scmp.eq.s32.totalorder %s28, 2
      %p145 = por %p143, %p144
      %p147 = scmp.ne.s32.totalorder %s130, %s146
      %p148 = scmp.eq.s32.totalorder %s28, 0
      %p149 = por %p147, %p148
      %s150 = ssub.s32 %s22, %s29
      %p151 = scmp.eq.s32.totalorder %s150, 0
      %s153 = sadd.s32 %s152, 1
      %s154 = scalar_select %p151, %s152, %s153
      %p157 = pneg %p151
      %p158 = scmp.eq.s32.totalorder %s22, 2
      %p159 = por %p157, %p158
      %p160 = scmp.ne.s32.totalorder %s152, %s155
      %p161 = scmp.eq.s32.totalorder %s22, 0
      %p162 = por %p160, %p161
      %p163 = scmp.ne.s32.totalorder %s152, %s155
      %p164 = scmp.eq.s32.totalorder %s27, 2
      %p165 = por %p163, %p164
      %p166 = scmp.ne.s32.totalorder %s155, %s156
      %p167 = scmp.eq.s32.totalorder %s27, 0
      %p168 = por %p166, %p167
      %p169 = scmp.ne.s32.totalorder %s155, %s156
      %p170 = scmp.eq.s32.totalorder %s28, 2
      %p171 = por %p169, %p170
      %p173 = scmp.ne.s32.totalorder %s156, %s172
      %p174 = scmp.eq.s32.totalorder %s28, 0
      %p175 = por %p173, %p174
      %s176 = ssub.s32 %s22, %s29
      %p177 = scmp.eq.s32.totalorder %s176, 0
      %s179 = sadd.s32 %s178, 1
      %s180 = scalar_select %p177, %s178, %s179
      %p183 = pneg %p177
      %p184 = scmp.eq.s32.totalorder %s22, 2
      %p185 = por %p183, %p184
      %p186 = scmp.ne.s32.totalorder %s178, %s181
      %p187 = scmp.eq.s32.totalorder %s22, 0
      %p188 = por %p186, %p187
      %p189 = scmp.ne.s32.totalorder %s178, %s181
      %p190 = scmp.eq.s32.totalorder %s27, 2
      %p191 = por %p189, %p190
      %p192 = scmp.ne.s32.totalorder %s181, %s182
      %p193 = scmp.eq.s32.totalorder %s27, 0
      %p194 = por %p192, %p193
      %p195 = scmp.ne.s32.totalorder %s181, %s182
      %p196 = scmp.eq.s32.totalorder %s28, 2
      %p197 = por %p195, %p196
      %p199 = scmp.ne.s32.totalorder %s182, %s198
      %p200 = scmp.eq.s32.totalorder %s28, 0
      %p201 = por %p199, %p200
      %s202 = ssub.s32 %s22, %s29
      %p203 = scmp.eq.s32.totalorder %s202, 0
      %s205 = sadd.s32 %s204, 1
      %s206 = scalar_select %p203, %s204, %s205
      %p209 = pneg %p203
      %p210 = scmp.eq.s32.totalorder %s22, 2
      %p211 = por %p209, %p210
      %p212 = scmp.ne.s32.totalorder %s204, %s207
      %p213 = scmp.eq.s32.totalorder %s22, 0
      %p214 = por %p212, %p213
      %p215 = scmp.ne.s32.totalorder %s204, %s207
      %p216 = scmp.eq.s32.totalorder %s27, 2
      %p217 = por %p215, %p216
      %p218 = scmp.ne.s32.totalorder %s207, %s208
      %p219 = scmp.eq.s32.totalorder %s27, 0
      %p220 = por %p218, %p219
      %p221 = scmp.ne.s32.totalorder %s207, %s208
      %p222 = scmp.eq.s32.totalorder %s28, 2
      %p223 = por %p221, %p222
      %p225 = scmp.ne.s32.totalorder %s208, %s224
      %p226 = scmp.eq.s32.totalorder %s28, 0
      %p227 = por %p225, %p226
      %s228 = ssub.s32 %s22, %s29
      %p229 = scmp.eq.s32.totalorder %s228, 0
      %s231 = sadd.s32 %s230, 1
      %s232 = scalar_select %p229, %s230, %s231
      %p235 = pneg %p229
      %p236 = scmp.eq.s32.totalorder %s22, 2
      %p237 = por %p235, %p236
      %p238 = scmp.ne.s32.totalorder %s230, %s233
      %p239 = scmp.eq.s32.totalorder %s22, 0
      %p240 = por %p238, %p239
      %p241 = scmp.ne.s32.totalorder %s230, %s233
      %p242 = scmp.eq.s32.totalorder %s27, 2
      %p243 = por %p241, %p242
      %p244 = scmp.ne.s32.totalorder %s233, %s234
      %p245 = scmp.eq.s32.totalorder %s27, 0
      %p246 = por %p244, %p245
      %p247 = scmp.ne.s32.totalorder %s233, %s234
      %p248 = scmp.eq.s32.totalorder %s28, 2
      %p249 = por %p247, %p248
      %p251 = scmp.ne.s32.totalorder %s234, %s250
      %p252 = scmp.eq.s32.totalorder %s28, 0
      %p253 = por %p251, %p252
      %s254 = ssub.s32 %s22, %s29
      %p255 = scmp.eq.s32.totalorder %s254, 0
      %s257 = sadd.s32 %s256, 1
      %s258 = scalar_select %p255, %s256, %s257
      %p261 = pneg %p255
      %p262 = scmp.eq.s32.totalorder %s22, 2
      %p263 = por %p261, %p262
      %p264 = scmp.ne.s32.totalorder %s256, %s259
      %p265 = scmp.eq.s32.totalorder %s22, 0
      %p266 = por %p264, %p265
      %p267 = scmp.ne.s32.totalorder %s256, %s259
      %p268 = scmp.eq.s32.totalorder %s27, 2
      %p269 = por %p267, %p268
      %p270 = scmp.ne.s32.totalorder %s259, %s260
      %p271 = scmp.eq.s32.totalorder %s27, 0
      %p272 = por %p270, %p271
      %p273 = scmp.ne.s32.totalorder %s259, %s260
      %p274 = scmp.eq.s32.totalorder %s28, 2
      %p275 = por %p273, %p274
      %p277 = scmp.ne.s32.totalorder %s260, %s276
      %p278 = scmp.eq.s32.totalorder %s28, 0
      %p279 = por %p277, %p278
      %s280 = ssub.s32 %s22, %s29
      %p281 = scmp.eq.s32.totalorder %s280, 0
      %s283 = sadd.s32 %s282, 1
      %s284 = scalar_select %p281, %s282, %s283
      %p287 = pneg %p281
      %p288 = scmp.eq.s32.totalorder %s22, 2
      %p289 = por %p287, %p288
      %p290 = scmp.ne.s32.totalorder %s282, %s285
      %p291 = scmp.eq.s32.totalorder %s22, 0
      %p292 = por %p290, %p291
      %p293 = scmp.ne.s32.totalorder %s282, %s285
      %p294 = scmp.eq.s32.totalorder %s27, 2
      %p295 = por %p293, %p294
      %p296 = scmp.ne.s32.totalorder %s285, %s286
      %p297 = scmp.eq.s32.totalorder %s27, 0
      %p298 = por %p296, %p297
      %p299 = scmp.ne.s32.totalorder %s285, %s286
      %p300 = scmp.eq.s32.totalorder %s28, 2
      %p301 = por %p299, %p300
      %p303 = scmp.ne.s32.totalorder %s286, %s302
      %p304 = scmp.eq.s32.totalorder %s28, 0
      %p305 = por %p303, %p304
      %s306 = ssub.s32 %s22, %s29
      %p307 = scmp.eq.s32.totalorder %s306, 0
      %s309 = sadd.s32 %s308, 1
      %s310 = scalar_select %p307, %s308, %s309
      %p313 = pneg %p307
      %p314 = scmp.eq.s32.totalorder %s22, 2
      %p315 = por %p313, %p314
      %p316 = scmp.ne.s32.totalorder %s308, %s311
      %p317 = scmp.eq.s32.totalorder %s22, 0
      %p318 = por %p316, %p317
      %p319 = scmp.ne.s32.totalorder %s308, %s311
      %p320 = scmp.eq.s32.totalorder %s27, 2
      %p321 = por %p319, %p320
      %p322 = scmp.ne.s32.totalorder %s311, %s312
      %p323 = scmp.eq.s32.totalorder %s27, 0
      %p324 = por %p322, %p323
      %p325 = scmp.ne.s32.totalorder %s311, %s312
      %p326 = scmp.eq.s32.totalorder %s28, 2
      %p327 = por %p325, %p326
      %p329 = scmp.ne.s32.totalorder %s312, %s328
      %p330 = scmp.eq.s32.totalorder %s28, 0
      %p331 = por %p329, %p330
      %p332 = scmp.le.s32.totalorder 1, %s22
      %p333 = scmp.lt.s32.totalorder %s22, 4
      %p334 = pnand %p332, %p333
      %p335 = pneg %p334
      // Predicated region
      $region9: #{hdp_cluster_em_forward.3} parent=5 // pred_check
        _
      $region10: #{hdp_cluster_em_forward.3} parent=5 // pred_check_branch
        %337 = sbr.rel (%p334) target = $region12
      $region11: #{hdp_cluster_em_forward.3} parent=5 // pred_region
        %s338 = ssub.s32 %s22, 1
        // Predicated region
        $region13: #{hdp_cluster_em_forward.3} parent=11 // pred_check
          %p339 = pneg %p43
        $region14: #{hdp_cluster_em_forward.3} parent=11 // pred_check_branch
          %341 = sbr.rel (%p339) target = $region16
        $region15: #{hdp_cluster_em_forward.3} parent=11 // pred_region
          %343 = vsyncadd [#allocation4], 0
          %s345 = sshll.u32 %s0, 4
          %s346 = int_to_ptr.vmem [resolvable:$true] %s345
          %348 = dma.vmem_to_smem %s346, 16, [#allocation2], [#allocation4]
        $region16: #{hdp_cluster_em_forward.3} parent=11 // pred_fallthru
          _
        // Predicated region
        $region17: #{hdp_cluster_em_forward.3} parent=11 // pred_check
          %p349 = pneg %p64
        $region18: #{hdp_cluster_em_forward.3} parent=11 // pred_check_branch
          %351 = sbr.rel (%p349) target = $region20
        $region19: #{hdp_cluster_em_forward.3} parent=11 // pred_region
          _
        $region20: #{hdp_cluster_em_forward.3} parent=11 // pred_fallthru
          _
      $region12: #{hdp_cluster_em_forward.3} parent=5 // pred_fallthru
        _
      %p352 = scmp.lt.s32.totalorder %s22, 3
      // Predicated region
      $region21: #{hdp_cluster_em_forward.3} parent=5 // pred_check
        %p353 = pneg %p352
      $region22: #{hdp_cluster_em_forward.3} parent=5 // pred_check_branch
        %355 = sbr.rel (%p353) target = $region24
      $region23: #{hdp_cluster_em_forward.3} parent=5 // pred_region
        // Predicated region
        $region25: #{hdp_cluster_em_forward.3} parent=23 // pred_check
          %p356 = pneg %p84
        $region26: #{hdp_cluster_em_forward.3} parent=23 // pred_check_branch
          %358 = sbr.rel (%p356) target = $region28
        $region27: #{hdp_cluster_em_forward.3} parent=23 // pred_region
          %p359 = scmp.lt.s32.totalorder %s22, 2
          %s360 = scalar_select %p359, %s22, 2
          %s361 = smul.addr %s360, 8
          %s362 = scalar_lea.vmem %s2, %s361
        $region28: #{hdp_cluster_em_forward.3} parent=23 // pred_fallthru
          _
        // Predicated region
        $region29: #{hdp_cluster_em_forward.3} parent=23 // pred_check
          %p363 = pneg %p110
        $region30: #{hdp_cluster_em_forward.3} parent=23 // pred_check_branch
          %365 = sbr.rel (%p363) target = $region32
        $region31: #{hdp_cluster_em_forward.3} parent=23 // pred_region
          %p366 = scmp.lt.s32.totalorder %s22, 2
          %s367 = scalar_select %p366, %s22, 2
          %s368 = smul.addr %s367, 8
          %s369 = scalar_lea.vmem %s3, %s368
        $region32: #{hdp_cluster_em_forward.3} parent=23 // pred_fallthru
          _
        // Predicated region
        $region33: #{hdp_cluster_em_forward.3} parent=23 // pred_check
          %p370 = pneg %p136
        $region34: #{hdp_cluster_em_forward.3} parent=23 // pred_check_branch
          %372 = sbr.rel (%p370) target = $region36
        $region35: #{hdp_cluster_em_forward.3} parent=23 // pred_region
          %p373 = scmp.lt.s32.totalorder %s22, 2
          %s374 = scalar_select %p373, %s22, 2
          %s375 = smul.addr %s374, 8
          %s376 = scalar_lea.vmem %s4, %s375
        $region36: #{hdp_cluster_em_forward.3} parent=23 // pred_fallthru
          _
        // Predicated region
        $region37: #{hdp_cluster_em_forward.3} parent=23 // pred_check
          %p377 = pneg %p162
        $region38: #{hdp_cluster_em_forward.3} parent=23 // pred_check_branch
          %379 = sbr.rel (%p377) target = $region40
        $region39: #{hdp_cluster_em_forward.3} parent=23 // pred_region
          %p380 = scmp.lt.s32.totalorder %s22, 2
          %s381 = scalar_select %p380, %s22, 2
          %s382 = smul.addr %s381, 8
          %s383 = scalar_lea.vmem %s5, %s382
        $region40: #{hdp_cluster_em_forward.3} parent=23 // pred_fallthru
          _
      $region24: #{hdp_cluster_em_forward.3} parent=5 // pred_fallthru
        _
      %p384 = scmp.le.s32.totalorder 1, %s22
      %p385 = scmp.lt.s32.totalorder %s22, 4
      %p386 = pnand %p384, %p385
      %p387 = pneg %p386
      // Predicated region
      $region41: #{hdp_cluster_em_forward.3} parent=5 // pred_check
        _
      $region42: #{hdp_cluster_em_forward.3} parent=5 // pred_check_branch
        %389 = sbr.rel (%p386) target = $region44
      $region43: #{hdp_cluster_em_forward.3} parent=5 // pred_region
        %s390 = ssub.s32 %s22, 1
        // Predicated region
        $region45: #{hdp_cluster_em_forward.3} parent=43 // pred_check
          %p391 = pneg %p43
        $region46: #{hdp_cluster_em_forward.3} parent=43 // pred_check_branch
          %393 = sbr.rel (%p391) target = $region48
        $region47: #{hdp_cluster_em_forward.3} parent=43 // pred_region
          %395 = dma.done [#allocation4], 16
        $region48: #{hdp_cluster_em_forward.3} parent=43 // pred_fallthru
          _
        %396 = sfence
        %p397 = pneg %p43
        %p398 = pneg %p40
        %p399 = pneg %p64
        %p400 = pneg %p61
        %p401 = scmp.lt.s32.totalorder %s27, 2
        %s402 = scalar_select %p401, %s27, 2
        %s403 = smul.addr %s402, 8
        %s404 = scalar_lea.vmem %s2, %s403
        %p405 = pneg %p90
        %p406 = pneg %p87
        %p407 = scmp.lt.s32.totalorder %s27, 2
        %s408 = scalar_select %p407, %s27, 2
        %s409 = smul.addr %s408, 8
        %s410 = scalar_lea.vmem %s3, %s409
        %p411 = pneg %p116
        %p412 = pneg %p113
        %p413 = scmp.lt.s32.totalorder %s27, 2
        %s414 = scalar_select %p413, %s27, 2
        %s415 = smul.addr %s414, 8
        %s416 = scalar_lea.vmem %s4, %s415
        %p417 = pneg %p142
        %p418 = pneg %p139
        %p419 = scmp.lt.s32.totalorder %s27, 2
        %s420 = scalar_select %p419, %s27, 2
        %s421 = smul.addr %s420, 8
        %s422 = scalar_lea.vmem %s5, %s421
        %p423 = pneg %p168
        %p424 = pneg %p165
        %p425 = pneg %p194
        %p426 = pneg %p191
        %p427 = scmp.lt.s32.totalorder %s27, 2
        %s428 = scalar_select %p427, %s27, 2
        %s429 = smul.addr %s428, 8
        %s430 = scalar_lea.vmem %s6, %s429
        %p431 = pneg %p220
        %p432 = pneg %p217
        %p433 = scmp.lt.s32.totalorder %s27, 2
        %s434 = scalar_select %p433, %s27, 2
        %s435 = smul.addr %s434, 8
        %s436 = scalar_lea.vmem %s7, %s435
        %p437 = pneg %p246
        %p438 = pneg %p243
        %p439 = scmp.lt.s32.totalorder %s27, 2
        %s440 = scalar_select %p439, %s27, 2
        %s441 = smul.addr %s440, 8
        %s442 = scalar_lea.vmem %s8, %s441
        %p443 = pneg %p272
        %p444 = pneg %p269
        %p445 = scmp.lt.s32.totalorder %s27, 2
        %s446 = scalar_select %p445, %s27, 2
        %s447 = scalar_lea.vmem %s9, %s446
        %p448 = pneg %p298
        %p449 = pneg %p295
        %s450 = sand.u32 %s285, 1
        %s451 = scalar_lea.sflag [#allocation3], %s450
        %s452 = sand.u32 %s285, 1
        %s453 = scalar_lea.vmem [#allocation5], %s452
        %p454 = pneg %p324
        %p455 = pneg %p321
        %p456 = scmp.lt.s32.totalorder %s27, 2
        %s457 = scalar_select %p456, %s27, 2
        %s458 = smul.addr %s457, 8
        %s459 = scalar_lea.vmem %s11, %s458
        %p460 = scmp.lt.s32.totalorder %s27, 2
        %s461 = scalar_select %p460, %s27, 2
        %s462 = smul.addr %s461, 8
        %s463 = scalar_lea.vmem %s2, %s462
        %p464 = scmp.lt.s32.totalorder %s27, 2
        %s465 = scalar_select %p464, %s27, 2
        %s466 = smul.addr %s465, 8
        %s467 = scalar_lea.vmem %s3, %s466
        %p468 = scmp.lt.s32.totalorder %s27, 2
        %s469 = scalar_select %p468, %s27, 2
        %s470 = smul.addr %s469, 8
        %s471 = scalar_lea.vmem %s4, %s470
        %p472 = scmp.lt.s32.totalorder %s27, 2
        %s473 = scalar_select %p472, %s27, 2
        %s474 = smul.addr %s473, 8
        %s475 = scalar_lea.vmem %s5, %s474
        %p476 = scmp.lt.s32.totalorder %s27, 2
        %s477 = scalar_select %p476, %s27, 2
        %s478 = smul.addr %s477, 8
        %s479 = scalar_lea.vmem %s6, %s478
        %p480 = scmp.lt.s32.totalorder %s27, 2
        %s481 = scalar_select %p480, %s27, 2
        %s482 = smul.addr %s481, 8
        %s483 = scalar_lea.vmem %s7, %s482
        %p484 = scmp.lt.s32.totalorder %s27, 2
        %s485 = scalar_select %p484, %s27, 2
        %s486 = smul.addr %s485, 8
        %s487 = scalar_lea.vmem %s8, %s486
        %p488 = scmp.lt.s32.totalorder %s27, 2
        %s489 = scalar_select %p488, %s27, 2
        %s490 = scalar_lea.vmem %s9, %s489
        %p491 = scmp.lt.s32.totalorder %s27, 2
        %s492 = scalar_select %p491, %s27, 2
        %s493 = smul.addr %s492, 8
        %s494 = scalar_lea.vmem %s11, %s493
        %v495 = vld [vmem:[%s1] sm:$0xff]
        %v496 = vld [vmem:[%s1 + $0x8] sm:$0xff]
        %v497 = vmul.f32 %v495, %v495
        %v498 = vmul.f32 %v496, %v496
        %v499 = vld [vmem:[%s463] sm:$0xff]
        %v500 = vld [vmem:[%s467] sm:$0xff]
        %v501 = vld [vmem:[%s471] sm:$0xff]
        %v502 = vld [vmem:[%s475] sm:$0xff]
        %v503 = vlog2.pop %v502
        %v504 = vmul.f32 %v503, 0.6931472
        %v505 = vmul.f32 %v500, 1.442695
        %v506 = vpow.pop %v505
        %v507 = vmul.f32 %v506, 2.0
        %v508 = vmul.f32 %v507, %v506
        %v509 = vrcp.pop %v508
        %v510 = vmul.f32 %v508, %v509
        %v511 = vsub.f32 1.0, %v510
        %v512 = vmul.f32 %v509, %v511
        %v513 = vadd.f32 %v509, %v512
        %vm514 = vweird.f32 %v508
        %vm515 = vweird.f32 %v509
        %vm516 = vmor %vm514, %vm515
        %v517 = vsel %vm516, %v509, %v513
        %v518 = vand.u32 2147483647, %v508
        %vm519 = vcmp.eq.f32.partialorder %v518, 8.507059e+37
        %v520 = vand.u32 %v508, 2147483648
        %v521 = vor.u32 1.1754944e-38, %v520
        %v522 = vsel %vm519, %v521, %v517
        %v523 = vmul.f32 1.0, %v522
        %524 = vmatpush.xpose.msra.mxu0 0.0
        %525 = vmatpush.xpose.msra.mxu0 0.0
        %526 = vmatpush.xpose.msra.mxu0 0.0
        %527 = vmatpush.xpose.msra.mxu0 0.0
        %528 = vmatpush.xpose.msra.mxu0 0.0
        %529 = vmatpush.xpose.msra.mxu0 0.0
        %530 = vmatpush.xpose.msra.mxu0 0.0
        %531 = vmatpush.xpose.msra.mxu0 0.0
        %532 = vmatpush.xpose.msra.mxu0 0.0
        %533 = vmatpush.xpose.msra.mxu0 0.0
        %534 = vmatpush.xpose.msra.mxu0 0.0
        %535 = vmatpush.xpose.msra.mxu0 0.0
        %536 = vmatpush.xpose.msra.mxu0 0.0
        %537 = vmatpush.xpose.msra.mxu0 0.0
        %538 = vmatpush.xpose.msra.mxu0 %v498
        %539 = vmatpush.xpose.msra.mxu0 %v497
        %540 = vmatmul.f32.gmra.mxu0 %v523
        %v541 = vpop.f32.mrf.mxu0
        %v542 = vadd.f32 0.0, %v541
        %543 = vdwg.mxu0
        %v544 = vmul.f32 %v499, %v523
        %545 = vmatpush.xpose.msra.mxu0 0.0
        %546 = vmatpush.xpose.msra.mxu0 0.0
        %547 = vmatpush.xpose.msra.mxu0 0.0
        %548 = vmatpush.xpose.msra.mxu0 0.0
        %549 = vmatpush.xpose.msra.mxu0 0.0
        %550 = vmatpush.xpose.msra.mxu0 0.0
        %551 = vmatpush.xpose.msra.mxu0 0.0
        %552 = vmatpush.xpose.msra.mxu0 0.0
        %553 = vmatpush.xpose.msra.mxu0 0.0
        %554 = vmatpush.xpose.msra.mxu0 0.0
        %555 = vmatpush.xpose.msra.mxu0 0.0
        %556 = vmatpush.xpose.msra.mxu0 0.0
        %557 = vmatpush.xpose.msra.mxu0 0.0
        %558 = vmatpush.xpose.msra.mxu0 0.0
        %559 = vmatpush.xpose.msra.mxu0 %v496
        %560 = vmatpush.xpose.msra.mxu0 %v495
        %561 = vmatmul.f32.gmra.mxu0 %v544
        %v562 = vpop.f32.mrf.mxu0
        %v563 = vadd.f32 0.0, %v562
        %564 = vdwg.mxu0
        %v565 = vmul.f32 %v563, 2.0
        %v566 = vsub.f32 %v542, %v565
        %v567 = vmul.f32 %v499, %v499
        %v568 = vmul.f32 %v567, %v523
        %v569 = vadd.f32 %v568, %v500
        %570 = vadd.xlane.f32.xlu0 %v569
        %v571 = vpop.xlane.xlu0 %570
        %v572 = vsub.f32 -117.62413, %v566
        %v573 = vsub.f32 %v572, %v571
        %574 = vadd.xlane.f32.xlu0 %v500
        %v575 = vpop.xlane.xlu0 %574
        %v576 = vadd.f32 %v575, 181.62413
        %v577 = vadd.f32 %v573, %v576
        %vm578 = vcmask 130048
        %v579 = vsel %vm578, %v577, inf
        %580 = vmin.xlane.f32.xlu0 %v579
        %v581 = vpop.xlane.xlu0 %580
        %v582 = vrot.slane %v581, 4
        %v583 = vmin.f32 %v581, %v582
        %v584 = vrot.slane %v583, 2
        %v585 = vmin.f32 %v583, %v584
        %v586 = vrot.slane %v585, 1
        %v587 = vmin.f32 %v585, %v586
        %s588 = vtos %v587
        %s589 = sld [smem:[#allocation2 + %s27]]
        %s590 = sadd.f32 %s588, %s589
        %v591 = vstv %s590
        %v592 = vrcp.pop %v591
        %v593 = vmul.f32 %v591, %v592
        %v594 = vsub.f32 1.0, %v593
        %v595 = vmul.f32 %v592, %v594
        %v596 = vadd.f32 %v592, %v595
        %vm597 = vweird.f32 %v591
        %vm598 = vweird.f32 %v592
        %vm599 = vmor %vm597, %vm598
        %v600 = vsel %vm599, %v592, %v596
        %v601 = vand.u32 2147483647, %v591
        %vm602 = vcmp.eq.f32.partialorder %v601, 8.507059e+37
        %v603 = vand.u32 %v591, 2147483648
        %v604 = vor.u32 1.1754944e-38, %v603
        %v605 = vsel %vm602, %v604, %v600
        %s606 = vtos %v605
        %s607 = smul.f32 %s589, %s606
        %v608 = vstv %s607
        %v609 = vmul.f32 %v608, %v577
        %s610 = ssub.f32 1.0, %s607
        %v611 = vstv %s610
        %v612 = vmul.f32 %v611, %v504
        %v613 = vadd.f32 %v609, %v612
        %v614 = vsel %vm578, %v613, -inf
        %v615 = vrot.slane %v614, 4
        %v616 = vmax.f32 %v614, %v615
        %v617 = vrot.slane %v616, 2
        %v618 = vmax.f32 %v616, %v617
        %v619 = vrot.slane %v618, 1
        %v620 = vmax.f32 %v618, %v619
        %v621 = vsub.f32 %v613, %v620
        %v622 = vmul.f32 %v621, 1.442695
        %v623 = vpow.pop %v622
        %v624 = vsel %vm578, %v623, 0.0
        %v625 = vrot.slane %v624, 4
        %v626 = vadd.f32 %v624, %v625
        %v627 = vrot.slane %v626, 2
        %v628 = vadd.f32 %v626, %v627
        %v629 = vrot.slane %v628, 1
        %v630 = vadd.f32 %v628, %v629
        %v631 = vrcp.pop %v630
        %v632 = vmul.f32 %v630, %v631
        %v633 = vsub.f32 1.0, %v632
        %v634 = vmul.f32 %v631, %v633
        %v635 = vadd.f32 %v631, %v634
        %vm636 = vweird.f32 %v630
        %vm637 = vweird.f32 %v631
        %vm638 = vmor %vm636, %vm637
        %v639 = vsel %vm638, %v631, %v635
        %v640 = vand.u32 2147483647, %v630
        %vm641 = vcmp.eq.f32.partialorder %v640, 8.507059e+37
        %v642 = vand.u32 %v630, 2147483648
        %v643 = vor.u32 1.1754944e-38, %v642
        %v644 = vsel %vm641, %v643, %v639
        %v645 = vmul.f32 %v623, %v644
        %646 = vst.msk [vmem:[%s479] sm:$0xff] %vm578, %v645
        %v647 = vlog2.pop %v645
        %v648 = vmul.f32 %v647, 0.6931472
        %v649 = vsel %vm578, %v648, 0.0
        %v650 = vrot.slane %v649, 4
        %v651 = vadd.f32 %v649, %v650
        %v652 = vrot.slane %v651, 2
        %v653 = vadd.f32 %v651, %v652
        %v654 = vrot.slane %v653, 1
        %v655 = vadd.f32 %v653, %v654
        %vm656 = vcmask 122880
        %657 = vst.msk [vmem:[%s490] sm:$0x1] %vm656, %v655
        %v658 = vmul.f32 %v645, %v609
        %v659 = vsel %vm578, %v658, 0.0
        %v660 = vrot.slane %v659, 4
        %v661 = vadd.f32 %v659, %v660
        %v662 = vrot.slane %v661, 2
        %v663 = vadd.f32 %v661, %v662
        %v664 = vrot.slane %v663, 1
        %v665 = vadd.f32 %v663, %v664
        %v666 = vsel %vm578, %v665, 0.0
        %667 = vadd.xlane.f32.xlu0 %v666
        %v668 = vpop.xlane.xlu0 %667
        %s669 = vtos %v668
        %v670 = vrcp.pop 16.0
        %v671 = vmul.f32 16.0, %v670
        %v672 = vsub.f32 1.0, %v671
        %v673 = vmul.f32 %v670, %v672
        %v674 = vadd.f32 %v670, %v673
        %vm675 = vweird.f32 %v670
        %v676 = vsel %vm675, %v670, %v674
        %s677 = vtos %v676
        %s678 = smul.f32 %s669, %s677
        %s679 = ssub.f32 0.0, %s678
        %v680 = vstv %s679
        %vm681 = vcmask 0
        %682 = vst.msk [vmem:[%s453] sm:$0x1] %vm681, %v680
        %v683 = vsel %vm578, %v501, 0.0
        %684 = vadd.xlane.f32.xlu0 %v683
        %v685 = vpop.xlane.xlu0 %684
        %vm686 = vcmask 7168
        %687 = vst.msk [vmem:[%s494] sm:$0xff] %vm686, %v685
        %v688 = vmax.f32 %v685, 1e-06
        %v689 = vsel %vm578, %v645, 0.0
        %690 = vadd.xlane.f32.xlu0 %v689
        %v691 = vpop.xlane.xlu0 %690
        %v692 = vmax.f32 %v691, 1e-06
        %v694 = vsel %vm578, %v645, 0
        %696 = vmatpush.msra.mxu0 0.0
        %697 = vmatpush.msra.mxu0 0.0
        %698 = vmatpush.msra.mxu0 0.0
        %699 = vmatpush.msra.mxu0 0.0
        %700 = vmatpush.msra.mxu0 0.0
        %701 = vmatpush.msra.mxu0 0.0
        %702 = vmatpush.msra.mxu0 0.0
        %703 = vmatpush.msra.mxu0 0.0
        %704 = vmatpush.msra.mxu0 0.0
        %705 = vmatpush.msra.mxu0 0.0
        %706 = vmatpush.msra.mxu0 0.0
        %707 = vmatpush.msra.mxu0 0.0
        %708 = vmatpush.msra.mxu0 0.0
        %709 = vmatpush.msra.mxu0 0.0
        %710 = vmatpush.msra.mxu0 %v496
        %711 = vmatpush.msra.mxu0 %v495
        %712 = vmatmul.f32.gmra.mxu0 %v694
        %v713 = vpop.f32.mrf.mxu0
        %v714 = vadd.f32 0.0, %v713
        %715 = vdwg.mxu0
        %v716 = vrcp.pop %v692
        %v717 = vmul.f32 %v692, %v716
        %v718 = vsub.f32 1.0, %v717
        %v719 = vmul.f32 %v716, %v718
        %v720 = vadd.f32 %v716, %v719
        %vm721 = vweird.f32 %v692
        %vm722 = vweird.f32 %v716
        %vm723 = vmor %vm721, %vm722
        %v724 = vsel %vm723, %v716, %v720
        %v725 = vand.u32 2147483647, %v692
        %vm726 = vcmp.eq.f32.partialorder %v725, 8.507059e+37
        %v727 = vand.u32 %v692, 2147483648
        %v728 = vor.u32 1.1754944e-38, %v727
        %v729 = vsel %vm726, %v728, %v724
        %v730 = vmul.f32 %v714, %v729
        %v731 = vadd.f32 %v692, %v688
        %v732 = vrcp.pop %v731
        %v733 = vmul.f32 %v731, %v732
        %v734 = vsub.f32 1.0, %v733
        %v735 = vmul.f32 %v732, %v734
        %v736 = vadd.f32 %v732, %v735
        %vm737 = vweird.f32 %v731
        %vm738 = vweird.f32 %v732
        %vm739 = vmor %vm737, %vm738
        %v740 = vsel %vm739, %v732, %v736
        %v741 = vand.u32 2147483647, %v731
        %vm742 = vcmp.eq.f32.partialorder %v741, 8.507059e+37
        %v743 = vand.u32 %v731, 2147483648
        %v744 = vor.u32 1.1754944e-38, %v743
        %v745 = vsel %vm742, %v744, %v740
        %v746 = vmul.f32 %v688, %v745
        %v747 = vmul.f32 %v746, %v499
        %v748 = vsub.f32 1.0, %v746
        %v749 = vmul.f32 %v748, %v730
        %v750 = vadd.f32 %v747, %v749
        %751 = vst [vmem:[%s483] sm:$0xff] %v750
        %752 = vmatpush.msra.mxu0 0.0
        %753 = vmatpush.msra.mxu0 0.0
        %754 = vmatpush.msra.mxu0 0.0
        %755 = vmatpush.msra.mxu0 0.0
        %756 = vmatpush.msra.mxu0 0.0
        %757 = vmatpush.msra.mxu0 0.0
        %758 = vmatpush.msra.mxu0 0.0
        %759 = vmatpush.msra.mxu0 0.0
        %760 = vmatpush.msra.mxu0 0.0
        %761 = vmatpush.msra.mxu0 0.0
        %762 = vmatpush.msra.mxu0 0.0
        %763 = vmatpush.msra.mxu0 0.0
        %764 = vmatpush.msra.mxu0 0.0
        %765 = vmatpush.msra.mxu0 0.0
        %766 = vmatpush.msra.mxu0 %v498
        %767 = vmatpush.msra.mxu0 %v497
        %768 = vmatmul.f32.gmra.mxu0 %v694
        %v769 = vpop.f32.mrf.mxu0
        %v770 = vadd.f32 0.0, %v769
        %771 = vdwg.mxu0
        %v772 = vmul.f32 %v750, 2.0
        %v773 = vmul.f32 %v772, %v714
        %v774 = vsub.f32 %v770, %v773
        %v775 = vmul.f32 %v750, %v750
        %v776 = vmul.f32 %v775, %v691
        %v777 = vadd.f32 %v774, %v776
        %v778 = vmul.f32 %v777, %v729
        %v779 = vmax.f32 %v778, 0.0
        %v780 = vrsqrt.pop %v779
        %v781 = vmul.f32 %v780, %v779
        %v782 = vmul.f32 %v781, %v780
        %v783 = vmul.f32 0.5, %v782
        %v784 = vsub.f32 1.5, %v783
        %v785 = vmul.f32 %v780, %v784
        %v786 = vmul.f32 %v779, %v785
        %vm787 = vcmp.eq.f32.partialorder %v779, inf
        %v788 = vsel %vm787, %v779, %v786
        %vm789 = vcmp.eq.f32.partialorder %v779, 0.0
        %v790 = vand.u32 %v779, 2147483648
        %v791 = vsel %vm789, %v790, %v788
        %v792 = vmul.f32 %v746, %v506
        %v793 = vmul.f32 %v748, %v791
        %v794 = vadd.f32 %v792, %v793
        %v795 = vlog2.pop %v794
        %v796 = vmul.f32 %v795, 0.6931472
        %797 = vst [vmem:[%s487] sm:$0xff] %v796
        %p798 = scmp.lt.s32.totalorder %s27, 2
        %s799 = scalar_select %p798, %s27, 2
        %s800 = smul.addr %s799, 8
        %s801 = scalar_lea.vmem %s6, %s800
        %p802 = scmp.lt.s32.totalorder %s27, 2
        %s803 = scalar_select %p802, %s27, 2
        %s804 = smul.addr %s803, 8
        %s805 = scalar_lea.vmem %s7, %s804
        %p806 = scmp.lt.s32.totalorder %s27, 2
        %s807 = scalar_select %p806, %s27, 2
        %s808 = smul.addr %s807, 8
        %s809 = scalar_lea.vmem %s8, %s808
        %p810 = scmp.lt.s32.totalorder %s27, 2
        %s811 = scalar_select %p810, %s27, 2
        %s812 = scalar_lea.vmem %s9, %s811
        %s813 = sand.u32 %s285, 1
        %s814 = scalar_lea.sflag [#allocation3], %s813
        %s815 = sand.u32 %s285, 1
        %s816 = scalar_lea.vmem [#allocation5], %s815
        %p817 = scmp.lt.s32.totalorder %s27, 2
        %s818 = scalar_select %p817, %s27, 2
        %s819 = smul.addr %s818, 8
        %s820 = scalar_lea.vmem %s11, %s819
        // Predicated region
        $region49: #{hdp_cluster_em_forward.3} parent=43 // pred_check
          %p821 = pneg %p191
        $region50: #{hdp_cluster_em_forward.3} parent=43 // pred_check_branch
          %823 = sbr.rel (%p821) target = $region52
        $region51: #{hdp_cluster_em_forward.3} parent=43 // pred_region
          _
        $region52: #{hdp_cluster_em_forward.3} parent=43 // pred_fallthru
          _
        // Predicated region
        $region53: #{hdp_cluster_em_forward.3} parent=43 // pred_check
          %p824 = pneg %p217
        $region54: #{hdp_cluster_em_forward.3} parent=43 // pred_check_branch
          %826 = sbr.rel (%p824) target = $region56
        $region55: #{hdp_cluster_em_forward.3} parent=43 // pred_region
          _
        $region56: #{hdp_cluster_em_forward.3} parent=43 // pred_fallthru
          _
        // Predicated region
        $region57: #{hdp_cluster_em_forward.3} parent=43 // pred_check
          %p827 = pneg %p243
        $region58: #{hdp_cluster_em_forward.3} parent=43 // pred_check_branch
          %829 = sbr.rel (%p827) target = $region60
        $region59: #{hdp_cluster_em_forward.3} parent=43 // pred_region
          _
        $region60: #{hdp_cluster_em_forward.3} parent=43 // pred_fallthru
          _
        // Predicated region
        $region61: #{hdp_cluster_em_forward.3} parent=43 // pred_check
          %p830 = pneg %p269
        $region62: #{hdp_cluster_em_forward.3} parent=43 // pred_check_branch
          %832 = sbr.rel (%p830) target = $region64
        $region63: #{hdp_cluster_em_forward.3} parent=43 // pred_region
          _
        $region64: #{hdp_cluster_em_forward.3} parent=43 // pred_fallthru
          _
        // Predicated region
        $region65: #{hdp_cluster_em_forward.3} parent=43 // pred_check
          %p833 = pneg %p295
        $region66: #{hdp_cluster_em_forward.3} parent=43 // pred_check_branch
          %835 = sbr.rel (%p833) target = $region68
        $region67: #{hdp_cluster_em_forward.3} parent=43 // pred_region
          %837 = vsyncadd %s814, 0
          %s838 = scalar_lea.hbm %s10, %s27
          %s840 = sshll.u32 %s816, 4
          %s841 = int_to_ptr.vmem [resolvable:$true] %s840
          %s842 = sshll.u32 %s838, 4
          %s843 = int_to_ptr.hbm [resolvable:$true] %s842
          %845 = dma.vmem_to_hbm [thread:$0]  %s841, 16, %s843, %s814
        $region68: #{hdp_cluster_em_forward.3} parent=43 // pred_fallthru
          _
        // Predicated region
        $region69: #{hdp_cluster_em_forward.3} parent=43 // pred_check
          %p846 = pneg %p321
        $region70: #{hdp_cluster_em_forward.3} parent=43 // pred_check_branch
          %848 = sbr.rel (%p846) target = $region72
        $region71: #{hdp_cluster_em_forward.3} parent=43 // pred_region
          _
        $region72: #{hdp_cluster_em_forward.3} parent=43 // pred_fallthru
          _
      $region44: #{hdp_cluster_em_forward.3} parent=5 // pred_fallthru
        _
      %p849 = scmp.le.s32.totalorder 2, %s22
      // Predicated region
      $region73: #{hdp_cluster_em_forward.3} parent=5 // pred_check
        %p850 = pneg %p849
      $region74: #{hdp_cluster_em_forward.3} parent=5 // pred_check_branch
        %852 = sbr.rel (%p850) target = $region76
      $region75: #{hdp_cluster_em_forward.3} parent=5 // pred_region
        %s853 = ssub.s32 %s22, 2
        // Predicated region
        $region77: #{hdp_cluster_em_forward.3} parent=75 // pred_check
          %p854 = pneg %p197
        $region78: #{hdp_cluster_em_forward.3} parent=75 // pred_check_branch
          %856 = sbr.rel (%p854) target = $region80
        $region79: #{hdp_cluster_em_forward.3} parent=75 // pred_region
          %p857 = scmp.lt.s32.totalorder %s28, 2
          %s858 = scalar_select %p857, %s28, 2
          %s859 = smul.addr %s858, 8
          %s860 = scalar_lea.vmem %s6, %s859
        $region80: #{hdp_cluster_em_forward.3} parent=75 // pred_fallthru
          _
        // Predicated region
        $region81: #{hdp_cluster_em_forward.3} parent=75 // pred_check
          %p861 = pneg %p223
        $region82: #{hdp_cluster_em_forward.3} parent=75 // pred_check_branch
          %863 = sbr.rel (%p861) target = $region84
        $region83: #{hdp_cluster_em_forward.3} parent=75 // pred_region
          %p864 = scmp.lt.s32.totalorder %s28, 2
          %s865 = scalar_select %p864, %s28, 2
          %s866 = smul.addr %s865, 8
          %s867 = scalar_lea.vmem %s7, %s866
        $region84: #{hdp_cluster_em_forward.3} parent=75 // pred_fallthru
          _
        // Predicated region
        $region85: #{hdp_cluster_em_forward.3} parent=75 // pred_check
          %p868 = pneg %p249
        $region86: #{hdp_cluster_em_forward.3} parent=75 // pred_check_branch
          %870 = sbr.rel (%p868) target = $region88
        $region87: #{hdp_cluster_em_forward.3} parent=75 // pred_region
          %p871 = scmp.lt.s32.totalorder %s28, 2
          %s872 = scalar_select %p871, %s28, 2
          %s873 = smul.addr %s872, 8
          %s874 = scalar_lea.vmem %s8, %s873
        $region88: #{hdp_cluster_em_forward.3} parent=75 // pred_fallthru
          _
        // Predicated region
        $region89: #{hdp_cluster_em_forward.3} parent=75 // pred_check
          %p875 = pneg %p275
        $region90: #{hdp_cluster_em_forward.3} parent=75 // pred_check_branch
          %877 = sbr.rel (%p875) target = $region92
        $region91: #{hdp_cluster_em_forward.3} parent=75 // pred_region
          %p878 = scmp.lt.s32.totalorder %s28, 2
          %s879 = scalar_select %p878, %s28, 2
          %s880 = scalar_lea.vmem %s9, %s879
        $region92: #{hdp_cluster_em_forward.3} parent=75 // pred_fallthru
          _
        // Predicated region
        $region93: #{hdp_cluster_em_forward.3} parent=75 // pred_check
          %p881 = pneg %p301
        $region94: #{hdp_cluster_em_forward.3} parent=75 // pred_check_branch
          %883 = sbr.rel (%p881) target = $region96
        $region95: #{hdp_cluster_em_forward.3} parent=75 // pred_region
          %s884 = sand.u32 %s286, 1
          %s885 = scalar_lea.sflag [#allocation3], %s884
          %s886 = sand.u32 %s286, 1
          %s887 = scalar_lea.vmem [#allocation5], %s886
          %889 = dma.done %s885, 16
        $region96: #{hdp_cluster_em_forward.3} parent=75 // pred_fallthru
          _
        // Predicated region
        $region97: #{hdp_cluster_em_forward.3} parent=75 // pred_check
          %p890 = pneg %p327
        $region98: #{hdp_cluster_em_forward.3} parent=75 // pred_check_branch
          %892 = sbr.rel (%p890) target = $region100
        $region99: #{hdp_cluster_em_forward.3} parent=75 // pred_region
          %p893 = scmp.lt.s32.totalorder %s28, 2
          %s894 = scalar_select %p893, %s28, 2
          %s895 = smul.addr %s894, 8
          %s896 = scalar_lea.vmem %s11, %s895
        $region100: #{hdp_cluster_em_forward.3} parent=75 // pred_fallthru
          _
      $region76: #{hdp_cluster_em_forward.3} parent=5 // pred_fallthru
        _
    $region6: #{hdp_cluster_em_forward.3} parent=1 // loop_footer
      %s26 = sadd.s32 1, %s22
    $region7: #{hdp_cluster_em_forward.3} parent=1 // loop_footer_branch
      %21 = sbr.rel target = $region3
    $region8: #{hdp_cluster_em_forward.3} parent=1 // loop_exit
      _
    %897 = vsyncpa [#allocation3], 1
    %s898 = scalar_lea.sflag [#allocation3], 1
    %899 = vsyncpa %s898, 1
    %900 = vsyncpa [#allocation4], 1
    %s901 = scalar_lea.sflag [#allocation4], 1
    %902 = vsyncpa %s901, 1

// kernel: hdp_cluster_em_forward.4
$region0: #{hdp_cluster_em_forward.4}
  #allocation0 [shape = 'u32[]', space=smem, size = 0x4, offset = 0x4, fixed_abs, tag = 'smem constant byte address 0x4 - core index']
  #allocation1 [shape = 'u32[72,128]{1,0:T(1,128)}', space=vmem, size = 0x9000, scoped, tag = 'internal scratch']
  %s0 = inlined_call_operand.vmem [shape: f32[3], index: 0, kind: input, shape index: {}]
  %s1 = inlined_call_operand.vmem [shape: f32[16,128], index: 1, kind: input, shape index: {}]
  %s2 = inlined_call_operand.vmem [shape: f32[3,8,128], index: 2, kind: input, shape index: {}]
  %s3 = inlined_call_operand.vmem [shape: f32[3,8,128], index: 3, kind: input, shape index: {}]
  %s4 = inlined_call_operand.vmem [shape: f32[3,8,16], index: 4, kind: input, shape index: {}]
  %s5 = inlined_call_operand.vmem [shape: f32[3,8,16], index: 5, kind: input, shape index: {}]
  %s6 = inlined_call_operand.hbm [shape: f32[3,8,16], index: 6, kind: output, shape index: {0}]
  %s7 = inlined_call_operand.vmem [shape: f32[3,8,128], index: 7, kind: output, shape index: {1}]
  %s8 = inlined_call_operand.vmem [shape: f32[3,8,128], index: 8, kind: output, shape index: {2}]
  %s9 = inlined_call_operand.vmem [shape: f32[3,1,16], index: 9, kind: output, shape index: {3}]
  %s10 = inlined_call_operand.hbm [shape: f32[3,1,1], index: 10, kind: output, shape index: {4}]
  %s11 = inlined_call_operand.vmem [shape: f32[3,8,1], index: 11, kind: output, shape index: {5}]
  %12 = xla_tuple %s6, %s7, %s8, %s9, %s10, %s11
  %s13 = sld [smem:[#allocation0]]
  $region101: #{hdp_cluster_em_forward.4} parent=0
    _
  %s15 = ssub.s32 1, %s13
  %s16 = scalar_select 0, %s15, %s13
  $region1: #{hdp_cluster_em_forward.4} parent=0
    #allocation2 [shape = 'u8[512]{0}', space=smem, size = 0x200, scoped, tag = 'input window, operand 0, single buffered']
    #allocation3 [shape = 's32[2]{0}', space=sflag, size = 0x8, scoped, tag = 'scoped memory for hdp_cluster_em_forward.4']
    #allocation4 [shape = 's32[2]{0}', space=sflag, size = 0x8, scoped, tag = 'scoped memory for hdp_cluster_em_forward.4']
    #allocation5 [shape = 'u8[8192]{0}', space=vmem, size = 0x2000, scoped, tag = 'output window, operand 0']
    #allocation6 [shape = 'u8[1024]{0}', space=vmem, size = 0x400, scoped, tag = 'output window, operand 4']
    #allocation7 [shape = 's32[2]{0}', space=sflag, size = 0x8, scoped, tag = 'scoped memory for hdp_cluster_em_forward.4']
    %17 = vsyncpa [#allocation4], 0
    %18 = vsyncpa [#allocation3], 0
    %s19 = scalar_lea.sflag [#allocation3], 1
    %20 = vsyncpa %s19, 0
    %21 = vsyncpa [#allocation7], 0
    %s22 = scalar_lea.sflag [#allocation7], 1
    %23 = vsyncpa %s22, 0
    loop: start=0, step=1, limit=5
    $region2: #{hdp_cluster_em_forward.4} parent=1 // loop_pre_header
      _
    $region3: #{hdp_cluster_em_forward.4} parent=1 // loop_header
      %s25 = sphi 0, %s29
      %p26 = scmp.ge.s32.totalorder %s25, 5
      %s33 = sphi 0, %s33
      %s35 = sphi 0, %s33
      %s36 = sphi 0, %s35
      %s50 = sphi 0, %s36
      %s54 = sphi 0, %s54
      %s56 = sphi 0, %s54
      %s57 = sphi 0, %s56
      %s71 = sphi 0, %s57
      %s77 = sphi 0, %s79
      %s80 = sphi 0, %s77
      %s81 = sphi 0, %s80
      %s97 = sphi 0, %s81
      %s103 = sphi 0, %s105
      %s106 = sphi 0, %s103
      %s107 = sphi 0, %s106
      %s123 = sphi 0, %s107
      %s129 = sphi 0, %s131
      %s132 = sphi 0, %s129
      %s133 = sphi 0, %s132
      %s149 = sphi 0, %s133
      %s155 = sphi 0, %s157
      %s158 = sphi 0, %s155
      %s159 = sphi 0, %s158
      %s175 = sphi 0, %s159
      %s181 = sphi 0, %s183
      %s184 = sphi 0, %s181
      %s185 = sphi 0, %s184
      %s201 = sphi 0, %s185
      %s207 = sphi 0, %s209
      %s210 = sphi 0, %s207
      %s211 = sphi 0, %s210
      %s227 = sphi 0, %s211
      %s233 = sphi 0, %s235
      %s236 = sphi 0, %s233
      %s237 = sphi 0, %s236
      %s253 = sphi 0, %s237
      %s259 = sphi 0, %s261
      %s262 = sphi 0, %s259
      %s263 = sphi 0, %s262
      %s279 = sphi 0, %s263
      %s285 = sphi 0, %s287
      %s288 = sphi 0, %s285
      %s289 = sphi 0, %s288
      %s305 = sphi 0, %s289
      %s311 = sphi 0, %s313
      %s314 = sphi 0, %s311
      %s315 = sphi 0, %s314
      %s331 = sphi 0, %s315
    $region4: #{hdp_cluster_em_forward.4} parent=1 // loop_header_branch
      %28 = sbr.rel (%p26) target = $region8
    $region5: #{hdp_cluster_em_forward.4} parent=1 // loop_body
      %s30 = ssub.s32 %s25, 1
      %s31 = ssub.s32 %s25, 2
      %s32 = sadd.s32 %s25, 1
      %s34 = sadd.s32 %s33, 1
      %p37 = scmp.eq.s32.totalorder %s25, 2
      %p38 = scmp.ne.s32.totalorder %s33, %s35
      %p39 = scmp.eq.s32.totalorder %s25, 0
      %p40 = por %p38, %p39
      %p41 = scmp.ne.s32.totalorder %s33, %s35
      %p42 = scmp.eq.s32.totalorder %s30, 2
      %p43 = por %p41, %p42
      %p44 = scmp.ne.s32.totalorder %s35, %s36
      %p45 = scmp.eq.s32.totalorder %s30, 0
      %p46 = por %p44, %p45
      %p47 = scmp.ne.s32.totalorder %s35, %s36
      %p48 = scmp.eq.s32.totalorder %s31, 2
      %p49 = por %p47, %p48
      %p51 = scmp.ne.s32.totalorder %s36, %s50
      %p52 = scmp.eq.s32.totalorder %s31, 0
      %p53 = por %p51, %p52
      %s55 = sadd.s32 %s54, 1
      %p58 = scmp.eq.s32.totalorder %s25, 2
      %p59 = scmp.ne.s32.totalorder %s54, %s56
      %p60 = scmp.eq.s32.totalorder %s25, 0
      %p61 = por %p59, %p60
      %p62 = scmp.ne.s32.totalorder %s54, %s56
      %p63 = scmp.eq.s32.totalorder %s30, 2
      %p64 = por %p62, %p63
      %p65 = scmp.ne.s32.totalorder %s56, %s57
      %p66 = scmp.eq.s32.totalorder %s30, 0
      %p67 = por %p65, %p66
      %p68 = scmp.ne.s32.totalorder %s56, %s57
      %p69 = scmp.eq.s32.totalorder %s31, 2
      %p70 = por %p68, %p69
      %p72 = scmp.ne.s32.totalorder %s57, %s71
      %p73 = scmp.eq.s32.totalorder %s31, 0
      %p74 = por %p72, %p73
      %s75 = ssub.s32 %s25, %s32
      %p76 = scmp.eq.s32.totalorder %s75, 0
      %s78 = sadd.s32 %s77, 1
      %s79 = scalar_select %p76, %s77, %s78
      %p82 = pneg %p76
      %p83 = scmp.eq.s32.totalorder %s25, 2
      %p84 = por %p82, %p83
      %p85 = scmp.ne.s32.totalorder %s77, %s80
      %p86 = scmp.eq.s32.totalorder %s25, 0
      %p87 = por %p85, %p86
      %p88 = scmp.ne.s32.totalorder %s77, %s80
      %p89 = scmp.eq.s32.totalorder %s30, 2
      %p90 = por %p88, %p89
      %p91 = scmp.ne.s32.totalorder %s80, %s81
      %p92 = scmp.eq.s32.totalorder %s30, 0
      %p93 = por %p91, %p92
      %p94 = scmp.ne.s32.totalorder %s80, %s81
      %p95 = scmp.eq.s32.totalorder %s31, 2
      %p96 = por %p94, %p95
      %p98 = scmp.ne.s32.totalorder %s81, %s97
      %p99 = scmp.eq.s32.totalorder %s31, 0
      %p100 = por %p98, %p99
      %s101 = ssub.s32 %s25, %s32
      %p102 = scmp.eq.s32.totalorder %s101, 0
      %s104 = sadd.s32 %s103, 1
      %s105 = scalar_select %p102, %s103, %s104
      %p108 = pneg %p102
      %p109 = scmp.eq.s32.totalorder %s25, 2
      %p110 = por %p108, %p109
      %p111 = scmp.ne.s32.totalorder %s103, %s106
      %p112 = scmp.eq.s32.totalorder %s25, 0
      %p113 = por %p111, %p112
      %p114 = scmp.ne.s32.totalorder %s103, %s106
      %p115 = scmp.eq.s32.totalorder %s30, 2
      %p116 = por %p114, %p115
      %p117 = scmp.ne.s32.totalorder %s106, %s107
      %p118 = scmp.eq.s32.totalorder %s30, 0
      %p119 = por %p117, %p118
      %p120 = scmp.ne.s32.totalorder %s106, %s107
      %p121 = scmp.eq.s32.totalorder %s31, 2
      %p122 = por %p120, %p121
      %p124 = scmp.ne.s32.totalorder %s107, %s123
      %p125 = scmp.eq.s32.totalorder %s31, 0
      %p126 = por %p124, %p125
      %s127 = ssub.s32 %s25, %s32
      %p128 = scmp.eq.s32.totalorder %s127, 0
      %s130 = sadd.s32 %s129, 1
      %s131 = scalar_select %p128, %s129, %s130
      %p134 = pneg %p128
      %p135 = scmp.eq.s32.totalorder %s25, 2
      %p136 = por %p134, %p135
      %p137 = scmp.ne.s32.totalorder %s129, %s132
      %p138 = scmp.eq.s32.totalorder %s25, 0
      %p139 = por %p137, %p138
      %p140 = scmp.ne.s32.totalorder %s129, %s132
      %p141 = scmp.eq.s32.totalorder %s30, 2
      %p142 = por %p140, %p141
      %p143 = scmp.ne.s32.totalorder %s132, %s133
      %p144 = scmp.eq.s32.totalorder %s30, 0
      %p145 = por %p143, %p144
      %p146 = scmp.ne.s32.totalorder %s132, %s133
      %p147 = scmp.eq.s32.totalorder %s31, 2
      %p148 = por %p146, %p147
      %p150 = scmp.ne.s32.totalorder %s133, %s149
      %p151 = scmp.eq.s32.totalorder %s31, 0
      %p152 = por %p150, %p151
      %s153 = ssub.s32 %s25, %s32
      %p154 = scmp.eq.s32.totalorder %s153, 0
      %s156 = sadd.s32 %s155, 1
      %s157 = scalar_select %p154, %s155, %s156
      %p160 = pneg %p154
      %p161 = scmp.eq.s32.totalorder %s25, 2
      %p162 = por %p160, %p161
      %p163 = scmp.ne.s32.totalorder %s155, %s158
      %p164 = scmp.eq.s32.totalorder %s25, 0
      %p165 = por %p163, %p164
      %p166 = scmp.ne.s32.totalorder %s155, %s158
      %p167 = scmp.eq.s32.totalorder %s30, 2
      %p168 = por %p166, %p167
      %p169 = scmp.ne.s32.totalorder %s158, %s159
      %p170 = scmp.eq.s32.totalorder %s30, 0
      %p171 = por %p169, %p170
      %p172 = scmp.ne.s32.totalorder %s158, %s159
      %p173 = scmp.eq.s32.totalorder %s31, 2
      %p174 = por %p172, %p173
      %p176 = scmp.ne.s32.totalorder %s159, %s175
      %p177 = scmp.eq.s32.totalorder %s31, 0
      %p178 = por %p176, %p177
      %s179 = ssub.s32 %s25, %s32
      %p180 = scmp.eq.s32.totalorder %s179, 0
      %s182 = sadd.s32 %s181, 1
      %s183 = scalar_select %p180, %s181, %s182
      %p186 = pneg %p180
      %p187 = scmp.eq.s32.totalorder %s25, 2
      %p188 = por %p186, %p187
      %p189 = scmp.ne.s32.totalorder %s181, %s184
      %p190 = scmp.eq.s32.totalorder %s25, 0
      %p191 = por %p189, %p190
      %p192 = scmp.ne.s32.totalorder %s181, %s184
      %p193 = scmp.eq.s32.totalorder %s30, 2
      %p194 = por %p192, %p193
      %p195 = scmp.ne.s32.totalorder %s184, %s185
      %p196 = scmp.eq.s32.totalorder %s30, 0
      %p197 = por %p195, %p196
      %p198 = scmp.ne.s32.totalorder %s184, %s185
      %p199 = scmp.eq.s32.totalorder %s31, 2
      %p200 = por %p198, %p199
      %p202 = scmp.ne.s32.totalorder %s185, %s201
      %p203 = scmp.eq.s32.totalorder %s31, 0
      %p204 = por %p202, %p203
      %s205 = ssub.s32 %s25, %s32
      %p206 = scmp.eq.s32.totalorder %s205, 0
      %s208 = sadd.s32 %s207, 1
      %s209 = scalar_select %p206, %s207, %s208
      %p212 = pneg %p206
      %p213 = scmp.eq.s32.totalorder %s25, 2
      %p214 = por %p212, %p213
      %p215 = scmp.ne.s32.totalorder %s207, %s210
      %p216 = scmp.eq.s32.totalorder %s25, 0
      %p217 = por %p215, %p216
      %p218 = scmp.ne.s32.totalorder %s207, %s210
      %p219 = scmp.eq.s32.totalorder %s30, 2
      %p220 = por %p218, %p219
      %p221 = scmp.ne.s32.totalorder %s210, %s211
      %p222 = scmp.eq.s32.totalorder %s30, 0
      %p223 = por %p221, %p222
      %p224 = scmp.ne.s32.totalorder %s210, %s211
      %p225 = scmp.eq.s32.totalorder %s31, 2
      %p226 = por %p224, %p225
      %p228 = scmp.ne.s32.totalorder %s211, %s227
      %p229 = scmp.eq.s32.totalorder %s31, 0
      %p230 = por %p228, %p229
      %s231 = ssub.s32 %s25, %s32
      %p232 = scmp.eq.s32.totalorder %s231, 0
      %s234 = sadd.s32 %s233, 1
      %s235 = scalar_select %p232, %s233, %s234
      %p238 = pneg %p232
      %p239 = scmp.eq.s32.totalorder %s25, 2
      %p240 = por %p238, %p239
      %p241 = scmp.ne.s32.totalorder %s233, %s236
      %p242 = scmp.eq.s32.totalorder %s25, 0
      %p243 = por %p241, %p242
      %p244 = scmp.ne.s32.totalorder %s233, %s236
      %p245 = scmp.eq.s32.totalorder %s30, 2
      %p246 = por %p244, %p245
      %p247 = scmp.ne.s32.totalorder %s236, %s237
      %p248 = scmp.eq.s32.totalorder %s30, 0
      %p249 = por %p247, %p248
      %p250 = scmp.ne.s32.totalorder %s236, %s237
      %p251 = scmp.eq.s32.totalorder %s31, 2
      %p252 = por %p250, %p251
      %p254 = scmp.ne.s32.totalorder %s237, %s253
      %p255 = scmp.eq.s32.totalorder %s31, 0
      %p256 = por %p254, %p255
      %s257 = ssub.s32 %s25, %s32
      %p258 = scmp.eq.s32.totalorder %s257, 0
      %s260 = sadd.s32 %s259, 1
      %s261 = scalar_select %p258, %s259, %s260
      %p264 = pneg %p258
      %p265 = scmp.eq.s32.totalorder %s25, 2
      %p266 = por %p264, %p265
      %p267 = scmp.ne.s32.totalorder %s259, %s262
      %p268 = scmp.eq.s32.totalorder %s25, 0
      %p269 = por %p267, %p268
      %p270 = scmp.ne.s32.totalorder %s259, %s262
      %p271 = scmp.eq.s32.totalorder %s30, 2
      %p272 = por %p270, %p271
      %p273 = scmp.ne.s32.totalorder %s262, %s263
      %p274 = scmp.eq.s32.totalorder %s30, 0
      %p275 = por %p273, %p274
      %p276 = scmp.ne.s32.totalorder %s262, %s263
      %p277 = scmp.eq.s32.totalorder %s31, 2
      %p278 = por %p276, %p277
      %p280 = scmp.ne.s32.totalorder %s263, %s279
      %p281 = scmp.eq.s32.totalorder %s31, 0
      %p282 = por %p280, %p281
      %s283 = ssub.s32 %s25, %s32
      %p284 = scmp.eq.s32.totalorder %s283, 0
      %s286 = sadd.s32 %s285, 1
      %s287 = scalar_select %p284, %s285, %s286
      %p290 = pneg %p284
      %p291 = scmp.eq.s32.totalorder %s25, 2
      %p292 = por %p290, %p291
      %p293 = scmp.ne.s32.totalorder %s285, %s288
      %p294 = scmp.eq.s32.totalorder %s25, 0
      %p295 = por %p293, %p294
      %p296 = scmp.ne.s32.totalorder %s285, %s288
      %p297 = scmp.eq.s32.totalorder %s30, 2
      %p298 = por %p296, %p297
      %p299 = scmp.ne.s32.totalorder %s288, %s289
      %p300 = scmp.eq.s32.totalorder %s30, 0
      %p301 = por %p299, %p300
      %p302 = scmp.ne.s32.totalorder %s288, %s289
      %p303 = scmp.eq.s32.totalorder %s31, 2
      %p304 = por %p302, %p303
      %p306 = scmp.ne.s32.totalorder %s289, %s305
      %p307 = scmp.eq.s32.totalorder %s31, 0
      %p308 = por %p306, %p307
      %s309 = ssub.s32 %s25, %s32
      %p310 = scmp.eq.s32.totalorder %s309, 0
      %s312 = sadd.s32 %s311, 1
      %s313 = scalar_select %p310, %s311, %s312
      %p316 = pneg %p310
      %p317 = scmp.eq.s32.totalorder %s25, 2
      %p318 = por %p316, %p317
      %p319 = scmp.ne.s32.totalorder %s311, %s314
      %p320 = scmp.eq.s32.totalorder %s25, 0
      %p321 = por %p319, %p320
      %p322 = scmp.ne.s32.totalorder %s311, %s314
      %p323 = scmp.eq.s32.totalorder %s30, 2
      %p324 = por %p322, %p323
      %p325 = scmp.ne.s32.totalorder %s314, %s315
      %p326 = scmp.eq.s32.totalorder %s30, 0
      %p327 = por %p325, %p326
      %p328 = scmp.ne.s32.totalorder %s314, %s315
      %p329 = scmp.eq.s32.totalorder %s31, 2
      %p330 = por %p328, %p329
      %p332 = scmp.ne.s32.totalorder %s315, %s331
      %p333 = scmp.eq.s32.totalorder %s31, 0
      %p334 = por %p332, %p333
      %p335 = scmp.le.s32.totalorder 1, %s25
      %p336 = scmp.lt.s32.totalorder %s25, 4
      %p337 = pnand %p335, %p336
      %p338 = pneg %p337
      // Predicated region
      $region9: #{hdp_cluster_em_forward.4} parent=5 // pred_check
        _
      $region10: #{hdp_cluster_em_forward.4} parent=5 // pred_check_branch
        %340 = sbr.rel (%p337) target = $region12
      $region11: #{hdp_cluster_em_forward.4} parent=5 // pred_region
        %s341 = ssub.s32 %s25, 1
        // Predicated region
        $region13: #{hdp_cluster_em_forward.4} parent=11 // pred_check
          %p342 = pneg %p46
        $region14: #{hdp_cluster_em_forward.4} parent=11 // pred_check_branch
          %344 = sbr.rel (%p342) target = $region16
        $region15: #{hdp_cluster_em_forward.4} parent=11 // pred_region
          %346 = vsyncadd [#allocation4], 0
          %s348 = sshll.u32 %s0, 4
          %s349 = int_to_ptr.vmem [resolvable:$true] %s348
          %351 = dma.vmem_to_smem %s349, 16, [#allocation2], [#allocation4]
        $region16: #{hdp_cluster_em_forward.4} parent=11 // pred_fallthru
          _
        // Predicated region
        $region17: #{hdp_cluster_em_forward.4} parent=11 // pred_check
          %p352 = pneg %p67
        $region18: #{hdp_cluster_em_forward.4} parent=11 // pred_check_branch
          %354 = sbr.rel (%p352) target = $region20
        $region19: #{hdp_cluster_em_forward.4} parent=11 // pred_region
          _
        $region20: #{hdp_cluster_em_forward.4} parent=11 // pred_fallthru
          _
      $region12: #{hdp_cluster_em_forward.4} parent=5 // pred_fallthru
        _
      %p355 = scmp.lt.s32.totalorder %s25, 3
      // Predicated region
      $region21: #{hdp_cluster_em_forward.4} parent=5 // pred_check
        %p356 = pneg %p355
      $region22: #{hdp_cluster_em_forward.4} parent=5 // pred_check_branch
        %358 = sbr.rel (%p356) target = $region24
      $region23: #{hdp_cluster_em_forward.4} parent=5 // pred_region
        // Predicated region
        $region25: #{hdp_cluster_em_forward.4} parent=23 // pred_check
          %p359 = pneg %p87
        $region26: #{hdp_cluster_em_forward.4} parent=23 // pred_check_branch
          %361 = sbr.rel (%p359) target = $region28
        $region27: #{hdp_cluster_em_forward.4} parent=23 // pred_region
          %p362 = scmp.lt.s32.totalorder %s25, 2
          %s363 = scalar_select %p362, %s25, 2
          %s364 = smul.addr %s363, 8
          %s365 = scalar_lea.vmem %s2, %s364
        $region28: #{hdp_cluster_em_forward.4} parent=23 // pred_fallthru
          _
        // Predicated region
        $region29: #{hdp_cluster_em_forward.4} parent=23 // pred_check
          %p366 = pneg %p113
        $region30: #{hdp_cluster_em_forward.4} parent=23 // pred_check_branch
          %368 = sbr.rel (%p366) target = $region32
        $region31: #{hdp_cluster_em_forward.4} parent=23 // pred_region
          %p369 = scmp.lt.s32.totalorder %s25, 2
          %s370 = scalar_select %p369, %s25, 2
          %s371 = smul.addr %s370, 8
          %s372 = scalar_lea.vmem %s3, %s371
        $region32: #{hdp_cluster_em_forward.4} parent=23 // pred_fallthru
          _
        // Predicated region
        $region33: #{hdp_cluster_em_forward.4} parent=23 // pred_check
          %p373 = pneg %p139
        $region34: #{hdp_cluster_em_forward.4} parent=23 // pred_check_branch
          %375 = sbr.rel (%p373) target = $region36
        $region35: #{hdp_cluster_em_forward.4} parent=23 // pred_region
          %p376 = scmp.lt.s32.totalorder %s25, 2
          %s377 = scalar_select %p376, %s25, 2
          %s378 = smul.addr %s377, 8
          %s379 = scalar_lea.vmem %s4, %s378
        $region36: #{hdp_cluster_em_forward.4} parent=23 // pred_fallthru
          _
        // Predicated region
        $region37: #{hdp_cluster_em_forward.4} parent=23 // pred_check
          %p380 = pneg %p165
        $region38: #{hdp_cluster_em_forward.4} parent=23 // pred_check_branch
          %382 = sbr.rel (%p380) target = $region40
        $region39: #{hdp_cluster_em_forward.4} parent=23 // pred_region
          %p383 = scmp.lt.s32.totalorder %s25, 2
          %s384 = scalar_select %p383, %s25, 2
          %s385 = smul.addr %s384, 8
          %s386 = scalar_lea.vmem %s5, %s385
        $region40: #{hdp_cluster_em_forward.4} parent=23 // pred_fallthru
          _
      $region24: #{hdp_cluster_em_forward.4} parent=5 // pred_fallthru
        _
      %p387 = scmp.le.s32.totalorder 1, %s25
      %p388 = scmp.lt.s32.totalorder %s25, 4
      %p389 = pnand %p387, %p388
      %p390 = pneg %p389
      // Predicated region
      $region41: #{hdp_cluster_em_forward.4} parent=5 // pred_check
        _
      $region42: #{hdp_cluster_em_forward.4} parent=5 // pred_check_branch
        %392 = sbr.rel (%p389) target = $region44
      $region43: #{hdp_cluster_em_forward.4} parent=5 // pred_region
        %s393 = ssub.s32 %s25, 1
        // Predicated region
        $region45: #{hdp_cluster_em_forward.4} parent=43 // pred_check
          %p394 = pneg %p46
        $region46: #{hdp_cluster_em_forward.4} parent=43 // pred_check_branch
          %396 = sbr.rel (%p394) target = $region48
        $region47: #{hdp_cluster_em_forward.4} parent=43 // pred_region
          %398 = dma.done [#allocation4], 16
        $region48: #{hdp_cluster_em_forward.4} parent=43 // pred_fallthru
          _
        %399 = sfence
        %p400 = pneg %p46
        %p401 = pneg %p43
        %p402 = pneg %p67
        %p403 = pneg %p64
        %p404 = scmp.lt.s32.totalorder %s30, 2
        %s405 = scalar_select %p404, %s30, 2
        %s406 = smul.addr %s405, 8
        %s407 = scalar_lea.vmem %s2, %s406
        %p408 = pneg %p93
        %p409 = pneg %p90
        %p410 = scmp.lt.s32.totalorder %s30, 2
        %s411 = scalar_select %p410, %s30, 2
        %s412 = smul.addr %s411, 8
        %s413 = scalar_lea.vmem %s3, %s412
        %p414 = pneg %p119
        %p415 = pneg %p116
        %p416 = scmp.lt.s32.totalorder %s30, 2
        %s417 = scalar_select %p416, %s30, 2
        %s418 = smul.addr %s417, 8
        %s419 = scalar_lea.vmem %s4, %s418
        %p420 = pneg %p145
        %p421 = pneg %p142
        %p422 = scmp.lt.s32.totalorder %s30, 2
        %s423 = scalar_select %p422, %s30, 2
        %s424 = smul.addr %s423, 8
        %s425 = scalar_lea.vmem %s5, %s424
        %p426 = pneg %p171
        %p427 = pneg %p168
        %p428 = pneg %p197
        %p429 = pneg %p194
        %s430 = sand.u32 %s184, 1
        %s431 = scalar_lea.sflag [#allocation3], %s430
        %s432 = sand.u32 %s184, 1
        %s433 = smul.addr %s432, 8
        %s434 = scalar_lea.vmem [#allocation5], %s433
        %p435 = pneg %p223
        %p436 = pneg %p220
        %p437 = scmp.lt.s32.totalorder %s30, 2
        %s438 = scalar_select %p437, %s30, 2
        %s439 = smul.addr %s438, 8
        %s440 = scalar_lea.vmem %s7, %s439
        %p441 = pneg %p249
        %p442 = pneg %p246
        %p443 = scmp.lt.s32.totalorder %s30, 2
        %s444 = scalar_select %p443, %s30, 2
        %s445 = smul.addr %s444, 8
        %s446 = scalar_lea.vmem %s8, %s445
        %p447 = pneg %p275
        %p448 = pneg %p272
        %p449 = scmp.lt.s32.totalorder %s30, 2
        %s450 = scalar_select %p449, %s30, 2
        %s451 = scalar_lea.vmem %s9, %s450
        %p452 = pneg %p301
        %p453 = pneg %p298
        %s454 = sand.u32 %s288, 1
        %s455 = scalar_lea.sflag [#allocation7], %s454
        %s456 = sand.u32 %s288, 1
        %s457 = scalar_lea.vmem [#allocation6], %s456
        %p458 = pneg %p327
        %p459 = pneg %p324
        %p460 = scmp.lt.s32.totalorder %s30, 2
        %s461 = scalar_select %p460, %s30, 2
        %s462 = smul.addr %s461, 8
        %s463 = scalar_lea.vmem %s11, %s462
        %p464 = scmp.lt.s32.totalorder %s30, 2
        %s465 = scalar_select %p464, %s30, 2
        %s466 = smul.addr %s465, 8
        %s467 = scalar_lea.vmem %s2, %s466
        %p468 = scmp.lt.s32.totalorder %s30, 2
        %s469 = scalar_select %p468, %s30, 2
        %s470 = smul.addr %s469, 8
        %s471 = scalar_lea.vmem %s3, %s470
        %p472 = scmp.lt.s32.totalorder %s30, 2
        %s473 = scalar_select %p472, %s30, 2
        %s474 = smul.addr %s473, 8
        %s475 = scalar_lea.vmem %s4, %s474
        %p476 = scmp.lt.s32.totalorder %s30, 2
        %s477 = scalar_select %p476, %s30, 2
        %s478 = smul.addr %s477, 8
        %s479 = scalar_lea.vmem %s5, %s478
        %p480 = scmp.lt.s32.totalorder %s30, 2
        %s481 = scalar_select %p480, %s30, 2
        %s482 = smul.addr %s481, 8
        %s483 = scalar_lea.vmem %s7, %s482
        %p484 = scmp.lt.s32.totalorder %s30, 2
        %s485 = scalar_select %p484, %s30, 2
        %s486 = smul.addr %s485, 8
        %s487 = scalar_lea.vmem %s8, %s486
        %p488 = scmp.lt.s32.totalorder %s30, 2
        %s489 = scalar_select %p488, %s30, 2
        %s490 = scalar_lea.vmem %s9, %s489
        %p491 = scmp.lt.s32.totalorder %s30, 2
        %s492 = scalar_select %p491, %s30, 2
        %s493 = smul.addr %s492, 8
        %s494 = scalar_lea.vmem %s11, %s493
        %v495 = vld [vmem:[%s1] sm:$0xff]
        %v496 = vld [vmem:[%s1 + $0x8] sm:$0xff]
        %v497 = vmul.f32 %v495, %v495
        %v498 = vmul.f32 %v496, %v496
        %v499 = vld [vmem:[%s467] sm:$0xff]
        %v500 = vld [vmem:[%s471] sm:$0xff]
        %v501 = vld [vmem:[%s475] sm:$0xff]
        %v502 = vld [vmem:[%s479] sm:$0xff]
        %v503 = vlog2.pop %v502
        %v504 = vmul.f32 %v503, 0.6931472
        %v505 = vmul.f32 %v500, 1.442695
        %v506 = vpow.pop %v505
        %v507 = vmul.f32 %v506, 2.0
        %v508 = vmul.f32 %v507, %v506
        %v509 = vrcp.pop %v508
        %v510 = vmul.f32 %v508, %v509
        %v511 = vsub.f32 1.0, %v510
        %v512 = vmul.f32 %v509, %v511
        %v513 = vadd.f32 %v509, %v512
        %vm514 = vweird.f32 %v508
        %vm515 = vweird.f32 %v509
        %vm516 = vmor %vm514, %vm515
        %v517 = vsel %vm516, %v509, %v513
        %v518 = vand.u32 2147483647, %v508
        %vm519 = vcmp.eq.f32.partialorder %v518, 8.507059e+37
        %v520 = vand.u32 %v508, 2147483648
        %v521 = vor.u32 1.1754944e-38, %v520
        %v522 = vsel %vm519, %v521, %v517
        %v523 = vmul.f32 1.0, %v522
        %524 = vmatpush.xpose.msra.mxu0 0.0
        %525 = vmatpush.xpose.msra.mxu0 0.0
        %526 = vmatpush.xpose.msra.mxu0 0.0
        %527 = vmatpush.xpose.msra.mxu0 0.0
        %528 = vmatpush.xpose.msra.mxu0 0.0
        %529 = vmatpush.xpose.msra.mxu0 0.0
        %530 = vmatpush.xpose.msra.mxu0 0.0
        %531 = vmatpush.xpose.msra.mxu0 0.0
        %532 = vmatpush.xpose.msra.mxu0 0.0
        %533 = vmatpush.xpose.msra.mxu0 0.0
        %534 = vmatpush.xpose.msra.mxu0 0.0
        %535 = vmatpush.xpose.msra.mxu0 0.0
        %536 = vmatpush.xpose.msra.mxu0 0.0
        %537 = vmatpush.xpose.msra.mxu0 0.0
        %538 = vmatpush.xpose.msra.mxu0 %v498
        %539 = vmatpush.xpose.msra.mxu0 %v497
        %540 = vmatmul.f32.gmra.mxu0 %v523
        %v541 = vpop.f32.mrf.mxu0
        %v542 = vadd.f32 0.0, %v541
        %543 = vdwg.mxu0
        %v544 = vmul.f32 %v499, %v523
        %545 = vmatpush.xpose.msra.mxu0 0.0
        %546 = vmatpush.xpose.msra.mxu0 0.0
        %547 = vmatpush.xpose.msra.mxu0 0.0
        %548 = vmatpush.xpose.msra.mxu0 0.0
        %549 = vmatpush.xpose.msra.mxu0 0.0
        %550 = vmatpush.xpose.msra.mxu0 0.0
        %551 = vmatpush.xpose.msra.mxu0 0.0
        %552 = vmatpush.xpose.msra.mxu0 0.0
        %553 = vmatpush.xpose.msra.mxu0 0.0
        %554 = vmatpush.xpose.msra.mxu0 0.0
        %555 = vmatpush.xpose.msra.mxu0 0.0
        %556 = vmatpush.xpose.msra.mxu0 0.0
        %557 = vmatpush.xpose.msra.mxu0 0.0
        %558 = vmatpush.xpose.msra.mxu0 0.0
        %559 = vmatpush.xpose.msra.mxu0 %v496
        %560 = vmatpush.xpose.msra.mxu0 %v495
        %561 = vmatmul.f32.gmra.mxu0 %v544
        %v562 = vpop.f32.mrf.mxu0
        %v563 = vadd.f32 0.0, %v562
        %564 = vdwg.mxu0
        %v565 = vmul.f32 %v563, 2.0
        %v566 = vsub.f32 %v542, %v565
        %v567 = vmul.f32 %v499, %v499
        %v568 = vmul.f32 %v567, %v523
        %v569 = vadd.f32 %v568, %v500
        %570 = vadd.xlane.f32.xlu0 %v569
        %v571 = vpop.xlane.xlu0 %570
        %v572 = vsub.f32 -117.62413, %v566
        %v573 = vsub.f32 %v572, %v571
        %574 = vadd.xlane.f32.xlu0 %v500
        %v575 = vpop.xlane.xlu0 %574
        %v576 = vadd.f32 %v575, 181.62413
        %v577 = vadd.f32 %v573, %v576
        %vm578 = vcmask 130048
        %v579 = vsel %vm578, %v577, inf
        %580 = vmin.xlane.f32.xlu0 %v579
        %v581 = vpop.xlane.xlu0 %580
        %v582 = vrot.slane %v581, 4
        %v583 = vmin.f32 %v581, %v582
        %v584 = vrot.slane %v583, 2
        %v585 = vmin.f32 %v583, %v584
        %v586 = vrot.slane %v585, 1
        %v587 = vmin.f32 %v585, %v586
        %s588 = vtos %v587
        %s589 = sld [smem:[#allocation2 + %s30]]
        %s590 = sadd.f32 %s588, %s589
        %v591 = vstv %s590
        %v592 = vrcp.pop %v591
        %v593 = vmul.f32 %v591, %v592
        %v594 = vsub.f32 1.0, %v593
        %v595 = vmul.f32 %v592, %v594
        %v596 = vadd.f32 %v592, %v595
        %vm597 = vweird.f32 %v591
        %vm598 = vweird.f32 %v592
        %vm599 = vmor %vm597, %vm598
        %v600 = vsel %vm599, %v592, %v596
        %v601 = vand.u32 2147483647, %v591
        %vm602 = vcmp.eq.f32.partialorder %v601, 8.507059e+37
        %v603 = vand.u32 %v591, 2147483648
        %v604 = vor.u32 1.1754944e-38, %v603
        %v605 = vsel %vm602, %v604, %v600
        %s606 = vtos %v605
        %s607 = smul.f32 %s589, %s606
        %v608 = vstv %s607
        %v609 = vmul.f32 %v608, %v577
        %s610 = ssub.f32 1.0, %s607
        %v611 = vstv %s610
        %v612 = vmul.f32 %v611, %v504
        %v613 = vadd.f32 %v609, %v612
        %v614 = vsel %vm578, %v613, -inf
        %v615 = vrot.slane %v614, 4
        %v616 = vmax.f32 %v614, %v615
        %v617 = vrot.slane %v616, 2
        %v618 = vmax.f32 %v616, %v617
        %v619 = vrot.slane %v618, 1
        %v620 = vmax.f32 %v618, %v619
        %v621 = vsub.f32 %v613, %v620
        %v622 = vmul.f32 %v621, 1.442695
        %v623 = vpow.pop %v622
        %v624 = vsel %vm578, %v623, 0.0
        %v625 = vrot.slane %v624, 4
        %v626 = vadd.f32 %v624, %v625
        %v627 = vrot.slane %v626, 2
        %v628 = vadd.f32 %v626, %v627
        %v629 = vrot.slane %v628, 1
        %v630 = vadd.f32 %v628, %v629
        %v631 = vrcp.pop %v630
        %v632 = vmul.f32 %v630, %v631
        %v633 = vsub.f32 1.0, %v632
        %v634 = vmul.f32 %v631, %v633
        %v635 = vadd.f32 %v631, %v634
        %vm636 = vweird.f32 %v630
        %vm637 = vweird.f32 %v631
        %vm638 = vmor %vm636, %vm637
        %v639 = vsel %vm638, %v631, %v635
        %v640 = vand.u32 2147483647, %v630
        %vm641 = vcmp.eq.f32.partialorder %v640, 8.507059e+37
        %v642 = vand.u32 %v630, 2147483648
        %v643 = vor.u32 1.1754944e-38, %v642
        %v644 = vsel %vm641, %v643, %v639
        %v645 = vmul.f32 %v623, %v644
        %646 = vst.msk [vmem:[%s434] sm:$0xff] %vm578, %v645
        %v647 = vlog2.pop %v645
        %v648 = vmul.f32 %v647, 0.6931472
        %v649 = vsel %vm578, %v648, 0.0
        %v650 = vrot.slane %v649, 4
        %v651 = vadd.f32 %v649, %v650
        %v652 = vrot.slane %v651, 2
        %v653 = vadd.f32 %v651, %v652
        %v654 = vrot.slane %v653, 1
        %v655 = vadd.f32 %v653, %v654
        %vm656 = vcmask 122880
        %657 = vst.msk [vmem:[%s490] sm:$0x1] %vm656, %v655
        %v658 = vmul.f32 %v645, %v609
        %v659 = vsel %vm578, %v658, 0.0
        %v660 = vrot.slane %v659, 4
        %v661 = vadd.f32 %v659, %v660
        %v662 = vrot.slane %v661, 2
        %v663 = vadd.f32 %v661, %v662
        %v664 = vrot.slane %v663, 1
        %v665 = vadd.f32 %v663, %v664
        %v666 = vsel %vm578, %v665, 0.0
        %667 = vadd.xlane.f32.xlu0 %v666
        %v668 = vpop.xlane.xlu0 %667
        %s669 = vtos %v668
        %v670 = vrcp.pop 16.0
        %v671 = vmul.f32 16.0, %v670
        %v672 = vsub.f32 1.0, %v671
        %v673 = vmul.f32 %v670, %v672
        %v674 = vadd.f32 %v670, %v673
        %vm675 = vweird.f32 %v670
        %v676 = vsel %vm675, %v670, %v674
        %s677 = vtos %v676
        %s678 = smul.f32 %s669, %s677
        %s679 = ssub.f32 0.0, %s678
        %v680 = vstv %s679
        %vm681 = vcmask 0
        %682 = vst.msk [vmem:[%s457] sm:$0x1] %vm681, %v680
        %v683 = vsel %vm578, %v501, 0.0
        %684 = vadd.xlane.f32.xlu0 %v683
        %v685 = vpop.xlane.xlu0 %684
        %vm686 = vcmask 7168
        %687 = vst.msk [vmem:[%s494] sm:$0xff] %vm686, %v685
        %v688 = vmax.f32 %v685, 1e-06
        %v689 = vsel %vm578, %v645, 0.0
        %690 = vadd.xlane.f32.xlu0 %v689
        %v691 = vpop.xlane.xlu0 %690
        %v692 = vmax.f32 %v691, 1e-06
        %v694 = vsel %vm578, %v645, 0
        %696 = vmatpush.msra.mxu0 0.0
        %697 = vmatpush.msra.mxu0 0.0
        %698 = vmatpush.msra.mxu0 0.0
        %699 = vmatpush.msra.mxu0 0.0
        %700 = vmatpush.msra.mxu0 0.0
        %701 = vmatpush.msra.mxu0 0.0
        %702 = vmatpush.msra.mxu0 0.0
        %703 = vmatpush.msra.mxu0 0.0
        %704 = vmatpush.msra.mxu0 0.0
        %705 = vmatpush.msra.mxu0 0.0
        %706 = vmatpush.msra.mxu0 0.0
        %707 = vmatpush.msra.mxu0 0.0
        %708 = vmatpush.msra.mxu0 0.0
        %709 = vmatpush.msra.mxu0 0.0
        %710 = vmatpush.msra.mxu0 %v496
        %711 = vmatpush.msra.mxu0 %v495
        %712 = vmatmul.f32.gmra.mxu0 %v694
        %v713 = vpop.f32.mrf.mxu0
        %v714 = vadd.f32 0.0, %v713
        %715 = vdwg.mxu0
        %v716 = vrcp.pop %v692
        %v717 = vmul.f32 %v692, %v716
        %v718 = vsub.f32 1.0, %v717
        %v719 = vmul.f32 %v716, %v718
        %v720 = vadd.f32 %v716, %v719
        %vm721 = vweird.f32 %v692
        %vm722 = vweird.f32 %v716
        %vm723 = vmor %vm721, %vm722
        %v724 = vsel %vm723, %v716, %v720
        %v725 = vand.u32 2147483647, %v692
        %vm726 = vcmp.eq.f32.partialorder %v725, 8.507059e+37
        %v727 = vand.u32 %v692, 2147483648
        %v728 = vor.u32 1.1754944e-38, %v727
        %v729 = vsel %vm726, %v728, %v724
        %v730 = vmul.f32 %v714, %v729
        %v731 = vadd.f32 %v692, %v688
        %v732 = vrcp.pop %v731
        %v733 = vmul.f32 %v731, %v732
        %v734 = vsub.f32 1.0, %v733
        %v735 = vmul.f32 %v732, %v734
        %v736 = vadd.f32 %v732, %v735
        %vm737 = vweird.f32 %v731
        %vm738 = vweird.f32 %v732
        %vm739 = vmor %vm737, %vm738
        %v740 = vsel %vm739, %v732, %v736
        %v741 = vand.u32 2147483647, %v731
        %vm742 = vcmp.eq.f32.partialorder %v741, 8.507059e+37
        %v743 = vand.u32 %v731, 2147483648
        %v744 = vor.u32 1.1754944e-38, %v743
        %v745 = vsel %vm742, %v744, %v740
        %v746 = vmul.f32 %v688, %v745
        %v747 = vmul.f32 %v746, %v499
        %v748 = vsub.f32 1.0, %v746
        %v749 = vmul.f32 %v748, %v730
        %v750 = vadd.f32 %v747, %v749
        %751 = vst [vmem:[%s483] sm:$0xff] %v750
        %752 = vmatpush.msra.mxu0 0.0
        %753 = vmatpush.msra.mxu0 0.0
        %754 = vmatpush.msra.mxu0 0.0
        %755 = vmatpush.msra.mxu0 0.0
        %756 = vmatpush.msra.mxu0 0.0
        %757 = vmatpush.msra.mxu0 0.0
        %758 = vmatpush.msra.mxu0 0.0
        %759 = vmatpush.msra.mxu0 0.0
        %760 = vmatpush.msra.mxu0 0.0
        %761 = vmatpush.msra.mxu0 0.0
        %762 = vmatpush.msra.mxu0 0.0
        %763 = vmatpush.msra.mxu0 0.0
        %764 = vmatpush.msra.mxu0 0.0
        %765 = vmatpush.msra.mxu0 0.0
        %766 = vmatpush.msra.mxu0 %v498
        %767 = vmatpush.msra.mxu0 %v497
        %768 = vmatmul.f32.gmra.mxu0 %v694
        %v769 = vpop.f32.mrf.mxu0
        %v770 = vadd.f32 0.0, %v769
        %771 = vdwg.mxu0
        %v772 = vmul.f32 %v750, 2.0
        %v773 = vmul.f32 %v772, %v714
        %v774 = vsub.f32 %v770, %v773
        %v775 = vmul.f32 %v750, %v750
        %v776 = vmul.f32 %v775, %v691
        %v777 = vadd.f32 %v774, %v776
        %v778 = vmul.f32 %v777, %v729
        %v779 = vmax.f32 %v778, 0.0
        %v780 = vrsqrt.pop %v779
        %v781 = vmul.f32 %v780, %v779
        %v782 = vmul.f32 %v781, %v780
        %v783 = vmul.f32 0.5, %v782
        %v784 = vsub.f32 1.5, %v783
        %v785 = vmul.f32 %v780, %v784
        %v786 = vmul.f32 %v779, %v785
        %vm787 = vcmp.eq.f32.partialorder %v779, inf
        %v788 = vsel %vm787, %v779, %v786
        %vm789 = vcmp.eq.f32.partialorder %v779, 0.0
        %v790 = vand.u32 %v779, 2147483648
        %v791 = vsel %vm789, %v790, %v788
        %v792 = vmul.f32 %v746, %v506
        %v793 = vmul.f32 %v748, %v791
        %v794 = vadd.f32 %v792, %v793
        %v795 = vlog2.pop %v794
        %v796 = vmul.f32 %v795, 0.6931472
        %797 = vst [vmem:[%s487] sm:$0xff] %v796
        %s798 = sand.u32 %s184, 1
        %s799 = scalar_lea.sflag [#allocation3], %s798
        %s800 = sand.u32 %s184, 1
        %s801 = smul.addr %s800, 8
        %s802 = scalar_lea.vmem [#allocation5], %s801
        %p803 = scmp.lt.s32.totalorder %s30, 2
        %s804 = scalar_select %p803, %s30, 2
        %s805 = smul.addr %s804, 8
        %s806 = scalar_lea.vmem %s7, %s805
        %p807 = scmp.lt.s32.totalorder %s30, 2
        %s808 = scalar_select %p807, %s30, 2
        %s809 = smul.addr %s808, 8
        %s810 = scalar_lea.vmem %s8, %s809
        %p811 = scmp.lt.s32.totalorder %s30, 2
        %s812 = scalar_select %p811, %s30, 2
        %s813 = scalar_lea.vmem %s9, %s812
        %s814 = sand.u32 %s288, 1
        %s815 = scalar_lea.sflag [#allocation7], %s814
        %s816 = sand.u32 %s288, 1
        %s817 = scalar_lea.vmem [#allocation6], %s816
        %p818 = scmp.lt.s32.totalorder %s30, 2
        %s819 = scalar_select %p818, %s30, 2
        %s820 = smul.addr %s819, 8
        %s821 = scalar_lea.vmem %s11, %s820
        // Predicated region
        $region49: #{hdp_cluster_em_forward.4} parent=43 // pred_check
          %p822 = pneg %p194
        $region50: #{hdp_cluster_em_forward.4} parent=43 // pred_check_branch
          %824 = sbr.rel (%p822) target = $region52
        $region51: #{hdp_cluster_em_forward.4} parent=43 // pred_region
          %826 = vsyncadd %s799, 0
          %s827 = smul.addr %s30, 8
          %s828 = scalar_lea.hbm %s6, %s827
          %s830 = sshll.u32 %s802, 4
          %s831 = int_to_ptr.vmem [resolvable:$true] %s830
          %s832 = sshll.u32 %s828, 4
          %s833 = int_to_ptr.hbm [resolvable:$true] %s832
          %835 = dma.vmem_to_hbm [thread:$0]  %s831, 128, %s833, %s799
        $region52: #{hdp_cluster_em_forward.4} parent=43 // pred_fallthru
          _
        // Predicated region
        $region53: #{hdp_cluster_em_forward.4} parent=43 // pred_check
          %p836 = pneg %p220
        $region54: #{hdp_cluster_em_forward.4} parent=43 // pred_check_branch
          %838 = sbr.rel (%p836) target = $region56
        $region55: #{hdp_cluster_em_forward.4} parent=43 // pred_region
          _
        $region56: #{hdp_cluster_em_forward.4} parent=43 // pred_fallthru
          _
        // Predicated region
        $region57: #{hdp_cluster_em_forward.4} parent=43 // pred_check
          %p839 = pneg %p246
        $region58: #{hdp_cluster_em_forward.4} parent=43 // pred_check_branch
          %841 = sbr.rel (%p839) target = $region60
        $region59: #{hdp_cluster_em_forward.4} parent=43 // pred_region
          _
        $region60: #{hdp_cluster_em_forward.4} parent=43 // pred_fallthru
          _
        // Predicated region
        $region61: #{hdp_cluster_em_forward.4} parent=43 // pred_check
          %p842 = pneg %p272
        $region62: #{hdp_cluster_em_forward.4} parent=43 // pred_check_branch
          %844 = sbr.rel (%p842) target = $region64
        $region63: #{hdp_cluster_em_forward.4} parent=43 // pred_region
          _
        $region64: #{hdp_cluster_em_forward.4} parent=43 // pred_fallthru
          _
        // Predicated region
        $region65: #{hdp_cluster_em_forward.4} parent=43 // pred_check
          %p845 = pneg %p298
        $region66: #{hdp_cluster_em_forward.4} parent=43 // pred_check_branch
          %847 = sbr.rel (%p845) target = $region68
        $region67: #{hdp_cluster_em_forward.4} parent=43 // pred_region
          %849 = vsyncadd %s815, 0
          %s850 = scalar_lea.hbm %s10, %s30
          %s852 = sshll.u32 %s817, 4
          %s853 = int_to_ptr.vmem [resolvable:$true] %s852
          %s854 = sshll.u32 %s850, 4
          %s855 = int_to_ptr.hbm [resolvable:$true] %s854
          %857 = dma.vmem_to_hbm [thread:$0]  %s853, 16, %s855, %s815
        $region68: #{hdp_cluster_em_forward.4} parent=43 // pred_fallthru
          _
        // Predicated region
        $region69: #{hdp_cluster_em_forward.4} parent=43 // pred_check
          %p858 = pneg %p324
        $region70: #{hdp_cluster_em_forward.4} parent=43 // pred_check_branch
          %860 = sbr.rel (%p858) target = $region72
        $region71: #{hdp_cluster_em_forward.4} parent=43 // pred_region
          _
        $region72: #{hdp_cluster_em_forward.4} parent=43 // pred_fallthru
          _
      $region44: #{hdp_cluster_em_forward.4} parent=5 // pred_fallthru
        _
      %p861 = scmp.le.s32.totalorder 2, %s25
      // Predicated region
      $region73: #{hdp_cluster_em_forward.4} parent=5 // pred_check
        %p862 = pneg %p861
      $region74: #{hdp_cluster_em_forward.4} parent=5 // pred_check_branch
        %864 = sbr.rel (%p862) target = $region76
      $region75: #{hdp_cluster_em_forward.4} parent=5 // pred_region
        %s865 = ssub.s32 %s25, 2
        // Predicated region
        $region77: #{hdp_cluster_em_forward.4} parent=75 // pred_check
          %p866 = pneg %p200
        $region78: #{hdp_cluster_em_forward.4} parent=75 // pred_check_branch
          %868 = sbr.rel (%p866) target = $region80
        $region79: #{hdp_cluster_em_forward.4} parent=75 // pred_region
          %s869 = sand.u32 %s185, 1
          %s870 = scalar_lea.sflag [#allocation3], %s869
          %s871 = sand.u32 %s185, 1
          %s872 = smul.addr %s871, 8
          %s873 = scalar_lea.vmem [#allocation5], %s872
          %875 = dma.done %s870, 128
        $region80: #{hdp_cluster_em_forward.4} parent=75 // pred_fallthru
          _
        // Predicated region
        $region81: #{hdp_cluster_em_forward.4} parent=75 // pred_check
          %p876 = pneg %p226
        $region82: #{hdp_cluster_em_forward.4} parent=75 // pred_check_branch
          %878 = sbr.rel (%p876) target = $region84
        $region83: #{hdp_cluster_em_forward.4} parent=75 // pred_region
          %p879 = scmp.lt.s32.totalorder %s31, 2
          %s880 = scalar_select %p879, %s31, 2
          %s881 = smul.addr %s880, 8
          %s882 = scalar_lea.vmem %s7, %s881
        $region84: #{hdp_cluster_em_forward.4} parent=75 // pred_fallthru
          _
        // Predicated region
        $region85: #{hdp_cluster_em_forward.4} parent=75 // pred_check
          %p883 = pneg %p252
        $region86: #{hdp_cluster_em_forward.4} parent=75 // pred_check_branch
          %885 = sbr.rel (%p883) target = $region88
        $region87: #{hdp_cluster_em_forward.4} parent=75 // pred_region
          %p886 = scmp.lt.s32.totalorder %s31, 2
          %s887 = scalar_select %p886, %s31, 2
          %s888 = smul.addr %s887, 8
          %s889 = scalar_lea.vmem %s8, %s888
        $region88: #{hdp_cluster_em_forward.4} parent=75 // pred_fallthru
          _
        // Predicated region
        $region89: #{hdp_cluster_em_forward.4} parent=75 // pred_check
          %p890 = pneg %p278
        $region90: #{hdp_cluster_em_forward.4} parent=75 // pred_check_branch
          %892 = sbr.rel (%p890) target = $region92
        $region91: #{hdp_cluster_em_forward.4} parent=75 // pred_region
          %p893 = scmp.lt.s32.totalorder %s31, 2
          %s894 = scalar_select %p893, %s31, 2
          %s895 = scalar_lea.vmem %s9, %s894
        $region92: #{hdp_cluster_em_forward.4} parent=75 // pred_fallthru
          _
        // Predicated region
        $region93: #{hdp_cluster_em_forward.4} parent=75 // pred_check
          %p896 = pneg %p304
        $region94: #{hdp_cluster_em_forward.4} parent=75 // pred_check_branch
          %898 = sbr.rel (%p896) target = $region96
        $region95: #{hdp_cluster_em_forward.4} parent=75 // pred_region
          %s899 = sand.u32 %s289, 1
          %s900 = scalar_lea.sflag [#allocation7], %s899
          %s901 = sand.u32 %s289, 1
          %s902 = scalar_lea.vmem [#allocation6], %s901
          %904 = dma.done %s900, 16
        $region96: #{hdp_cluster_em_forward.4} parent=75 // pred_fallthru
          _
        // Predicated region
        $region97: #{hdp_cluster_em_forward.4} parent=75 // pred_check
          %p905 = pneg %p330
        $region98: #{hdp_cluster_em_forward.4} parent=75 // pred_check_branch
          %907 = sbr.rel (%p905) target = $region100
        $region99: #{hdp_cluster_em_forward.4} parent=75 // pred_region
          %p908 = scmp.lt.s32.totalorder %s31, 2
          %s909 = scalar_select %p908, %s31, 2
          %s910 = smul.addr %s909, 8
          %s911 = scalar_lea.vmem %s11, %s910
        $region100: #{hdp_cluster_em_forward.4} parent=75 // pred_fallthru
          _
      $region76: #{hdp_cluster_em_forward.4} parent=5 // pred_fallthru
        _
    $region6: #{hdp_cluster_em_forward.4} parent=1 // loop_footer
      %s29 = sadd.s32 1, %s25
    $region7: #{hdp_cluster_em_forward.4} parent=1 // loop_footer_branch
      %24 = sbr.rel target = $region3
    $region8: #{hdp_cluster_em_forward.4} parent=1 // loop_exit
      _
    %912 = vsyncpa [#allocation3], 1
    %s913 = scalar_lea.sflag [#allocation3], 1
    %914 = vsyncpa %s913, 1
    %915 = vsyncpa [#allocation7], 1
    %s916 = scalar_lea.sflag [#allocation7], 1
    %917 = vsyncpa %s916, 1
    %918 = vsyncpa [#allocation4], 1
    %s919 = scalar_lea.sflag [#allocation4], 1
    %920 = vsyncpa %s919, 1

// kernel: hdp_cluster_em_forward.5
$region0: #{hdp_cluster_em_forward.5}
  #allocation0 [shape = 'u32[]', space=smem, size = 0x4, offset = 0x4, fixed_abs, tag = 'smem constant byte address 0x4 - core index']
  #allocation1 [shape = 'u32[72,128]{1,0:T(1,128)}', space=vmem, size = 0x9000, scoped, tag = 'internal scratch']
  %s0 = inlined_call_operand.vmem [shape: f32[16,128], index: 0, kind: input, shape index: {}]
  %s1 = inlined_call_operand.vmem [shape: f32[3,8,128], index: 1, kind: input, shape index: {}]
  %s2 = inlined_call_operand.vmem [shape: f32[3,8,128], index: 2, kind: input, shape index: {}]
  %s3 = inlined_call_operand.vmem [shape: f32[3,8,16], index: 3, kind: input, shape index: {}]
  %s4 = inlined_call_operand.vmem [shape: f32[3,1,16], index: 4, kind: output, shape index: {}]
  %s5 = sld [smem:[#allocation0]]
  $region49: #{hdp_cluster_em_forward.5} parent=0
    _
  %s7 = ssub.s32 1, %s5
  %s8 = scalar_select 0, %s7, %s5
  loop: start=0, step=1, limit=5
  $region2: #{hdp_cluster_em_forward.5} parent=0 // loop_pre_header
    _
  $region3: #{hdp_cluster_em_forward.5} parent=0 // loop_header
    %s10 = sphi 0, %s14
    %p11 = scmp.ge.s32.totalorder %s10, 5
    %s18 = sphi 0, %s18
    %s20 = sphi 0, %s18
    %s21 = sphi 0, %s20
    %s35 = sphi 0, %s21
    %s41 = sphi 0, %s43
    %s44 = sphi 0, %s41
    %s45 = sphi 0, %s44
    %s61 = sphi 0, %s45
    %s67 = sphi 0, %s69
    %s70 = sphi 0, %s67
    %s71 = sphi 0, %s70
    %s87 = sphi 0, %s71
    %s93 = sphi 0, %s95
    %s96 = sphi 0, %s93
    %s97 = sphi 0, %s96
    %s113 = sphi 0, %s97
    %s119 = sphi 0, %s121
    %s122 = sphi 0, %s119
    %s123 = sphi 0, %s122
    %s139 = sphi 0, %s123
  $region4: #{hdp_cluster_em_forward.5} parent=0 // loop_header_branch
    %13 = sbr.rel (%p11) target = $region8
  $region5: #{hdp_cluster_em_forward.5} parent=0 // loop_body
    %s15 = ssub.s32 %s10, 1
    %s16 = ssub.s32 %s10, 2
    %s17 = sadd.s32 %s10, 1
    %s19 = sadd.s32 %s18, 1
    %p22 = scmp.eq.s32.totalorder %s10, 2
    %p23 = scmp.ne.s32.totalorder %s18, %s20
    %p24 = scmp.eq.s32.totalorder %s10, 0
    %p25 = por %p23, %p24
    %p26 = scmp.ne.s32.totalorder %s18, %s20
    %p27 = scmp.eq.s32.totalorder %s15, 2
    %p28 = por %p26, %p27
    %p29 = scmp.ne.s32.totalorder %s20, %s21
    %p30 = scmp.eq.s32.totalorder %s15, 0
    %p31 = por %p29, %p30
    %p32 = scmp.ne.s32.totalorder %s20, %s21
    %p33 = scmp.eq.s32.totalorder %s16, 2
    %p34 = por %p32, %p33
    %p36 = scmp.ne.s32.totalorder %s21, %s35
    %p37 = scmp.eq.s32.totalorder %s16, 0
    %p38 = por %p36, %p37
    %s39 = ssub.s32 %s10, %s17
    %p40 = scmp.eq.s32.totalorder %s39, 0
    %s42 = sadd.s32 %s41, 1
    %s43 = scalar_select %p40, %s41, %s42
    %p46 = pneg %p40
    %p47 = scmp.eq.s32.totalorder %s10, 2
    %p48 = por %p46, %p47
    %p49 = scmp.ne.s32.totalorder %s41, %s44
    %p50 = scmp.eq.s32.totalorder %s10, 0
    %p51 = por %p49, %p50
    %p52 = scmp.ne.s32.totalorder %s41, %s44
    %p53 = scmp.eq.s32.totalorder %s15, 2
    %p54 = por %p52, %p53
    %p55 = scmp.ne.s32.totalorder %s44, %s45
    %p56 = scmp.eq.s32.totalorder %s15, 0
    %p57 = por %p55, %p56
    %p58 = scmp.ne.s32.totalorder %s44, %s45
    %p59 = scmp.eq.s32.totalorder %s16, 2
    %p60 = por %p58, %p59
    %p62 = scmp.ne.s32.totalorder %s45, %s61
    %p63 = scmp.eq.s32.totalorder %s16, 0
    %p64 = por %p62, %p63
    %s65 = ssub.s32 %s10, %s17
    %p66 = scmp.eq.s32.totalorder %s65, 0
    %s68 = sadd.s32 %s67, 1
    %s69 = scalar_select %p66, %s67, %s68
    %p72 = pneg %p66
    %p73 = scmp.eq.s32.totalorder %s10, 2
    %p74 = por %p72, %p73
    %p75 = scmp.ne.s32.totalorder %s67, %s70
    %p76 = scmp.eq.s32.totalorder %s10, 0
    %p77 = por %p75, %p76
    %p78 = scmp.ne.s32.totalorder %s67, %s70
    %p79 = scmp.eq.s32.totalorder %s15, 2
    %p80 = por %p78, %p79
    %p81 = scmp.ne.s32.totalorder %s70, %s71
    %p82 = scmp.eq.s32.totalorder %s15, 0
    %p83 = por %p81, %p82
    %p84 = scmp.ne.s32.totalorder %s70, %s71
    %p85 = scmp.eq.s32.totalorder %s16, 2
    %p86 = por %p84, %p85
    %p88 = scmp.ne.s32.totalorder %s71, %s87
    %p89 = scmp.eq.s32.totalorder %s16, 0
    %p90 = por %p88, %p89
    %s91 = ssub.s32 %s10, %s17
    %p92 = scmp.eq.s32.totalorder %s91, 0
    %s94 = sadd.s32 %s93, 1
    %s95 = scalar_select %p92, %s93, %s94
    %p98 = pneg %p92
    %p99 = scmp.eq.s32.totalorder %s10, 2
    %p100 = por %p98, %p99
    %p101 = scmp.ne.s32.totalorder %s93, %s96
    %p102 = scmp.eq.s32.totalorder %s10, 0
    %p103 = por %p101, %p102
    %p104 = scmp.ne.s32.totalorder %s93, %s96
    %p105 = scmp.eq.s32.totalorder %s15, 2
    %p106 = por %p104, %p105
    %p107 = scmp.ne.s32.totalorder %s96, %s97
    %p108 = scmp.eq.s32.totalorder %s15, 0
    %p109 = por %p107, %p108
    %p110 = scmp.ne.s32.totalorder %s96, %s97
    %p111 = scmp.eq.s32.totalorder %s16, 2
    %p112 = por %p110, %p111
    %p114 = scmp.ne.s32.totalorder %s97, %s113
    %p115 = scmp.eq.s32.totalorder %s16, 0
    %p116 = por %p114, %p115
    %s117 = ssub.s32 %s10, %s17
    %p118 = scmp.eq.s32.totalorder %s117, 0
    %s120 = sadd.s32 %s119, 1
    %s121 = scalar_select %p118, %s119, %s120
    %p124 = pneg %p118
    %p125 = scmp.eq.s32.totalorder %s10, 2
    %p126 = por %p124, %p125
    %p127 = scmp.ne.s32.totalorder %s119, %s122
    %p128 = scmp.eq.s32.totalorder %s10, 0
    %p129 = por %p127, %p128
    %p130 = scmp.ne.s32.totalorder %s119, %s122
    %p131 = scmp.eq.s32.totalorder %s15, 2
    %p132 = por %p130, %p131
    %p133 = scmp.ne.s32.totalorder %s122, %s123
    %p134 = scmp.eq.s32.totalorder %s15, 0
    %p135 = por %p133, %p134
    %p136 = scmp.ne.s32.totalorder %s122, %s123
    %p137 = scmp.eq.s32.totalorder %s16, 2
    %p138 = por %p136, %p137
    %p140 = scmp.ne.s32.totalorder %s123, %s139
    %p141 = scmp.eq.s32.totalorder %s16, 0
    %p142 = por %p140, %p141
    %p143 = scmp.le.s32.totalorder 1, %s10
    %p144 = scmp.lt.s32.totalorder %s10, 4
    %p145 = pnand %p143, %p144
    %p146 = pneg %p145
    // Predicated region
    $region9: #{hdp_cluster_em_forward.5} parent=5 // pred_check
      _
    $region10: #{hdp_cluster_em_forward.5} parent=5 // pred_check_branch
      %148 = sbr.rel (%p145) target = $region12
    $region11: #{hdp_cluster_em_forward.5} parent=5 // pred_region
      %s149 = ssub.s32 %s10, 1
      // Predicated region
      $region13: #{hdp_cluster_em_forward.5} parent=11 // pred_check
        %p150 = pneg %p31
      $region14: #{hdp_cluster_em_forward.5} parent=11 // pred_check_branch
        %152 = sbr.rel (%p150) target = $region16
      $region15: #{hdp_cluster_em_forward.5} parent=11 // pred_region
        _
      $region16: #{hdp_cluster_em_forward.5} parent=11 // pred_fallthru
        _
    $region12: #{hdp_cluster_em_forward.5} parent=5 // pred_fallthru
      _
    %p153 = scmp.lt.s32.totalorder %s10, 3
    // Predicated region
    $region17: #{hdp_cluster_em_forward.5} parent=5 // pred_check
      %p154 = pneg %p153
    $region18: #{hdp_cluster_em_forward.5} parent=5 // pred_check_branch
      %156 = sbr.rel (%p154) target = $region20
    $region19: #{hdp_cluster_em_forward.5} parent=5 // pred_region
      // Predicated region
      $region21: #{hdp_cluster_em_forward.5} parent=19 // pred_check
        %p157 = pneg %p51
      $region22: #{hdp_cluster_em_forward.5} parent=19 // pred_check_branch
        %159 = sbr.rel (%p157) target = $region24
      $region23: #{hdp_cluster_em_forward.5} parent=19 // pred_region
        %p160 = scmp.lt.s32.totalorder %s10, 2
        %s161 = scalar_select %p160, %s10, 2
        %s162 = smul.addr %s161, 8
        %s163 = scalar_lea.vmem %s1, %s162
      $region24: #{hdp_cluster_em_forward.5} parent=19 // pred_fallthru
        _
      // Predicated region
      $region25: #{hdp_cluster_em_forward.5} parent=19 // pred_check
        %p164 = pneg %p77
      $region26: #{hdp_cluster_em_forward.5} parent=19 // pred_check_branch
        %166 = sbr.rel (%p164) target = $region28
      $region27: #{hdp_cluster_em_forward.5} parent=19 // pred_region
        %p167 = scmp.lt.s32.totalorder %s10, 2
        %s168 = scalar_select %p167, %s10, 2
        %s169 = smul.addr %s168, 8
        %s170 = scalar_lea.vmem %s2, %s169
      $region28: #{hdp_cluster_em_forward.5} parent=19 // pred_fallthru
        _
      // Predicated region
      $region29: #{hdp_cluster_em_forward.5} parent=19 // pred_check
        %p171 = pneg %p103
      $region30: #{hdp_cluster_em_forward.5} parent=19 // pred_check_branch
        %173 = sbr.rel (%p171) target = $region32
      $region31: #{hdp_cluster_em_forward.5} parent=19 // pred_region
        %p174 = scmp.lt.s32.totalorder %s10, 2
        %s175 = scalar_select %p174, %s10, 2
        %s176 = smul.addr %s175, 8
        %s177 = scalar_lea.vmem %s3, %s176
      $region32: #{hdp_cluster_em_forward.5} parent=19 // pred_fallthru
        _
    $region20: #{hdp_cluster_em_forward.5} parent=5 // pred_fallthru
      _
    %p178 = scmp.le.s32.totalorder 1, %s10
    %p179 = scmp.lt.s32.totalorder %s10, 4
    %p180 = pnand %p178, %p179
    %p181 = pneg %p180
    // Predicated region
    $region33: #{hdp_cluster_em_forward.5} parent=5 // pred_check
      _
    $region34: #{hdp_cluster_em_forward.5} parent=5 // pred_check_branch
      %183 = sbr.rel (%p180) target = $region36
    $region35: #{hdp_cluster_em_forward.5} parent=5 // pred_region
      %s184 = ssub.s32 %s10, 1
      %p185 = pneg %p31
      %p186 = pneg %p28
      %p187 = scmp.lt.s32.totalorder %s15, 2
      %s188 = scalar_select %p187, %s15, 2
      %s189 = smul.addr %s188, 8
      %s190 = scalar_lea.vmem %s1, %s189
      %p191 = pneg %p57
      %p192 = pneg %p54
      %p193 = scmp.lt.s32.totalorder %s15, 2
      %s194 = scalar_select %p193, %s15, 2
      %s195 = smul.addr %s194, 8
      %s196 = scalar_lea.vmem %s2, %s195
      %p197 = pneg %p83
      %p198 = pneg %p80
      %p199 = scmp.lt.s32.totalorder %s15, 2
      %s200 = scalar_select %p199, %s15, 2
      %s201 = smul.addr %s200, 8
      %s202 = scalar_lea.vmem %s3, %s201
      %p203 = pneg %p109
      %p204 = pneg %p106
      %p205 = pneg %p135
      %p206 = pneg %p132
      %p207 = scmp.lt.s32.totalorder %s15, 2
      %s208 = scalar_select %p207, %s15, 2
      %s209 = scalar_lea.vmem %s4, %s208
      %p210 = scmp.lt.s32.totalorder %s15, 2
      %s211 = scalar_select %p210, %s15, 2
      %s212 = smul.addr %s211, 8
      %s213 = scalar_lea.vmem %s1, %s212
      %p214 = scmp.lt.s32.totalorder %s15, 2
      %s215 = scalar_select %p214, %s15, 2
      %s216 = smul.addr %s215, 8
      %s217 = scalar_lea.vmem %s2, %s216
      %p218 = scmp.lt.s32.totalorder %s15, 2
      %s219 = scalar_select %p218, %s15, 2
      %s220 = smul.addr %s219, 8
      %s221 = scalar_lea.vmem %s3, %s220
      %p222 = scmp.lt.s32.totalorder %s15, 2
      %s223 = scalar_select %p222, %s15, 2
      %s224 = scalar_lea.vmem %s4, %s223
      %v225 = vld [vmem:[%s0] sm:$0xff]
      %v226 = vld [vmem:[%s0 + $0x8] sm:$0xff]
      %v227 = vmul.f32 %v225, %v225
      %v228 = vmul.f32 %v226, %v226
      %v229 = vld [vmem:[%s213] sm:$0xff]
      %v230 = vld [vmem:[%s217] sm:$0xff]
      %v231 = vld [vmem:[%s221] sm:$0xff]
      %v232 = vlog2.pop %v231
      %v233 = vmul.f32 %v232, 0.6931472
      %v234 = vmul.f32 %v230, 1.442695
      %v235 = vpow.pop %v234
      %v236 = vmul.f32 %v235, 2.0
      %v237 = vmul.f32 %v236, %v235
      %v238 = vrcp.pop %v237
      %v239 = vmul.f32 %v237, %v238
      %v240 = vsub.f32 1.0, %v239
      %v241 = vmul.f32 %v238, %v240
      %v242 = vadd.f32 %v238, %v241
      %vm243 = vweird.f32 %v237
      %vm244 = vweird.f32 %v238
      %vm245 = vmor %vm243, %vm244
      %v246 = vsel %vm245, %v238, %v242
      %v247 = vand.u32 2147483647, %v237
      %vm248 = vcmp.eq.f32.partialorder %v247, 8.507059e+37
      %v249 = vand.u32 %v237, 2147483648
      %v250 = vor.u32 1.1754944e-38, %v249
      %v251 = vsel %vm248, %v250, %v246
      %v252 = vmul.f32 1.0, %v251
      %253 = vmatpush.xpose.msra.mxu0 0.0
      %254 = vmatpush.xpose.msra.mxu0 0.0
      %255 = vmatpush.xpose.msra.mxu0 0.0
      %256 = vmatpush.xpose.msra.mxu0 0.0
      %257 = vmatpush.xpose.msra.mxu0 0.0
      %258 = vmatpush.xpose.msra.mxu0 0.0
      %259 = vmatpush.xpose.msra.mxu0 0.0
      %260 = vmatpush.xpose.msra.mxu0 0.0
      %261 = vmatpush.xpose.msra.mxu0 0.0
      %262 = vmatpush.xpose.msra.mxu0 0.0
      %263 = vmatpush.xpose.msra.mxu0 0.0
      %264 = vmatpush.xpose.msra.mxu0 0.0
      %265 = vmatpush.xpose.msra.mxu0 0.0
      %266 = vmatpush.xpose.msra.mxu0 0.0
      %267 = vmatpush.xpose.msra.mxu0 %v228
      %268 = vmatpush.xpose.msra.mxu0 %v227
      %269 = vmatmul.f32.gmra.mxu0 %v252
      %v270 = vpop.f32.mrf.mxu0
      %v271 = vadd.f32 0.0, %v270
      %272 = vdwg.mxu0
      %v273 = vmul.f32 %v229, %v252
      %274 = vmatpush.xpose.msra.mxu0 0.0
      %275 = vmatpush.xpose.msra.mxu0 0.0
      %276 = vmatpush.xpose.msra.mxu0 0.0
      %277 = vmatpush.xpose.msra.mxu0 0.0
      %278 = vmatpush.xpose.msra.mxu0 0.0
      %279 = vmatpush.xpose.msra.mxu0 0.0
      %280 = vmatpush.xpose.msra.mxu0 0.0
      %281 = vmatpush.xpose.msra.mxu0 0.0
      %282 = vmatpush.xpose.msra.mxu0 0.0
      %283 = vmatpush.xpose.msra.mxu0 0.0
      %284 = vmatpush.xpose.msra.mxu0 0.0
      %285 = vmatpush.xpose.msra.mxu0 0.0
      %286 = vmatpush.xpose.msra.mxu0 0.0
      %287 = vmatpush.xpose.msra.mxu0 0.0
      %288 = vmatpush.xpose.msra.mxu0 %v226
      %289 = vmatpush.xpose.msra.mxu0 %v225
      %290 = vmatmul.f32.gmra.mxu0 %v273
      %v291 = vpop.f32.mrf.mxu0
      %v292 = vadd.f32 0.0, %v291
      %293 = vdwg.mxu0
      %v294 = vmul.f32 %v292, 2.0
      %v295 = vsub.f32 %v271, %v294
      %v296 = vmul.f32 %v229, %v229
      %v297 = vmul.f32 %v296, %v252
      %v298 = vadd.f32 %v297, %v230
      %299 = vadd.xlane.f32.xlu0 %v298
      %v300 = vpop.xlane.xlu0 %299
      %v301 = vsub.f32 -117.62413, %v295
      %v302 = vsub.f32 %v301, %v300
      %v303 = vadd.f32 %v233, %v302
      %vm304 = vcmask 130048
      %v305 = vsel %vm304, %v303, 0.0
      %v306 = vrot.slane %v305, 4
      %v307 = vadd.f32 %v305, %v306
      %v308 = vrot.slane %v307, 2
      %v309 = vadd.f32 %v307, %v308
      %v310 = vrot.slane %v309, 1
      %v311 = vadd.f32 %v309, %v310
      %vm312 = vcmask 122880
      %313 = vst.msk [vmem:[%s224] sm:$0x1] %vm312, %v311
      %p314 = scmp.lt.s32.totalorder %s15, 2
      %s315 = scalar_select %p314, %s15, 2
      %s316 = scalar_lea.vmem %s4, %s315
      // Predicated region
      $region37: #{hdp_cluster_em_forward.5} parent=35 // pred_check
        %p317 = pneg %p132
      $region38: #{hdp_cluster_em_forward.5} parent=35 // pred_check_branch
        %319 = sbr.rel (%p317) target = $region40
      $region39: #{hdp_cluster_em_forward.5} parent=35 // pred_region
        _
      $region40: #{hdp_cluster_em_forward.5} parent=35 // pred_fallthru
        _
    $region36: #{hdp_cluster_em_forward.5} parent=5 // pred_fallthru
      _
    %p320 = scmp.le.s32.totalorder 2, %s10
    // Predicated region
    $region41: #{hdp_cluster_em_forward.5} parent=5 // pred_check
      %p321 = pneg %p320
    $region42: #{hdp_cluster_em_forward.5} parent=5 // pred_check_branch
      %323 = sbr.rel (%p321) target = $region44
    $region43: #{hdp_cluster_em_forward.5} parent=5 // pred_region
      %s324 = ssub.s32 %s10, 2
      // Predicated region
      $region45: #{hdp_cluster_em_forward.5} parent=43 // pred_check
        %p325 = pneg %p138
      $region46: #{hdp_cluster_em_forward.5} parent=43 // pred_check_branch
        %327 = sbr.rel (%p325) target = $region48
      $region47: #{hdp_cluster_em_forward.5} parent=43 // pred_region
        %p328 = scmp.lt.s32.totalorder %s16, 2
        %s329 = scalar_select %p328, %s16, 2
        %s330 = scalar_lea.vmem %s4, %s329
      $region48: #{hdp_cluster_em_forward.5} parent=43 // pred_fallthru
        _
    $region44: #{hdp_cluster_em_forward.5} parent=5 // pred_fallthru
      _
  $region6: #{hdp_cluster_em_forward.5} parent=0 // loop_footer
    %s14 = sadd.s32 1, %s10
  $region7: #{hdp_cluster_em_forward.5} parent=0 // loop_footer_branch
    %9 = sbr.rel target = $region3
  $region8: #{hdp_cluster_em_forward.5} parent=0 // loop_exit
    _

// kernel: sub.89
$region0: #{sub.89}
  #allocation0 [shape = 's32[1]{0}', space=sflag, size = 0x4, scoped, tag = 'scoped memory for sub.89']
  %s0 = inlined_call_operand.vmem [shape: f32[16,3], index: 0, kind: input, shape index: {}]
  %s1 = inlined_call_operand.vmem [shape: f32[16,3], index: 1, kind: input, shape index: {}]
  %s2 = inlined_call_operand.vmem [shape: f32[16,3], index: 2, kind: output, shape index: {}]
  %v3 = vld [vmem:[%s0] sm:$0xff]
  %v4 = vld [vmem:[%s1] sm:$0xff]
  %5 = xla_tuple %v3, %v4
  %6 = xla_tuple %5
  %v7 = vsub.f32 %v3, %v4
  %8 = xla_tuple %v7
  %9 = vst [vmem:[%s2] sm:$0xff] %v7
  %s10 = scalar_lea.vmem %s0, 8
  %v11 = vld [vmem:[%s10] sm:$0xff]
  %s12 = scalar_lea.vmem %s1, 8
  %v13 = vld [vmem:[%s12] sm:$0xff]
  %14 = xla_tuple %v11, %v13
  %15 = xla_tuple %14
  %v16 = vsub.f32 %v11, %v13
  %17 = xla_tuple %v16
  %s18 = scalar_lea.vmem %s2, 8
  %19 = vst [vmem:[%s18] sm:$0xff] %v16

</llo_original>
